<compile_context>
chip_gen: v7x
topology: tpu7x:2x2x1
jax: 0.10.0
libtpu: 0.0.40
codegen_flags: <defaults>
</compile_context>

<pallas_src>
from functools import partial

import jax
import jax.numpy as jnp
from jax.experimental import pallas as pl
from jax.experimental.pallas import tpu as pltpu


# ----------------------------------------------------------------------------
# Pallas kernels
# ----------------------------------------------------------------------------
def _precompute_kernel(enc_ref, embf_ref,
                       w_enc_att_ref, b_enc_att_ref,
                       w_init_h_ref, b_init_h_ref,
                       w_init_c_ref, b_init_c_ref,
                       w_ih_e_ref,
                       att1_ref, h_ref, c_ref, embproj_ref):
    """Timestep-invariant precompute: att1, (h0, c0), embedding half of W_ih."""
    enc = enc_ref[...]                                           # [B, P, E] bf16

    # encoder_att(encoder_out): batched matmul on the MXU.
    att1_ref[...] = (jnp.einsum('bpe,ea->bpa', enc, w_enc_att_ref[...],
                                preferred_element_type=jnp.float32)
                     + b_enc_att_ref[...])

    # init_hidden_state: mean over pixels, then two linears.
    m = jnp.mean(enc.astype(jnp.float32), axis=1).astype(jnp.bfloat16)  # [B, E]
    h_ref[...] = (jnp.dot(m, w_init_h_ref[...],
                          preferred_element_type=jnp.float32)
                  + b_init_h_ref[...])
    c_ref[...] = (jnp.dot(m, w_init_c_ref[...],
                          preferred_element_type=jnp.float32)
                  + b_init_c_ref[...])

    # Embedding part of the LSTM input projection for ALL timesteps at once
    # ([T*B, Ed] @ [Ed, 4D]) — far better MXU utilisation than T tiny dots.
    embproj_ref[...] = jnp.dot(embf_ref[...], w_ih_e_ref[...],
                               preferred_element_type=jnp.float32)


def _decode_step_kernel(embp_ref, enc_ref, att1_ref, mask_ref, h0_ref, c0_ref,
                        w_hcat_ref, b_hcat_ref, w_full_ref,
                        w_ih_a_ref, w_fc_ref, b_fc_ref,
                        preds_ref, alpha_ref,
                        h_scr, c_scr, *, A, E, D):
    """One decoding timestep; h/c carried in VMEM scratch across the T grid."""
    t = pl.program_id(0)

    @pl.when(t == 0)
    def _():
        h_scr[...] = h0_ref[...]
        c_scr[...] = c0_ref[...]

    h = h_scr[...]                                   # [B, D] f32
    c = c_scr[...]                                   # [B, D] f32
    h_bf = h.astype(jnp.bfloat16)

    # ---- Fused h-dependent projection: [decoder_att | f_beta | W_hh] -------
    fused = (jnp.dot(h_bf, w_hcat_ref[...],
                     preferred_element_type=jnp.float32)
             + b_hcat_ref[...])                      # [B, A + E + 4D]
    att2 = fused[:, :A]                              # decoder_att(h) + b
    gate = jax.nn.sigmoid(fused[:, A:A + E])         # sigmoid(f_beta(h))
    hh = fused[:, A + E:]                            # W_hh @ h + (b_ih + b_hh)

    # ---- Attention ----------------------------------------------------------
    pre = jnp.maximum(att1_ref[...] + att2[:, None, :], 0.0)     # [B, P, A]
    # full_att is Linear(A, 1); its bias is constant across pixels and cancels
    # inside the softmax, so only the weight row is applied here.
    e = jnp.sum(pre * w_full_ref[...][None, :, :], axis=-1)      # [B, P]
    e = e - jnp.max(e, axis=-1, keepdims=True)
    ee = jnp.exp(e)
    alpha = ee / jnp.sum(ee, axis=-1, keepdims=True)             # [B, P]

    awe = jnp.sum(enc_ref[...].astype(jnp.float32) * alpha[:, :, None],
                  axis=1)                                        # [B, E]
    awe = gate * awe

    # ---- LSTMCell on [embedding_t ; gated attention] ------------------------
    gates = (embp_ref[0] + hh
             + jnp.dot(awe.astype(jnp.bfloat16), w_ih_a_ref[...],
                       preferred_element_type=jnp.float32))      # [B, 4D]
    i_g = jax.nn.sigmoid(gates[:, 0 * D:1 * D])
    f_g = jax.nn.sigmoid(gates[:, 1 * D:2 * D])
    g_g = jnp.tanh(gates[:, 2 * D:3 * D])
    o_g = jax.nn.sigmoid(gates[:, 3 * D:4 * D])
    c_new = f_g * c + i_g * g_g
    h_new = o_g * jnp.tanh(c_new)

    # ---- Vocabulary projection ----------------------------------------------
    # TODO(synk): nn.Dropout(p=0.5) is applied as identity (inference mode);
    # training-mode dropout would draw a mask via pltpu.prng_random_bits.
    preds = (jnp.dot(h_new.astype(jnp.bfloat16), w_fc_ref[...],
                     preferred_element_type=jnp.float32)
             + b_fc_ref[...])                                    # [B, V]

    # ---- Per-step activity mask (emulates PyTorch's shrinking batch_size_t) -
    m = mask_ref[0]                                              # [B, 1] f32
    preds_ref[...] = (preds * m)[None]
    alpha_ref[...] = (alpha * m)[None]
    h_scr[...] = m * h_new + (1.0 - m) * h
    c_scr[...] = m * c_new + (1.0 - m) * c


# ----------------------------------------------------------------------------
# Full forward (single jit; T = max(decode_lengths) is static)
# ----------------------------------------------------------------------------
@partial(jax.jit, static_argnames=("T",))
def decoder_forward(params, encoder_out, encoded_captions, caption_lengths, *, T):
    B = encoder_out.shape[0]
    E = encoder_out.shape[-1]
    enc = encoder_out.reshape(B, -1, E)                          # [B, P, E]
    P = enc.shape[1]

    A = params["w_enc_att"].shape[1]
    D = params["w_init_h"].shape[1]
    Ed = params["w_ih_e"].shape[0]
    V = params["w_fc"].shape[1]
    F = params["w_hcat"].shape[1]                                # A + E + 4D

    # --- sort batch by caption length, descending (plain-JAX glue) ----------
    cap_len = caption_lengths.reshape(B)                         # squeeze(1)
    sort_ind = jnp.argsort(-cap_len)
    cl_sorted = cap_len[sort_ind]
    enc = enc[sort_ind]
    caps = encoded_captions[sort_ind]
    decode_lengths = cl_sorted - 1

    enc_bf = enc.astype(jnp.bfloat16)

    # --- embedding lookup (gather glue), sliced to T steps -> [T*B, Ed] -----
    emb = jnp.take(params["emb"], caps, axis=0)                  # [B, L, Ed]
    emb_t = jnp.transpose(emb[:, :T, :], (1, 0, 2))              # [T, B, Ed]
    emb_flat = emb_t.reshape(T * B, Ed).astype(jnp.bfloat16)

    # --- one precompute kernel: att1, (h0, c0), embedding projection --------
    att1, h0, c0, embproj = pl.pallas_call(
        _precompute_kernel,
        out_shape=(jax.ShapeDtypeStruct((B, P, A), jnp.float32),
                   jax.ShapeDtypeStruct((B, D), jnp.float32),
                   jax.ShapeDtypeStruct((B, D), jnp.float32),
                   jax.ShapeDtypeStruct((T * B, 4 * D), jnp.float32)),
    )(enc_bf, emb_flat,
      params["w_enc_att"], params["b_enc_att"],
      params["w_init_h"], params["b_init_h"],
      params["w_init_c"], params["b_init_c"],
      params["w_ih_e"])
    embproj = embproj.reshape(T, B, 4 * D)

    # --- row b is active at step t iff t < decode_lengths[b] ----------------
    maskf = (jnp.arange(T)[:, None] < decode_lengths[None, :]
             ).astype(jnp.float32)[:, :, None]                   # [T, B, 1]

    kernel = partial(_decode_step_kernel, A=A, E=E, D=D)
    preds_tbv, alphas_tbp = pl.pallas_call(
        kernel,
        out_shape=(jax.ShapeDtypeStruct((T, B, V), jnp.float32),
                   jax.ShapeDtypeStruct((T, B, P), jnp.float32)),
        grid=(T,),
        in_specs=[
            pl.BlockSpec((1, B, 4 * D), lambda t: (t, 0, 0)),   # embproj_t
            pl.BlockSpec((B, P, E), lambda t: (0, 0, 0)),       # encoder_out (resident)
            pl.BlockSpec((B, P, A), lambda t: (0, 0, 0)),       # att1 (resident)
            pl.BlockSpec((1, B, 1), lambda t: (t, 0, 0)),       # activity mask_t
            pl.BlockSpec((B, D), lambda t: (0, 0)),             # h0
            pl.BlockSpec((B, D), lambda t: (0, 0)),             # c0
            pl.BlockSpec((D, F), lambda t: (0, 0)),             # fused h-weights
            pl.BlockSpec((1, F), lambda t: (0, 0)),             # fused h-bias
            pl.BlockSpec((1, A), lambda t: (0, 0)),             # full_att.W (row)
            pl.BlockSpec((E, 4 * D), lambda t: (0, 0)),         # lstm W_ih (attention part)
            pl.BlockSpec((D, V), lambda t: (0, 0)),             # fc.W
            pl.BlockSpec((1, V), lambda t: (0, 0)),             # fc.b
        ],
        out_specs=(pl.BlockSpec((1, B, V), lambda t: (t, 0, 0)),
                   pl.BlockSpec((1, B, P), lambda t: (t, 0, 0))),
        scratch_shapes=[pltpu.VMEM((B, D), jnp.float32),
                        pltpu.VMEM((B, D), jnp.float32)],
        compiler_params=pltpu.CompilerParams(
            dimension_semantics=("arbitrary",)),   # recurrence => sequential
    )(embproj, enc_bf, att1, maskf, h0, c0,
      params["w_hcat"], params["b_hcat"], params["w_full"],
      params["w_ih_a"], params["w_fc"], params["b_fc"])

    predictions = jnp.transpose(preds_tbv, (1, 0, 2))            # [B, T, V]
    alphas = jnp.transpose(alphas_tbp, (1, 0, 2))                # [B, T, P]
    return predictions, caps, decode_lengths, alphas, sort_ind


# ----------------------------------------------------------------------------
# Deterministic parameters (weights pre-transposed / pre-cast / pre-fused once)
# ----------------------------------------------------------------------------
def build_params(key, *, encoder_dim, attention_dim, embed_dim, decoder_dim,
                 vocab_size):
    E, A, Ed, D, V = encoder_dim, attention_dim, embed_dim, decoder_dim, vocab_size
    keys = iter(jax.random.split(key, 32))

    def uni(shape, a):
        return jax.random.uniform(next(keys), shape, jnp.float32, -a, a)

    def linear(cin, cout):
        a = cin ** -0.5
        return uni((cin, cout), a).astype(jnp.bfloat16), uni((1, cout), a)

    p = {}
    p["w_enc_att"], p["b_enc_att"] = linear(E, A)
    w_dec_att, b_dec_att = linear(D, A)
    # full_att: Linear(A, 1) — stored as a [1, A] row (its bias cancels in softmax).
    p["w_full"] = uni((1, A), A ** -0.5)
    p["w_init_h"], p["b_init_h"] = linear(E, D)
    p["w_init_c"], p["b_init_c"] = linear(E, D)
    w_fbeta, b_fbeta = linear(D, E)
    # LSTMCell(embed+E -> D): W_ih pre-split into embedding / attention halves.
    a = D ** -0.5
    p["w_ih_e"] = uni((Ed, 4 * D), a).astype(jnp.bfloat16)
    p["w_ih_a"] = uni((E, 4 * D), a).astype(jnp.bfloat16)
    w_hh = uni((D, 4 * D), a).astype(jnp.bfloat16)
    b_lstm = uni((1, 4 * D), a) + uni((1, 4 * D), a)             # b_ih + b_hh
    # Fuse the three h-dependent projections into one [D, A+E+4D] matmul.
    p["w_hcat"] = jnp.concatenate([w_dec_att, w_fbeta, w_hh], axis=1)
    p["b_hcat"] = jnp.concatenate([b_dec_att, b_fbeta, b_lstm], axis=1)
    # init_weights(): embedding & fc weights uniform(-0.1, 0.1), fc bias = 0.
    p["emb"] = uni((V, Ed), 0.1)
    p["w_fc"] = uni((D, V), 0.1).astype(jnp.bfloat16)
    p["b_fc"] = jnp.zeros((1, V), jnp.float32)
    return p


# ----------------------------------------------------------------------------
if __name__ == "__main__":
    root = jax.random.PRNGKey(0)
    pkey, ekey, ckey = jax.random.split(root, 3)

    # Small-but-lane-aligned shapes consistent with the module.
    B = 4          # batch
    P_SIDE = 4     # encoded image 4x4 -> num_pixels = 16
    E = 256        # encoder_dim
    A = 128        # attention_dim
    Ed = 128       # embed_dim
    D = 128        # decoder_dim
    V = 512        # vocab_size
    L = 9          # max caption length

    params = build_params(pkey, encoder_dim=E, attention_dim=A, embed_dim=Ed,
                          decoder_dim=D, vocab_size=V)

    encoder_out = jax.random.normal(ekey, (B, P_SIDE, P_SIDE, E), jnp.float32)
    encoded_captions = jax.random.randint(ckey, (B, L), 0, V, jnp.int32)
    caption_lengths = jnp.array([[7], [9], [5], [6]], jnp.int32)

    # max(decode_lengths) is data-dependent in PyTorch -> static arg here.
    T = int(jnp.max(caption_lengths)) - 1

    preds, caps_sorted, dec_lens, alphas, sort_ind = decoder_forward(
        params, encoder_out, encoded_captions, caption_lengths, T=T)
    preds = jax.block_until_ready(preds)

    P = P_SIDE * P_SIDE
    assert preds.shape == (B, T, V), preds.shape
    assert alphas.shape == (B, T, P), alphas.shape
    assert caps_sorted.shape == (B, L)
    assert sort_ind.shape == (B,)
    assert bool(jnp.all(jnp.isfinite(preds)))
    assert bool(jnp.all(jnp.isfinite(alphas)))
    # The longest (always-active) caption's attention weights sum to 1 each step.
    assert bool(jnp.allclose(jnp.sum(alphas[0], axis=-1), 1.0, atol=1e-3))
    print("KERNEL_OK")
</pallas_src>

<mosaic_0001>
module attributes {stable_mosaic.version = 11 : i64} {
  func.func @_precompute_kernel(%arg0: memref<4x16x256xbf16, #tpu.memory_space<vmem>>, %arg1: memref<32x128xbf16, #tpu.memory_space<vmem>>, %arg2: memref<256x128xbf16, #tpu.memory_space<vmem>>, %arg3: memref<1x128xf32, #tpu.memory_space<vmem>>, %arg4: memref<256x128xbf16, #tpu.memory_space<vmem>>, %arg5: memref<1x128xf32, #tpu.memory_space<vmem>>, %arg6: memref<256x128xbf16, #tpu.memory_space<vmem>>, %arg7: memref<1x128xf32, #tpu.memory_space<vmem>>, %arg8: memref<128x512xbf16, #tpu.memory_space<vmem>>, %arg9: memref<4x16x128xf32, #tpu.memory_space<vmem>>, %arg10: memref<4x128xf32, #tpu.memory_space<vmem>>, %arg11: memref<4x128xf32, #tpu.memory_space<vmem>>, %arg12: memref<32x512xf32, #tpu.memory_space<vmem>>) attributes {dimension_semantics = [], scalar_prefetch = 0 : i64, scratch_operands = 0 : i64, tpu.core_type = #tpu.core_type<tc>} {
    %c0 = arith.constant 0 : index
    %c0_0 = arith.constant 0 : index
    %c0_1 = arith.constant 0 : index
    %0 = vector.load %arg0[%c0, %c0_0, %c0_1] : memref<4x16x256xbf16, #tpu.memory_space<vmem>>, vector<4x16x256xbf16>
    %c0_2 = arith.constant 0 : index
    %c0_3 = arith.constant 0 : index
    %1 = vector.load %arg2[%c0_2, %c0_3] : memref<256x128xbf16, #tpu.memory_space<vmem>>, vector<256x128xbf16>
    "tpu.trace_start"() <{level = 10 : i32, message = "bpe,ea->bpa"}> : () -> ()
    %cst = arith.constant dense<0.000000e+00> : vector<4x16x128xf32>
    %2 = tpu.matmul %0, %1, %cst {dimension_numbers = #tpu.dot_dimension_numbers<[2], [0], [0, 1], [1], [0, 0, 0, 1, 1, 1], [], []>} : vector<4x16x256xbf16>, vector<256x128xbf16>, vector<4x16x128xf32> -> vector<4x16x128xf32>
    "tpu.trace_stop"() : () -> ()
    %c0_4 = arith.constant 0 : index
    %c0_5 = arith.constant 0 : index
    %3 = vector.load %arg3[%c0_4, %c0_5] : memref<1x128xf32, #tpu.memory_space<vmem>>, vector<1x128xf32>
    %4 = vector.shape_cast %3 : vector<1x128xf32> to vector<1x1x128xf32>
    %5 = vector.broadcast %4 : vector<1x1x128xf32> to vector<4x16x128xf32>
    %6 = arith.addf %2, %5 : vector<4x16x128xf32>
    %c0_6 = arith.constant 0 : index
    %c0_7 = arith.constant 0 : index
    %c0_8 = arith.constant 0 : index
    %7 = vector.load %arg9[%c0_6, %c0_7, %c0_8] : memref<4x16x128xf32, #tpu.memory_space<vmem>>, vector<4x16x128xf32>
    tpu.vector_store %arg9[%c0_6, %c0_7, %c0_8], %6 {strides = array<i32>} : memref<4x16x128xf32, #tpu.memory_space<vmem>>, vector<4x16x128xf32>,
    %8 = arith.extf %0 : vector<4x16x256xbf16> to vector<4x16x256xf32>
    %cst_9 = arith.constant dense<0.000000e+00> : vector<4x256xf32>
    %9 = vector.multi_reduction <add>, %8, %cst_9 [1] : vector<4x16x256xf32> to vector<4x256xf32>
    %cst_10 = arith.constant 1.600000e+01 : f32
    %10 = vector.broadcast %cst_10 : f32 to vector<4x256xf32>
    %11 = arith.divf %9, %10 : vector<4x256xf32>
    %12 = arith.truncf %11 : vector<4x256xf32> to vector<4x256xbf16>
    %c0_11 = arith.constant 0 : index
    %c0_12 = arith.constant 0 : index
    %13 = vector.load %arg4[%c0_11, %c0_12] : memref<256x128xbf16, #tpu.memory_space<vmem>>, vector<256x128xbf16>
    %cst_13 = arith.constant dense<0.000000e+00> : vector<4x128xf32>
    %14 = tpu.matmul %12, %13, %cst_13 {dimension_numbers = #tpu.dot_dimension_numbers<[1], [0], [0], [1], [0, 0, 1, 1], [], []>} : vector<4x256xbf16>, vector<256x128xbf16>, vector<4x128xf32> -> vector<4x128xf32>
    %c0_14 = arith.constant 0 : index
    %c0_15 = arith.constant 0 : index
    %15 = vector.load %arg5[%c0_14, %c0_15] : memref<1x128xf32, #tpu.memory_space<vmem>>, vector<1x128xf32>
    %16 = vector.broadcast %15 : vector<1x128xf32> to vector<4x128xf32>
    %17 = arith.addf %14, %16 : vector<4x128xf32>
    %c0_16 = arith.constant 0 : index
    %c0_17 = arith.constant 0 : index
    %18 = vector.load %arg10[%c0_16, %c0_17] : memref<4x128xf32, #tpu.memory_space<vmem>>, vector<4x128xf32>
    tpu.vector_store %arg10[%c0_16, %c0_17], %17 {strides = array<i32>} : memref<4x128xf32, #tpu.memory_space<vmem>>, vector<4x128xf32>,
    %c0_18 = arith.constant 0 : index
    %c0_19 = arith.constant 0 : index
    %19 = vector.load %arg6[%c0_18, %c0_19] : memref<256x128xbf16, #tpu.memory_space<vmem>>, vector<256x128xbf16>
    %cst_20 = arith.constant dense<0.000000e+00> : vector<4x128xf32>
    %20 = tpu.matmul %12, %19, %cst_20 {dimension_numbers = #tpu.dot_dimension_numbers<[1], [0], [0], [1], [0, 0, 1, 1], [], []>} : vector<4x256xbf16>, vector<256x128xbf16>, vector<4x128xf32> -> vector<4x128xf32>
    %c0_21 = arith.constant 0 : index
    %c0_22 = arith.constant 0 : index
    %21 = vector.load %arg7[%c0_21, %c0_22] : memref<1x128xf32, #tpu.memory_space<vmem>>, vector<1x128xf32>
    %22 = vector.broadcast %21 : vector<1x128xf32> to vector<4x128xf32>
    %23 = arith.addf %20, %22 : vector<4x128xf32>
    %c0_23 = arith.constant 0 : index
    %c0_24 = arith.constant 0 : index
    %24 = vector.load %arg11[%c0_23, %c0_24] : memref<4x128xf32, #tpu.memory_space<vmem>>, vector<4x128xf32>
    tpu.vector_store %arg11[%c0_23, %c0_24], %23 {strides = array<i32>} : memref<4x128xf32, #tpu.memory_space<vmem>>, vector<4x128xf32>,
    %c0_25 = arith.constant 0 : index
    %c0_26 = arith.constant 0 : index
    %25 = vector.load %arg1[%c0_25, %c0_26] : memref<32x128xbf16, #tpu.memory_space<vmem>>, vector<32x128xbf16>
    %c0_27 = arith.constant 0 : index
    %c0_28 = arith.constant 0 : index
    %26 = vector.load %arg8[%c0_27, %c0_28] : memref<128x512xbf16, #tpu.memory_space<vmem>>, vector<128x512xbf16>
    %cst_29 = arith.constant dense<0.000000e+00> : vector<32x512xf32>
    %27 = tpu.matmul %25, %26, %cst_29 {dimension_numbers = #tpu.dot_dimension_numbers<[1], [0], [0], [1], [0, 0, 1, 1], [], []>} : vector<32x128xbf16>, vector<128x512xbf16>, vector<32x512xf32> -> vector<32x512xf32>
    %c0_30 = arith.constant 0 : index
    %c0_31 = arith.constant 0 : index
    %28 = vector.load %arg12[%c0_30, %c0_31] : memref<32x512xf32, #tpu.memory_space<vmem>>, vector<32x512xf32>
    tpu.vector_store %arg12[%c0_30, %c0_31], %27 {strides = array<i32>} : memref<32x512xf32, #tpu.memory_space<vmem>>, vector<32x512xf32>,
    return
  }
}

module attributes {stable_mosaic.version = 11 : i64} {
  func.func @_decode_step_kernel(%arg0: i32, %arg1: memref<1x4x512xf32, #tpu.memory_space<vmem>>, %arg2: memref<4x16x256xbf16, #tpu.memory_space<vmem>>, %arg3: memref<4x16x128xf32, #tpu.memory_space<vmem>>, %arg4: memref<1x4x1xf32, #tpu.memory_space<vmem>>, %arg5: memref<4x128xf32, #tpu.memory_space<vmem>>, %arg6: memref<4x128xf32, #tpu.memory_space<vmem>>, %arg7: memref<128x896xbf16, #tpu.memory_space<vmem>>, %arg8: memref<1x896xf32, #tpu.memory_space<vmem>>, %arg9: memref<1x128xf32, #tpu.memory_space<vmem>>, %arg10: memref<256x512xbf16, #tpu.memory_space<vmem>>, %arg11: memref<128x512xbf16, #tpu.memory_space<vmem>>, %arg12: memref<1x512xf32, #tpu.memory_space<vmem>>, %arg13: memref<1x4x512xf32, #tpu.memory_space<vmem>>, %arg14: memref<1x4x16xf32, #tpu.memory_space<vmem>>, %arg15: memref<4x128xf32, #tpu.memory_space<vmem>>, %arg16: memref<4x128xf32, #tpu.memory_space<vmem>>) attributes {dimension_semantics = [#tpu.dimension_semantics<arbitrary>], iteration_bounds = array<i64: 8>, scalar_prefetch = 0 : i64, scratch_operands = 2 : i64, tpu.core_type = #tpu.core_type<tc>, window_params = [{transform_indices = @transform_0, window_bounds = array<i64: 1, 4, 512>}, {pipeline_mode = #tpu.pipeline_mode<synchronous>, transform_indices = @transform_1, window_bounds = array<i64: 4, 16, 256>}, {pipeline_mode = #tpu.pipeline_mode<synchronous>, transform_indices = @transform_2, window_bounds = array<i64: 4, 16, 128>}, {transform_indices = @transform_3, window_bounds = array<i64: 1, 4, 1>}, {pipeline_mode = #tpu.pipeline_mode<synchronous>, transform_indices = @transform_4, window_bounds = array<i64: 4, 128>}, {pipeline_mode = #tpu.pipeline_mode<synchronous>, transform_indices = @transform_5, window_bounds = array<i64: 4, 128>}, {pipeline_mode = #tpu.pipeline_mode<synchronous>, transform_indices = @transform_6, window_bounds = array<i64: 128, 896>}, {pipeline_mode = #tpu.pipeline_mode<synchronous>, transform_indices = @transform_7, window_bounds = array<i64: 1, 896>}, {pipeline_mode = #tpu.pipeline_mode<synchronous>, transform_indices = @transform_8, window_bounds = array<i64: 1, 128>}, {pipeline_mode = #tpu.pipeline_mode<synchronous>, transform_indices = @transform_9, window_bounds = array<i64: 256, 512>}, {pipeline_mode = #tpu.pipeline_mode<synchronous>, transform_indices = @transform_10, window_bounds = array<i64: 128, 512>}, {pipeline_mode = #tpu.pipeline_mode<synchronous>, transform_indices = @transform_11, window_bounds = array<i64: 1, 512>}, {transform_indices = @transform_12, window_bounds = array<i64: 1, 4, 512>}, {transform_indices = @transform_13, window_bounds = array<i64: 1, 4, 16>}]} {
    %c0_i32 = arith.constant 0 : i32
    %0 = arith.cmpi eq, %arg0, %c0_i32 : i32
    %1 = arith.extui %0 : i1 to i32
    %c0_i32_0 = arith.constant 0 : i32
    %2 = arith.cmpi ne, %1, %c0_i32_0 : i32
    scf.if %2 {
      %c0_51 = arith.constant 0 : index
      %c0_52 = arith.constant 0 : index
      %110 = vector.load %arg5[%c0_51, %c0_52] : memref<4x128xf32, #tpu.memory_space<vmem>>, vector<4x128xf32>
      %c0_53 = arith.constant 0 : index
      %c0_54 = arith.constant 0 : index
      %111 = vector.load %arg15[%c0_53, %c0_54] : memref<4x128xf32, #tpu.memory_space<vmem>>, vector<4x128xf32>
      tpu.vector_store %arg15[%c0_53, %c0_54], %110 {strides = array<i32>} : memref<4x128xf32, #tpu.memory_space<vmem>>, vector<4x128xf32>,
      %c0_55 = arith.constant 0 : index
      %c0_56 = arith.constant 0 : index
      %112 = vector.load %arg6[%c0_55, %c0_56] : memref<4x128xf32, #tpu.memory_space<vmem>>, vector<4x128xf32>
      %c0_57 = arith.constant 0 : index
      %c0_58 = arith.constant 0 : index
      %113 = vector.load %arg16[%c0_57, %c0_58] : memref<4x128xf32, #tpu.memory_space<vmem>>, vector<4x128xf32>
      tpu.vector_store %arg16[%c0_57, %c0_58], %112 {strides = array<i32>} : memref<4x128xf32, #tpu.memory_space<vmem>>, vector<4x128xf32>,
    } else {
    }
    %c0 = arith.constant 0 : index
    %c0_1 = arith.constant 0 : index
    %3 = vector.load %arg15[%c0, %c0_1] : memref<4x128xf32, #tpu.memory_space<vmem>>, vector<4x128xf32>
    %c0_2 = arith.constant 0 : index
    %c0_3 = arith.constant 0 : index
    %4 = vector.load %arg16[%c0_2, %c0_3] : memref<4x128xf32, #tpu.memory_space<vmem>>, vector<4x128xf32>
    %5 = arith.truncf %3 : vector<4x128xf32> to vector<4x128xbf16>
    %c0_4 = arith.constant 0 : index
    %c0_5 = arith.constant 0 : index
    %6 = vector.load %arg7[%c0_4, %c0_5] : memref<128x896xbf16, #tpu.memory_space<vmem>>, vector<128x896xbf16>
    %cst = arith.constant dense<0.000000e+00> : vector<4x896xf32>
    %7 = tpu.matmul %5, %6, %cst {dimension_numbers = #tpu.dot_dimension_numbers<[1], [0], [0], [1], [0, 0, 1, 1], [], []>} : vector<4x128xbf16>, vector<128x896xbf16>, vector<4x896xf32> -> vector<4x896xf32>
    %c0_6 = arith.constant 0 : index
    %c0_7 = arith.constant 0 : index
    %8 = vector.load %arg8[%c0_6, %c0_7] : memref<1x896xf32, #tpu.memory_space<vmem>>, vector<1x896xf32>
    %9 = vector.broadcast %8 : vector<1x896xf32> to vector<4x896xf32>
    %10 = arith.addf %7, %9 : vector<4x896xf32>
    %11 = vector.extract_strided_slice %10 {offsets = [0, 0], sizes = [4, 128], strides = [1, 1]} : vector<4x896xf32> to vector<4x128xf32>
    %12 = vector.extract_strided_slice %10 {offsets = [0, 128], sizes = [4, 256], strides = [1, 1]} : vector<4x896xf32> to vector<4x256xf32>
    %13 = arith.negf %12 : vector<4x256xf32>
    %14 = math.exp %13 : vector<4x256xf32>
    %cst_8 = arith.constant 1.000000e+00 : f32
    %15 = vector.broadcast %cst_8 : f32 to vector<4x256xf32>
    %16 = arith.addf %15, %14 : vector<4x256xf32>
    %17 = arith.divf %15, %16 : vector<4x256xf32>
    %18 = vector.extract_strided_slice %10 {offsets = [0, 384], sizes = [4, 512], strides = [1, 1]} : vector<4x896xf32> to vector<4x512xf32>
    %c0_9 = arith.constant 0 : index
    %c0_10 = arith.constant 0 : index
    %c0_11 = arith.constant 0 : index
    %19 = vector.load %arg3[%c0_9, %c0_10, %c0_11] : memref<4x16x128xf32, #tpu.memory_space<vmem>>, vector<4x16x128xf32>
    %20 = vector.shape_cast %11 : vector<4x128xf32> to vector<4x1x128xf32>
    %21 = vector.broadcast %20 : vector<4x1x128xf32> to vector<4x16x128xf32>
    %22 = arith.addf %19, %21 : vector<4x16x128xf32>
    %cst_12 = arith.constant 0.000000e+00 : f32
    %23 = vector.broadcast %cst_12 : f32 to vector<4x16x128xf32>
    %24 = arith.maximumf %22, %23 : vector<4x16x128xf32>
    %c0_13 = arith.constant 0 : index
    %c0_14 = arith.constant 0 : index
    %25 = vector.load %arg9[%c0_13, %c0_14] : memref<1x128xf32, #tpu.memory_space<vmem>>, vector<1x128xf32>
    %26 = vector.shape_cast %25 : vector<1x128xf32> to vector<1x1x128xf32>
    %27 = vector.broadcast %26 : vector<1x1x128xf32> to vector<4x16x128xf32>
    %28 = arith.mulf %24, %27 : vector<4x16x128xf32>
    %cst_15 = arith.constant dense<0.000000e+00> : vector<4x16xf32>
    %29 = vector.multi_reduction <add>, %28, %cst_15 [2] : vector<4x16x128xf32> to vector<4x16xf32>
    %cst_16 = arith.constant dense<0xFF800000> : vector<4xf32>
    %30 = vector.multi_reduction <maximumf>, %29, %cst_16 [1] : vector<4x16xf32> to vector<4xf32>
    %31 = vector.shape_cast %30 : vector<4xf32> to vector<4x1xf32>
    %32 = vector.broadcast %31 : vector<4x1xf32> to vector<4x16xf32>
    %33 = arith.subf %29, %32 : vector<4x16xf32>
    %34 = math.exp %33 : vector<4x16xf32>
    %cst_17 = arith.constant dense<0.000000e+00> : vector<4xf32>
    %35 = vector.multi_reduction <add>, %34, %cst_17 [1] : vector<4x16xf32> to vector<4xf32>
    %36 = vector.shape_cast %35 : vector<4xf32> to vector<4x1xf32>
    %37 = vector.broadcast %36 : vector<4x1xf32> to vector<4x16xf32>
    %38 = arith.divf %34, %37 : vector<4x16xf32>
    %c0_18 = arith.constant 0 : index
    %c0_19 = arith.constant 0 : index
    %c0_20 = arith.constant 0 : index
    %39 = vector.load %arg2[%c0_18, %c0_19, %c0_20] : memref<4x16x256xbf16, #tpu.memory_space<vmem>>, vector<4x16x256xbf16>
    %40 = arith.extf %39 : vector<4x16x256xbf16> to vector<4x16x256xf32>
    %41 = vector.shape_cast %38 : vector<4x16xf32> to vector<4x16x1xf32>
    %42 = vector.broadcast %41 : vector<4x16x1xf32> to vector<4x16x256xf32>
    %43 = arith.mulf %40, %42 : vector<4x16x256xf32>
    %cst_21 = arith.constant dense<0.000000e+00> : vector<4x256xf32>
    %44 = vector.multi_reduction <add>, %43, %cst_21 [1] : vector<4x16x256xf32> to vector<4x256xf32>
    %45 = arith.mulf %17, %44 : vector<4x256xf32>
    %c0_22 = arith.constant 0 : index
    %c0_23 = arith.constant 0 : index
    %c0_24 = arith.constant 0 : index
    %46 = vector.load %arg1[%c0_22, %c0_23, %c0_24] : memref<1x4x512xf32, #tpu.memory_space<vmem>>, vector<1x4x512xf32>
    %47 = vector.shape_cast %46 : vector<1x4x512xf32> to vector<4x512xf32>
    %48 = arith.addf %47, %18 : vector<4x512xf32>
    %49 = arith.truncf %45 : vector<4x256xf32> to vector<4x256xbf16>
    %c0_25 = arith.constant 0 : index
    %c0_26 = arith.constant 0 : index
    %50 = vector.load %arg10[%c0_25, %c0_26] : memref<256x512xbf16, #tpu.memory_space<vmem>>, vector<256x512xbf16>
    %cst_27 = arith.constant dense<0.000000e+00> : vector<4x512xf32>
    %51 = tpu.matmul %49, %50, %cst_27 {dimension_numbers = #tpu.dot_dimension_numbers<[1], [0], [0], [1], [0, 0, 1, 1], [], []>} : vector<4x256xbf16>, vector<256x512xbf16>, vector<4x512xf32> -> vector<4x512xf32>
    %52 = arith.addf %48, %51 : vector<4x512xf32>
    %53 = vector.extract_strided_slice %52 {offsets = [0, 0], sizes = [4, 128], strides = [1, 1]} : vector<4x512xf32> to vector<4x128xf32>
    %54 = arith.negf %53 : vector<4x128xf32>
    %55 = math.exp %54 : vector<4x128xf32>
    %cst_28 = arith.constant 1.000000e+00 : f32
    %56 = vector.broadcast %cst_28 : f32 to vector<4x128xf32>
    %57 = arith.addf %56, %55 : vector<4x128xf32>
    %58 = arith.divf %56, %57 : vector<4x128xf32>
    %59 = vector.extract_strided_slice %52 {offsets = [0, 128], sizes = [4, 128], strides = [1, 1]} : vector<4x512xf32> to vector<4x128xf32>
    %60 = arith.negf %59 : vector<4x128xf32>
    %61 = math.exp %60 : vector<4x128xf32>
    %cst_29 = arith.constant 1.000000e+00 : f32
    %62 = vector.broadcast %cst_29 : f32 to vector<4x128xf32>
    %63 = arith.addf %62, %61 : vector<4x128xf32>
    %64 = arith.divf %62, %63 : vector<4x128xf32>
    %65 = vector.extract_strided_slice %52 {offsets = [0, 256], sizes = [4, 128], strides = [1, 1]} : vector<4x512xf32> to vector<4x128xf32>
    %66 = math.tanh %65 : vector<4x128xf32>
    %67 = vector.extract_strided_slice %52 {offsets = [0, 384], sizes = [4, 128], strides = [1, 1]} : vector<4x512xf32> to vector<4x128xf32>
    %68 = arith.negf %67 : vector<4x128xf32>
    %69 = math.exp %68 : vector<4x128xf32>
    %cst_30 = arith.constant 1.000000e+00 : f32
    %70 = vector.broadcast %cst_30 : f32 to vector<4x128xf32>
    %71 = arith.addf %70, %69 : vector<4x128xf32>
    %72 = arith.divf %70, %71 : vector<4x128xf32>
    %73 = arith.mulf %64, %4 : vector<4x128xf32>
    %74 = arith.mulf %58, %66 : vector<4x128xf32>
    %75 = arith.addf %73, %74 : vector<4x128xf32>
    %76 = math.tanh %75 : vector<4x128xf32>
    %77 = arith.mulf %72, %76 : vector<4x128xf32>
    %78 = arith.truncf %77 : vector<4x128xf32> to vector<4x128xbf16>
    %c0_31 = arith.constant 0 : index
    %c0_32 = arith.constant 0 : index
    %79 = vector.load %arg11[%c0_31, %c0_32] : memref<128x512xbf16, #tpu.memory_space<vmem>>, vector<128x512xbf16>
    %cst_33 = arith.constant dense<0.000000e+00> : vector<4x512xf32>
    %80 = tpu.matmul %78, %79, %cst_33 {dimension_numbers = #tpu.dot_dimension_numbers<[1], [0], [0], [1], [0, 0, 1, 1], [], []>} : vector<4x128xbf16>, vector<128x512xbf16>, vector<4x512xf32> -> vector<4x512xf32>
    %c0_34 = arith.constant 0 : index
    %c0_35 = arith.constant 0 : index
    %81 = vector.load %arg12[%c0_34, %c0_35] : memref<1x512xf32, #tpu.memory_space<vmem>>, vector<1x512xf32>
    %82 = vector.broadcast %81 : vector<1x512xf32> to vector<4x512xf32>
    %83 = arith.addf %80, %82 : vector<4x512xf32>
    %c0_36 = arith.constant 0 : index
    %c0_37 = arith.constant 0 : index
    %c0_38 = arith.constant 0 : index
    %84 = vector.load %arg4[%c0_36, %c0_37, %c0_38] : memref<1x4x1xf32, #tpu.memory_space<vmem>>, vector<1x4x1xf32>
    %85 = vector.shape_cast %84 : vector<1x4x1xf32> to vector<4x1xf32>
    %86 = vector.broadcast %85 : vector<4x1xf32> to vector<4x512xf32>
    %87 = arith.mulf %83, %86 : vector<4x512xf32>
    %88 = vector.shape_cast %87 : vector<4x512xf32> to vector<1x4x512xf32>
    %c0_39 = arith.constant 0 : index
    %c0_40 = arith.constant 0 : index
    %c0_41 = arith.constant 0 : index
    %89 = vector.load %arg13[%c0_39, %c0_40, %c0_41] : memref<1x4x512xf32, #tpu.memory_space<vmem>>, vector<1x4x512xf32>
    tpu.vector_store %arg13[%c0_39, %c0_40, %c0_41], %88 {strides = array<i32>} : memref<1x4x512xf32, #tpu.memory_space<vmem>>, vector<1x4x512xf32>,
    %90 = vector.broadcast %85 : vector<4x1xf32> to vector<4x16xf32>
    %91 = arith.mulf %38, %90 : vector<4x16xf32>
    %92 = vector.shape_cast %91 : vector<4x16xf32> to vector<1x4x16xf32>
    %c0_42 = arith.constant 0 : index
    %c0_43 = arith.constant 0 : index
    %c0_44 = arith.constant 0 : index
    %93 = vector.load %arg14[%c0_42, %c0_43, %c0_44] : memref<1x4x16xf32, #tpu.memory_space<vmem>>, vector<1x4x16xf32>
    tpu.vector_store %arg14[%c0_42, %c0_43, %c0_44], %92 {strides = array<i32>} : memref<1x4x16xf32, #tpu.memory_space<vmem>>, vector<1x4x16xf32>,
    %94 = vector.broadcast %85 : vector<4x1xf32> to vector<4x128xf32>
    %95 = arith.mulf %94, %77 : vector<4x128xf32>
    %cst_45 = arith.constant 1.000000e+00 : f32
    %96 = vector.broadcast %cst_45 : f32 to vector<4x1xf32>
    %97 = arith.subf %96, %85 : vector<4x1xf32>
    %98 = vector.broadcast %97 : vector<4x1xf32> to vector<4x128xf32>
    %99 = arith.mulf %98, %3 : vector<4x128xf32>
    %100 = arith.addf %95, %99 : vector<4x128xf32>
    %c0_46 = arith.constant 0 : index
    %c0_47 = arith.constant 0 : index
    %101 = vector.load %arg15[%c0_46, %c0_47] : memref<4x128xf32, #tpu.memory_space<vmem>>, vector<4x128xf32>
    tpu.vector_store %arg15[%c0_46, %c0_47], %100 {strides = array<i32>} : memref<4x128xf32, #tpu.memory_space<vmem>>, vector<4x128xf32>,
    %102 = vector.broadcast %85 : vector<4x1xf32> to vector<4x128xf32>
    %103 = arith.mulf %102, %75 : vector<4x128xf32>
    %cst_48 = arith.constant 1.000000e+00 : f32
    %104 = vector.broadcast %cst_48 : f32 to vector<4x1xf32>
    %105 = arith.subf %104, %85 : vector<4x1xf32>
    %106 = vector.broadcast %105 : vector<4x1xf32> to vector<4x128xf32>
    %107 = arith.mulf %106, %4 : vector<4x128xf32>
    %108 = arith.addf %103, %107 : vector<4x128xf32>
    %c0_49 = arith.constant 0 : index
    %c0_50 = arith.constant 0 : index
    %109 = vector.load %arg16[%c0_49, %c0_50] : memref<4x128xf32, #tpu.memory_space<vmem>>, vector<4x128xf32>
    tpu.vector_store %arg16[%c0_49, %c0_50], %108 {strides = array<i32>} : memref<4x128xf32, #tpu.memory_space<vmem>>, vector<4x128xf32>,
    return
  }
  func.func @transform_0(%arg0: i32) -> (i32, i32, i32) {
    %c0_i32 = arith.constant 0 : i32
    %c0_i32_0 = arith.constant 0 : i32
    %c0_i32_1 = arith.constant 0 : i32
    return %arg0, %c0_i32, %c0_i32_0 : i32, i32, i32
  }
  func.func @transform_1(%arg0: i32) -> (i32, i32, i32) {
    %c0_i32 = arith.constant 0 : i32
    %c0_i32_0 = arith.constant 0 : i32
    %c0_i32_1 = arith.constant 0 : i32
    %c0_i32_2 = arith.constant 0 : i32
    return %c0_i32, %c0_i32_0, %c0_i32_1 : i32, i32, i32
  }
  func.func @transform_2(%arg0: i32) -> (i32, i32, i32) {
    %c0_i32 = arith.constant 0 : i32
    %c0_i32_0 = arith.constant 0 : i32
    %c0_i32_1 = arith.constant 0 : i32
    %c0_i32_2 = arith.constant 0 : i32
    return %c0_i32, %c0_i32_0, %c0_i32_1 : i32, i32, i32
  }
  func.func @transform_3(%arg0: i32) -> (i32, i32, i32) {
    %c0_i32 = arith.constant 0 : i32
    %c0_i32_0 = arith.constant 0 : i32
    %c0_i32_1 = arith.constant 0 : i32
    return %arg0, %c0_i32, %c0_i32_0 : i32, i32, i32
  }
  func.func @transform_4(%arg0: i32) -> (i32, i32) {
    %c0_i32 = arith.constant 0 : i32
    %c0_i32_0 = arith.constant 0 : i32
    %c0_i32_1 = arith.constant 0 : i32
    return %c0_i32, %c0_i32_0 : i32, i32
  }
  func.func @transform_5(%arg0: i32) -> (i32, i32) {
    %c0_i32 = arith.constant 0 : i32
    %c0_i32_0 = arith.constant 0 : i32
    %c0_i32_1 = arith.constant 0 : i32
    return %c0_i32, %c0_i32_0 : i32, i32
  }
  func.func @transform_6(%arg0: i32) -> (i32, i32) {
    %c0_i32 = arith.constant 0 : i32
    %c0_i32_0 = arith.constant 0 : i32
    %c0_i32_1 = arith.constant 0 : i32
    return %c0_i32, %c0_i32_0 : i32, i32
  }
  func.func @transform_7(%arg0: i32) -> (i32, i32) {
    %c0_i32 = arith.constant 0 : i32
    %c0_i32_0 = arith.constant 0 : i32
    %c0_i32_1 = arith.constant 0 : i32
    return %c0_i32, %c0_i32_0 : i32, i32
  }
  func.func @transform_8(%arg0: i32) -> (i32, i32) {
    %c0_i32 = arith.constant 0 : i32
    %c0_i32_0 = arith.constant 0 : i32
    %c0_i32_1 = arith.constant 0 : i32
    return %c0_i32, %c0_i32_0 : i32, i32
  }
  func.func @transform_9(%arg0: i32) -> (i32, i32) {
    %c0_i32 = arith.constant 0 : i32
    %c0_i32_0 = arith.constant 0 : i32
    %c0_i32_1 = arith.constant 0 : i32
    return %c0_i32, %c0_i32_0 : i32, i32
  }
  func.func @transform_10(%arg0: i32) -> (i32, i32) {
    %c0_i32 = arith.constant 0 : i32
    %c0_i32_0 = arith.constant 0 : i32
    %c0_i32_1 = arith.constant 0 : i32
    return %c0_i32, %c0_i32_0 : i32, i32
  }
  func.func @transform_11(%arg0: i32) -> (i32, i32) {
    %c0_i32 = arith.constant 0 : i32
    %c0_i32_0 = arith.constant 0 : i32
    %c0_i32_1 = arith.constant 0 : i32
    return %c0_i32, %c0_i32_0 : i32, i32
  }
  func.func @transform_12(%arg0: i32) -> (i32, i32, i32) {
    %c0_i32 = arith.constant 0 : i32
    %c0_i32_0 = arith.constant 0 : i32
    %c0_i32_1 = arith.constant 0 : i32
    return %arg0, %c0_i32, %c0_i32_0 : i32, i32, i32
  }
  func.func @transform_13(%arg0: i32) -> (i32, i32, i32) {
    %c0_i32 = arith.constant 0 : i32
    %c0_i32_0 = arith.constant 0 : i32
    %c0_i32_1 = arith.constant 0 : i32
    return %arg0, %c0_i32, %c0_i32_0 : i32, i32, i32
  }
}

</mosaic_0001>

<llo_original>
// kernel: decoder_forward.2
$region0: #{decoder_forward.2}
  #allocation0 [shape = 'u32[]', space=smem, size = 0x4, offset = 0x4, fixed_abs, tag = 'smem constant byte address 0x4 - core index']
  #allocation1 [shape = 'u32[144,128]{1,0:T(1,128)}', space=vmem, size = 0x12000, scoped, tag = 'internal scratch']
  %s0 = inlined_call_operand.vmem [shape: bf16[4,16,256], index: 0, kind: input, shape index: {}]
  %s1 = inlined_call_operand.vmem [shape: bf16[32,128], index: 1, kind: input, shape index: {}]
  %s2 = inlined_call_operand.vmem [shape: bf16[256,128], index: 2, kind: input, shape index: {}]
  %s3 = inlined_call_operand.vmem [shape: f32[1,128], index: 3, kind: input, shape index: {}]
  %s4 = inlined_call_operand.vmem [shape: bf16[256,128], index: 4, kind: input, shape index: {}]
  %s5 = inlined_call_operand.vmem [shape: f32[1,128], index: 5, kind: input, shape index: {}]
  %s6 = inlined_call_operand.vmem [shape: bf16[256,128], index: 6, kind: input, shape index: {}]
  %s7 = inlined_call_operand.vmem [shape: f32[1,128], index: 7, kind: input, shape index: {}]
  %s8 = inlined_call_operand.vmem [shape: bf16[128,512], index: 8, kind: input, shape index: {}]
  %s9 = inlined_call_operand.vmem [shape: f32[4,16,128], index: 9, kind: output, shape index: {0}]
  %s10 = inlined_call_operand.vmem [shape: f32[4,128], index: 10, kind: output, shape index: {1}]
  %s11 = inlined_call_operand.vmem [shape: f32[4,128], index: 11, kind: output, shape index: {2}]
  %s12 = inlined_call_operand.vmem [shape: f32[32,512], index: 12, kind: output, shape index: {3}]
  %13 = xla_tuple %s9, %s10, %s11, %s12
  %s14 = sld [smem:[#allocation0]]
  $region70: #{decoder_forward.2} parent=0
    _
  %s16 = ssub.s32 1, %s14
  %s17 = scalar_select 0, %s16, %s14
  // Predicated region
  $region2: #{decoder_forward.2} parent=0 // pred_check
    _
  $region3: #{decoder_forward.2} parent=0 // pred_check_branch
    %19 = sbr.rel (0) target = $region5
  $region4: #{decoder_forward.2} parent=0 // pred_region
    _
  $region5: #{decoder_forward.2} parent=0 // pred_fallthru
    _
  // Predicated region
  $region6: #{decoder_forward.2} parent=0 // pred_check
    _
  $region7: #{decoder_forward.2} parent=0 // pred_check_branch
    %21 = sbr.rel (0) target = $region9
  $region8: #{decoder_forward.2} parent=0 // pred_region
    _
  $region9: #{decoder_forward.2} parent=0 // pred_fallthru
    _
  // Predicated region
  $region10: #{decoder_forward.2} parent=0 // pred_check
    _
  $region11: #{decoder_forward.2} parent=0 // pred_check_branch
    %23 = sbr.rel (0) target = $region13
  $region12: #{decoder_forward.2} parent=0 // pred_region
    _
  $region13: #{decoder_forward.2} parent=0 // pred_fallthru
    _
  // Predicated region
  $region14: #{decoder_forward.2} parent=0 // pred_check
    _
  $region15: #{decoder_forward.2} parent=0 // pred_check_branch
    %25 = sbr.rel (0) target = $region17
  $region16: #{decoder_forward.2} parent=0 // pred_region
    _
  $region17: #{decoder_forward.2} parent=0 // pred_fallthru
    _
  // Predicated region
  $region18: #{decoder_forward.2} parent=0 // pred_check
    _
  $region19: #{decoder_forward.2} parent=0 // pred_check_branch
    %27 = sbr.rel (0) target = $region21
  $region20: #{decoder_forward.2} parent=0 // pred_region
    _
  $region21: #{decoder_forward.2} parent=0 // pred_fallthru
    _
  // Predicated region
  $region22: #{decoder_forward.2} parent=0 // pred_check
    _
  $region23: #{decoder_forward.2} parent=0 // pred_check_branch
    %29 = sbr.rel (0) target = $region25
  $region24: #{decoder_forward.2} parent=0 // pred_region
    _
  $region25: #{decoder_forward.2} parent=0 // pred_fallthru
    _
  // Predicated region
  $region26: #{decoder_forward.2} parent=0 // pred_check
    _
  $region27: #{decoder_forward.2} parent=0 // pred_check_branch
    %31 = sbr.rel (0) target = $region29
  $region28: #{decoder_forward.2} parent=0 // pred_region
    _
  $region29: #{decoder_forward.2} parent=0 // pred_fallthru
    _
  // Predicated region
  $region30: #{decoder_forward.2} parent=0 // pred_check
    _
  $region31: #{decoder_forward.2} parent=0 // pred_check_branch
    %33 = sbr.rel (0) target = $region33
  $region32: #{decoder_forward.2} parent=0 // pred_region
    _
  $region33: #{decoder_forward.2} parent=0 // pred_fallthru
    _
  // Predicated region
  $region34: #{decoder_forward.2} parent=0 // pred_check
    _
  $region35: #{decoder_forward.2} parent=0 // pred_check_branch
    %35 = sbr.rel (0) target = $region37
  $region36: #{decoder_forward.2} parent=0 // pred_region
    _
  $region37: #{decoder_forward.2} parent=0 // pred_fallthru
    _
  %v37 = vld [vmem:[%s0] sm:$0xff]
  %v38 = vld [vmem:[%s0 + $0x8] sm:$0xff]
  %v39 = vld [vmem:[%s0 + $0x10] sm:$0xff]
  %v40 = vld [vmem:[%s0 + $0x18] sm:$0xff]
  %v41 = vld [vmem:[%s0 + $0x20] sm:$0xff]
  %v42 = vld [vmem:[%s0 + $0x28] sm:$0xff]
  %v43 = vld [vmem:[%s0 + $0x30] sm:$0xff]
  %v44 = vld [vmem:[%s0 + $0x38] sm:$0xff]
  %v45 = vld [vmem:[%s2] sm:$0xf]
  %v46 = vld [vmem:[%s2 + $0x4] sm:$0xf]
  %v47 = vld [vmem:[%s2 + $0x8] sm:$0xf]
  %v48 = vld [vmem:[%s2 + $0xc] sm:$0xf]
  %v49 = vld [vmem:[%s2 + $0x10] sm:$0xf]
  %v50 = vld [vmem:[%s2 + $0x14] sm:$0xf]
  %v51 = vld [vmem:[%s2 + $0x18] sm:$0xf]
  %v52 = vld [vmem:[%s2 + $0x1c] sm:$0xf]
  %v53 = vld [vmem:[%s2 + $0x20] sm:$0xf]
  %v54 = vld [vmem:[%s2 + $0x24] sm:$0xf]
  %v55 = vld [vmem:[%s2 + $0x28] sm:$0xf]
  %v56 = vld [vmem:[%s2 + $0x2c] sm:$0xf]
  %v57 = vld [vmem:[%s2 + $0x30] sm:$0xf]
  %v58 = vld [vmem:[%s2 + $0x34] sm:$0xf]
  %v59 = vld [vmem:[%s2 + $0x38] sm:$0xf]
  %v60 = vld [vmem:[%s2 + $0x3c] sm:$0xf]
  %v61 = vld [vmem:[%s2 + $0x40] sm:$0xf]
  %v62 = vld [vmem:[%s2 + $0x44] sm:$0xf]
  %v63 = vld [vmem:[%s2 + $0x48] sm:$0xf]
  %v64 = vld [vmem:[%s2 + $0x4c] sm:$0xf]
  %v65 = vld [vmem:[%s2 + $0x50] sm:$0xf]
  %v66 = vld [vmem:[%s2 + $0x54] sm:$0xf]
  %v67 = vld [vmem:[%s2 + $0x58] sm:$0xf]
  %v68 = vld [vmem:[%s2 + $0x5c] sm:$0xf]
  %v69 = vld [vmem:[%s2 + $0x60] sm:$0xf]
  %v70 = vld [vmem:[%s2 + $0x64] sm:$0xf]
  %v71 = vld [vmem:[%s2 + $0x68] sm:$0xf]
  %v72 = vld [vmem:[%s2 + $0x6c] sm:$0xf]
  %v73 = vld [vmem:[%s2 + $0x70] sm:$0xf]
  %v74 = vld [vmem:[%s2 + $0x74] sm:$0xf]
  %v75 = vld [vmem:[%s2 + $0x78] sm:$0xf]
  %v76 = vld [vmem:[%s2 + $0x7c] sm:$0xf]
  %v77 = vld [vmem:[%s3] sm:$0x1]
  %v79 = vlaneseq
  %v80 = vshrl.u32 %v79, 7
  %v81 = vsub.s32 0, %v80
  %v82 = vrot.slane %v77, %v81
  %v92 = vunpack.c.l.b16 %v37
  %v93 = vunpack.c.h.b16 %v37
  %v94 = vunpack.c.l.b16 %v38
  %v95 = vunpack.c.h.b16 %v38
  %v96 = vunpack.c.l.b16 %v39
  %v97 = vunpack.c.h.b16 %v39
  %v98 = vunpack.c.l.b16 %v40
  %v99 = vunpack.c.h.b16 %v40
  %v100 = vunpack.c.l.b16 %v41
  %v101 = vunpack.c.h.b16 %v41
  %v102 = vunpack.c.l.b16 %v42
  %v103 = vunpack.c.h.b16 %v42
  %v104 = vunpack.c.l.b16 %v43
  %v105 = vunpack.c.h.b16 %v43
  %v106 = vunpack.c.l.b16 %v44
  %v107 = vunpack.c.h.b16 %v44
  %v108 = vpack.c.b16 %v94, %v92
  %v109 = vpack.c.b16 %v95, %v93
  %v110 = vpack.c.b16 %v98, %v96
  %v111 = vpack.c.b16 %v99, %v97
  %v112 = vpack.c.b16 %v102, %v100
  %v113 = vpack.c.b16 %v103, %v101
  %v114 = vpack.c.b16 %v106, %v104
  %v115 = vpack.c.b16 %v107, %v105
  %v156 = vunpack.c.l.b16 %v45
  %v157 = vunpack.c.l.b16 %v46
  %v158 = vunpack.c.l.b16 %v47
  %v159 = vunpack.c.l.b16 %v48
  %v160 = vunpack.c.l.b16 %v49
  %v161 = vunpack.c.l.b16 %v50
  %v162 = vunpack.c.l.b16 %v51
  %v163 = vunpack.c.l.b16 %v52
  %v164 = vunpack.c.l.b16 %v53
  %v165 = vunpack.c.l.b16 %v54
  %v166 = vunpack.c.l.b16 %v55
  %v167 = vunpack.c.l.b16 %v56
  %v168 = vunpack.c.l.b16 %v57
  %v169 = vunpack.c.l.b16 %v58
  %v170 = vunpack.c.l.b16 %v59
  %v171 = vunpack.c.l.b16 %v60
  %v172 = vunpack.c.l.b16 %v61
  %v173 = vunpack.c.l.b16 %v62
  %v174 = vunpack.c.l.b16 %v63
  %v175 = vunpack.c.l.b16 %v64
  %v176 = vunpack.c.l.b16 %v65
  %v177 = vunpack.c.l.b16 %v66
  %v178 = vunpack.c.l.b16 %v67
  %v179 = vunpack.c.l.b16 %v68
  %v180 = vunpack.c.l.b16 %v69
  %v181 = vunpack.c.l.b16 %v70
  %v182 = vunpack.c.l.b16 %v71
  %v183 = vunpack.c.l.b16 %v72
  %v184 = vunpack.c.l.b16 %v73
  %v185 = vunpack.c.l.b16 %v74
  %v186 = vunpack.c.l.b16 %v75
  %v187 = vunpack.c.l.b16 %v76
  %v188 = vpack.c.b16 %v157, %v156
  %v189 = vpack.c.b16 %v159, %v158
  %v190 = vpack.c.b16 %v161, %v160
  %v191 = vpack.c.b16 %v163, %v162
  %v192 = vpack.c.b16 %v165, %v164
  %v193 = vpack.c.b16 %v167, %v166
  %v194 = vpack.c.b16 %v169, %v168
  %v195 = vpack.c.b16 %v171, %v170
  %v196 = vpack.c.b16 %v173, %v172
  %v197 = vpack.c.b16 %v175, %v174
  %v198 = vpack.c.b16 %v177, %v176
  %v199 = vpack.c.b16 %v179, %v178
  %v200 = vpack.c.b16 %v181, %v180
  %v201 = vpack.c.b16 %v183, %v182
  %v202 = vpack.c.b16 %v185, %v184
  %v203 = vpack.c.b16 %v187, %v186
  %220 = vmatprep.subr.bf16.mxu0 0
  %221 = vmatpush1.bf16.msra.mxu0 %v188
  %222 = vmatprep.subr.bf16.mxu0 0
  %223 = vmatpush1.bf16.msra.mxu0 %v189
  %224 = vmatprep.subr.bf16.mxu0 0
  %225 = vmatpush1.bf16.msra.mxu0 %v190
  %226 = vmatprep.subr.bf16.mxu0 0
  %227 = vmatpush1.bf16.msra.mxu0 %v191
  %228 = vmatprep.subr.bf16.mxu0 0
  %229 = vmatpush1.bf16.msra.mxu0 %v192
  %230 = vmatprep.subr.bf16.mxu0 0
  %231 = vmatpush1.bf16.msra.mxu0 %v193
  %232 = vmatprep.subr.bf16.mxu0 0
  %233 = vmatpush1.bf16.msra.mxu0 %v194
  %234 = vmatprep.subr.bf16.mxu0 0
  %235 = vmatpush1.bf16.msra.mxu0 %v195
  %236 = vmatprep.subr.bf16.mxu0 0
  %237 = vmatpush1.bf16.msra.mxu0 %v196
  %238 = vmatprep.subr.bf16.mxu0 0
  %239 = vmatpush1.bf16.msra.mxu0 %v197
  %240 = vmatprep.subr.bf16.mxu0 0
  %241 = vmatpush1.bf16.msra.mxu0 %v198
  %242 = vmatprep.subr.bf16.mxu0 0
  %243 = vmatpush1.bf16.msra.mxu0 %v199
  %244 = vmatprep.subr.bf16.mxu0 0
  %245 = vmatpush1.bf16.msra.mxu0 %v200
  %246 = vmatprep.subr.bf16.mxu0 0
  %247 = vmatpush1.bf16.msra.mxu0 %v201
  %248 = vmatprep.subr.bf16.mxu0 0
  %249 = vmatpush1.bf16.msra.mxu0 %v202
  %250 = vmatprep.subr.bf16.mxu0 0
  %251 = vmatpush1.bf16.msra.mxu0 %v203
  %252 = vmatprep.mubr.bf16.mxu0 %v109
  %253 = vmatmul.mubr.bf16.gmra.mrb[0].mxu0 %v108
  %v254 = vpop.f32.mrb[0].mxu0
  %v255 = vadd.f32 %v82, %v254
  %v256 = vpop.f32.mrb[0].mxu0
  %v257 = vpop.f32.mrb[0].mxu0
  %v258 = vadd.f32 %v82, %v257
  %v259 = vpop.f32.mrb[0].mxu0
  %260 = vmatprep.mubr.bf16.mxu0 %v111
  %261 = vmatmul.mubr.bf16.gmra.mrb[0].mxu0 %v110
  %v262 = vpop.f32.mrb[0].mxu0
  %v263 = vadd.f32 %v82, %v262
  %v264 = vpop.f32.mrb[0].mxu0
  %v265 = vpop.f32.mrb[0].mxu0
  %v266 = vadd.f32 %v82, %v265
  %v267 = vpop.f32.mrb[0].mxu0
  %268 = vmatprep.mubr.bf16.mxu0 %v113
  %269 = vmatmul.mubr.bf16.gmra.mrb[0].mxu0 %v112
  %v270 = vpop.f32.mrb[0].mxu0
  %v271 = vadd.f32 %v82, %v270
  %v272 = vpop.f32.mrb[0].mxu0
  %v273 = vpop.f32.mrb[0].mxu0
  %v274 = vadd.f32 %v82, %v273
  %v275 = vpop.f32.mrb[0].mxu0
  %276 = vmatprep.mubr.bf16.mxu0 %v115
  %277 = vmatmul.mubr.bf16.gmra.mrb[0].mxu0 %v114
  %v278 = vpop.f32.mrb[0].mxu0
  %v279 = vadd.f32 %v82, %v278
  %v280 = vpop.f32.mrb[0].mxu0
  %v281 = vpop.f32.mrb[0].mxu0
  %v282 = vadd.f32 %v82, %v281
  %v283 = vpop.f32.mrb[0].mxu0
  %284 = vdwg.mxu0
  %285 = vst [vmem:[%s9] sm:$0xff] %v255
  %286 = vst [vmem:[%s9 + $0x8] sm:$0xff] %v258
  %287 = vst [vmem:[%s9 + $0x10] sm:$0xff] %v263
  %288 = vst [vmem:[%s9 + $0x18] sm:$0xff] %v266
  %289 = vst [vmem:[%s9 + $0x20] sm:$0xff] %v271
  %290 = vst [vmem:[%s9 + $0x28] sm:$0xff] %v274
  %291 = vst [vmem:[%s9 + $0x30] sm:$0xff] %v279
  %292 = vst [vmem:[%s9 + $0x38] sm:$0xff] %v282
  %v293 = vunpack.c.l.bf16 %v37
  %v294 = vunpack.c.h.bf16 %v37
  %v295 = vunpack.c.l.bf16 %v38
  %v296 = vunpack.c.h.bf16 %v38
  %v297 = vunpack.c.l.bf16 %v39
  %v298 = vunpack.c.h.bf16 %v39
  %v299 = vunpack.c.l.bf16 %v40
  %v300 = vunpack.c.h.bf16 %v40
  %v301 = vunpack.c.l.bf16 %v41
  %v302 = vunpack.c.h.bf16 %v41
  %v303 = vunpack.c.l.bf16 %v42
  %v304 = vunpack.c.h.bf16 %v42
  %v305 = vunpack.c.l.bf16 %v43
  %v306 = vunpack.c.h.bf16 %v43
  %v307 = vunpack.c.l.bf16 %v44
  %v308 = vunpack.c.h.bf16 %v44
  %v309 = vadd.f32 %v293, %v295
  %v310 = vrot.slane %v309, 4
  %v311 = vadd.f32 %v309, %v310
  %v312 = vrot.slane %v311, 2
  %v313 = vadd.f32 %v311, %v312
  %v314 = vrot.slane %v313, 1
  %v315 = vadd.f32 %v313, %v314
  %v316 = vadd.f32 %v294, %v296
  %v317 = vrot.slane %v316, 4
  %v318 = vadd.f32 %v316, %v317
  %v319 = vrot.slane %v318, 2
  %v320 = vadd.f32 %v318, %v319
  %v321 = vrot.slane %v320, 1
  %v322 = vadd.f32 %v320, %v321
  %v323 = vadd.f32 %v297, %v299
  %v324 = vrot.slane %v323, 4
  %v325 = vadd.f32 %v323, %v324
  %v326 = vrot.slane %v325, 2
  %v327 = vadd.f32 %v325, %v326
  %v328 = vrot.slane %v327, 1
  %v329 = vadd.f32 %v327, %v328
  %v330 = vadd.f32 %v298, %v300
  %v331 = vrot.slane %v330, 4
  %v332 = vadd.f32 %v330, %v331
  %v333 = vrot.slane %v332, 2
  %v334 = vadd.f32 %v332, %v333
  %v335 = vrot.slane %v334, 1
  %v336 = vadd.f32 %v334, %v335
  %v337 = vadd.f32 %v301, %v303
  %v338 = vrot.slane %v337, 4
  %v339 = vadd.f32 %v337, %v338
  %v340 = vrot.slane %v339, 2
  %v341 = vadd.f32 %v339, %v340
  %v342 = vrot.slane %v341, 1
  %v343 = vadd.f32 %v341, %v342
  %v344 = vadd.f32 %v302, %v304
  %v345 = vrot.slane %v344, 4
  %v346 = vadd.f32 %v344, %v345
  %v347 = vrot.slane %v346, 2
  %v348 = vadd.f32 %v346, %v347
  %v349 = vrot.slane %v348, 1
  %v350 = vadd.f32 %v348, %v349
  %v351 = vadd.f32 %v305, %v307
  %v352 = vrot.slane %v351, 4
  %v353 = vadd.f32 %v351, %v352
  %v354 = vrot.slane %v353, 2
  %v355 = vadd.f32 %v353, %v354
  %v356 = vrot.slane %v355, 1
  %v357 = vadd.f32 %v355, %v356
  %v358 = vadd.f32 %v306, %v308
  %v359 = vrot.slane %v358, 4
  %v360 = vadd.f32 %v358, %v359
  %v361 = vrot.slane %v360, 2
  %v362 = vadd.f32 %v360, %v361
  %v363 = vrot.slane %v362, 1
  %v364 = vadd.f32 %v362, %v363
  %v365 = vrcp.pop 16.0
  %v366 = vmul.f32 %v315, %v365
  %v367 = vmul.f32 %v322, %v365
  %v368 = vmul.f32 %v329, %v365
  %v369 = vmul.f32 %v336, %v365
  %v370 = vmul.f32 %v343, %v365
  %v371 = vmul.f32 %v350, %v365
  %v372 = vmul.f32 %v357, %v365
  %v373 = vmul.f32 %v364, %v365
  %v374 = vpack.c.bf16 %v366, %v366
  %v375 = vpack.c.bf16 %v367, %v367
  %v376 = vpack.c.bf16 %v368, %v368
  %v377 = vpack.c.bf16 %v369, %v369
  %v378 = vpack.c.bf16 %v370, %v370
  %v379 = vpack.c.bf16 %v371, %v371
  %v380 = vpack.c.bf16 %v372, %v372
  %v381 = vpack.c.bf16 %v373, %v373
  %v382 = vld [vmem:[%s4] sm:$0xf]
  %v383 = vld [vmem:[%s4 + $0x4] sm:$0xf]
  %v384 = vld [vmem:[%s4 + $0x8] sm:$0xf]
  %v385 = vld [vmem:[%s4 + $0xc] sm:$0xf]
  %v386 = vld [vmem:[%s4 + $0x10] sm:$0xf]
  %v387 = vld [vmem:[%s4 + $0x14] sm:$0xf]
  %v388 = vld [vmem:[%s4 + $0x18] sm:$0xf]
  %v389 = vld [vmem:[%s4 + $0x1c] sm:$0xf]
  %v390 = vld [vmem:[%s4 + $0x20] sm:$0xf]
  %v391 = vld [vmem:[%s4 + $0x24] sm:$0xf]
  %v392 = vld [vmem:[%s4 + $0x28] sm:$0xf]
  %v393 = vld [vmem:[%s4 + $0x2c] sm:$0xf]
  %v394 = vld [vmem:[%s4 + $0x30] sm:$0xf]
  %v395 = vld [vmem:[%s4 + $0x34] sm:$0xf]
  %v396 = vld [vmem:[%s4 + $0x38] sm:$0xf]
  %v397 = vld [vmem:[%s4 + $0x3c] sm:$0xf]
  %v398 = vld [vmem:[%s4 + $0x40] sm:$0xf]
  %v399 = vld [vmem:[%s4 + $0x44] sm:$0xf]
  %v400 = vld [vmem:[%s4 + $0x48] sm:$0xf]
  %v401 = vld [vmem:[%s4 + $0x4c] sm:$0xf]
  %v402 = vld [vmem:[%s4 + $0x50] sm:$0xf]
  %v403 = vld [vmem:[%s4 + $0x54] sm:$0xf]
  %v404 = vld [vmem:[%s4 + $0x58] sm:$0xf]
  %v405 = vld [vmem:[%s4 + $0x5c] sm:$0xf]
  %v406 = vld [vmem:[%s4 + $0x60] sm:$0xf]
  %v407 = vld [vmem:[%s4 + $0x64] sm:$0xf]
  %v408 = vld [vmem:[%s4 + $0x68] sm:$0xf]
  %v409 = vld [vmem:[%s4 + $0x6c] sm:$0xf]
  %v410 = vld [vmem:[%s4 + $0x70] sm:$0xf]
  %v411 = vld [vmem:[%s4 + $0x74] sm:$0xf]
  %v412 = vld [vmem:[%s4 + $0x78] sm:$0xf]
  %v413 = vld [vmem:[%s4 + $0x7c] sm:$0xf]
  %v414 = vld [vmem:[%s5] sm:$0x1]
  %v416 = vlaneseq
  %v417 = vshrl.u32 %v416, 7
  %v418 = vsub.s32 0, %v417
  %v419 = vrot.slane %v414, %v418
  %v429 = vunpack.c.l.b16 %v374
  %v430 = vunpack.c.l.b16 %v375
  %v431 = vunpack.c.l.b16 %v376
  %v432 = vunpack.c.l.b16 %v377
  %v433 = vunpack.c.l.b16 %v378
  %v434 = vunpack.c.l.b16 %v379
  %v435 = vunpack.c.l.b16 %v380
  %v436 = vunpack.c.l.b16 %v381
  %vm437 = vcmask 1041409
  %v438 = vsel %vm437, %v431, %v429
  %vm439 = vcmask 1042434
  %v440 = vsel %vm439, %v433, %v438
  %vm441 = vcmask 1043459
  %v442 = vsel %vm441, %v435, %v440
  %v443 = vsel %vm437, %v432, %v430
  %v444 = vsel %vm439, %v434, %v443
  %v445 = vsel %vm441, %v436, %v444
  %v446 = vpack.c.b16 %v442, %v442
  %v447 = vpack.c.b16 %v445, %v445
  %v482 = vunpack.c.l.b16 %v382
  %v483 = vunpack.c.l.b16 %v383
  %v484 = vunpack.c.l.b16 %v384
  %v485 = vunpack.c.l.b16 %v385
  %v486 = vunpack.c.l.b16 %v386
  %v487 = vunpack.c.l.b16 %v387
  %v488 = vunpack.c.l.b16 %v388
  %v489 = vunpack.c.l.b16 %v389
  %v490 = vunpack.c.l.b16 %v390
  %v491 = vunpack.c.l.b16 %v391
  %v492 = vunpack.c.l.b16 %v392
  %v493 = vunpack.c.l.b16 %v393
  %v494 = vunpack.c.l.b16 %v394
  %v495 = vunpack.c.l.b16 %v395
  %v496 = vunpack.c.l.b16 %v396
  %v497 = vunpack.c.l.b16 %v397
  %v498 = vunpack.c.l.b16 %v398
  %v499 = vunpack.c.l.b16 %v399
  %v500 = vunpack.c.l.b16 %v400
  %v501 = vunpack.c.l.b16 %v401
  %v502 = vunpack.c.l.b16 %v402
  %v503 = vunpack.c.l.b16 %v403
  %v504 = vunpack.c.l.b16 %v404
  %v505 = vunpack.c.l.b16 %v405
  %v506 = vunpack.c.l.b16 %v406
  %v507 = vunpack.c.l.b16 %v407
  %v508 = vunpack.c.l.b16 %v408
  %v509 = vunpack.c.l.b16 %v409
  %v510 = vunpack.c.l.b16 %v410
  %v511 = vunpack.c.l.b16 %v411
  %v512 = vunpack.c.l.b16 %v412
  %v513 = vunpack.c.l.b16 %v413
  %v514 = vpack.c.b16 %v483, %v482
  %v515 = vpack.c.b16 %v485, %v484
  %v516 = vpack.c.b16 %v487, %v486
  %v517 = vpack.c.b16 %v489, %v488
  %v518 = vpack.c.b16 %v491, %v490
  %v519 = vpack.c.b16 %v493, %v492
  %v520 = vpack.c.b16 %v495, %v494
  %v521 = vpack.c.b16 %v497, %v496
  %v522 = vpack.c.b16 %v499, %v498
  %v523 = vpack.c.b16 %v501, %v500
  %v524 = vpack.c.b16 %v503, %v502
  %v525 = vpack.c.b16 %v505, %v504
  %v526 = vpack.c.b16 %v507, %v506
  %v527 = vpack.c.b16 %v509, %v508
  %v528 = vpack.c.b16 %v511, %v510
  %v529 = vpack.c.b16 %v513, %v512
  %546 = vmatprep.subr.bf16.mxu0 0
  %547 = vmatpush1.bf16.msra.mxu0 %v514
  %548 = vmatprep.subr.bf16.mxu0 0
  %549 = vmatpush1.bf16.msra.mxu0 %v515
  %550 = vmatprep.subr.bf16.mxu0 0
  %551 = vmatpush1.bf16.msra.mxu0 %v516
  %552 = vmatprep.subr.bf16.mxu0 0
  %553 = vmatpush1.bf16.msra.mxu0 %v517
  %554 = vmatprep.subr.bf16.mxu0 0
  %555 = vmatpush1.bf16.msra.mxu0 %v518
  %556 = vmatprep.subr.bf16.mxu0 0
  %557 = vmatpush1.bf16.msra.mxu0 %v519
  %558 = vmatprep.subr.bf16.mxu0 0
  %559 = vmatpush1.bf16.msra.mxu0 %v520
  %560 = vmatprep.subr.bf16.mxu0 0
  %561 = vmatpush1.bf16.msra.mxu0 %v521
  %562 = vmatprep.subr.bf16.mxu0 0
  %563 = vmatpush1.bf16.msra.mxu0 %v522
  %564 = vmatprep.subr.bf16.mxu0 0
  %565 = vmatpush1.bf16.msra.mxu0 %v523
  %566 = vmatprep.subr.bf16.mxu0 0
  %567 = vmatpush1.bf16.msra.mxu0 %v524
  %568 = vmatprep.subr.bf16.mxu0 0
  %569 = vmatpush1.bf16.msra.mxu0 %v525
  %570 = vmatprep.subr.bf16.mxu0 0
  %571 = vmatpush1.bf16.msra.mxu0 %v526
  %572 = vmatprep.subr.bf16.mxu0 0
  %573 = vmatpush1.bf16.msra.mxu0 %v527
  %574 = vmatprep.subr.bf16.mxu0 0
  %575 = vmatpush1.bf16.msra.mxu0 %v528
  %576 = vmatprep.subr.bf16.mxu0 0
  %577 = vmatpush1.bf16.msra.mxu0 %v529
  %578 = vmatprep.mubr.bf16.mxu0 %v447
  %579 = vmatmul.mubr.bf16.gmra.mrb[0].mxu0 %v446
  %v580 = vpop.f32.mrb[0].mxu0
  %v581 = vadd.f32 %v419, %v580
  %v582 = vpop.f32.mrb[0].mxu0
  %v583 = vpop.f32.mrb[0].mxu0
  %v584 = vpop.f32.mrb[0].mxu0
  %585 = vdwg.mxu0
  %586 = vst [vmem:[%s10] sm:$0xf] %v581
  %v587 = vld [vmem:[%s6] sm:$0xf]
  %v588 = vld [vmem:[%s6 + $0x4] sm:$0xf]
  %v589 = vld [vmem:[%s6 + $0x8] sm:$0xf]
  %v590 = vld [vmem:[%s6 + $0xc] sm:$0xf]
  %v591 = vld [vmem:[%s6 + $0x10] sm:$0xf]
  %v592 = vld [vmem:[%s6 + $0x14] sm:$0xf]
  %v593 = vld [vmem:[%s6 + $0x18] sm:$0xf]
  %v594 = vld [vmem:[%s6 + $0x1c] sm:$0xf]
  %v595 = vld [vmem:[%s6 + $0x20] sm:$0xf]
  %v596 = vld [vmem:[%s6 + $0x24] sm:$0xf]
  %v597 = vld [vmem:[%s6 + $0x28] sm:$0xf]
  %v598 = vld [vmem:[%s6 + $0x2c] sm:$0xf]
  %v599 = vld [vmem:[%s6 + $0x30] sm:$0xf]
  %v600 = vld [vmem:[%s6 + $0x34] sm:$0xf]
  %v601 = vld [vmem:[%s6 + $0x38] sm:$0xf]
  %v602 = vld [vmem:[%s6 + $0x3c] sm:$0xf]
  %v603 = vld [vmem:[%s6 + $0x40] sm:$0xf]
  %v604 = vld [vmem:[%s6 + $0x44] sm:$0xf]
  %v605 = vld [vmem:[%s6 + $0x48] sm:$0xf]
  %v606 = vld [vmem:[%s6 + $0x4c] sm:$0xf]
  %v607 = vld [vmem:[%s6 + $0x50] sm:$0xf]
  %v608 = vld [vmem:[%s6 + $0x54] sm:$0xf]
  %v609 = vld [vmem:[%s6 + $0x58] sm:$0xf]
  %v610 = vld [vmem:[%s6 + $0x5c] sm:$0xf]
  %v611 = vld [vmem:[%s6 + $0x60] sm:$0xf]
  %v612 = vld [vmem:[%s6 + $0x64] sm:$0xf]
  %v613 = vld [vmem:[%s6 + $0x68] sm:$0xf]
  %v614 = vld [vmem:[%s6 + $0x6c] sm:$0xf]
  %v615 = vld [vmem:[%s6 + $0x70] sm:$0xf]
  %v616 = vld [vmem:[%s6 + $0x74] sm:$0xf]
  %v617 = vld [vmem:[%s6 + $0x78] sm:$0xf]
  %v618 = vld [vmem:[%s6 + $0x7c] sm:$0xf]
  %v619 = vld [vmem:[%s7] sm:$0x1]
  %v621 = vlaneseq
  %v622 = vshrl.u32 %v621, 7
  %v623 = vsub.s32 0, %v622
  %v624 = vrot.slane %v619, %v623
  %v658 = vunpack.c.l.b16 %v587
  %v659 = vunpack.c.l.b16 %v588
  %v660 = vunpack.c.l.b16 %v589
  %v661 = vunpack.c.l.b16 %v590
  %v662 = vunpack.c.l.b16 %v591
  %v663 = vunpack.c.l.b16 %v592
  %v664 = vunpack.c.l.b16 %v593
  %v665 = vunpack.c.l.b16 %v594
  %v666 = vunpack.c.l.b16 %v595
  %v667 = vunpack.c.l.b16 %v596
  %v668 = vunpack.c.l.b16 %v597
  %v669 = vunpack.c.l.b16 %v598
  %v670 = vunpack.c.l.b16 %v599
  %v671 = vunpack.c.l.b16 %v600
  %v672 = vunpack.c.l.b16 %v601
  %v673 = vunpack.c.l.b16 %v602
  %v674 = vunpack.c.l.b16 %v603
  %v675 = vunpack.c.l.b16 %v604
  %v676 = vunpack.c.l.b16 %v605
  %v677 = vunpack.c.l.b16 %v606
  %v678 = vunpack.c.l.b16 %v607
  %v679 = vunpack.c.l.b16 %v608
  %v680 = vunpack.c.l.b16 %v609
  %v681 = vunpack.c.l.b16 %v610
  %v682 = vunpack.c.l.b16 %v611
  %v683 = vunpack.c.l.b16 %v612
  %v684 = vunpack.c.l.b16 %v613
  %v685 = vunpack.c.l.b16 %v614
  %v686 = vunpack.c.l.b16 %v615
  %v687 = vunpack.c.l.b16 %v616
  %v688 = vunpack.c.l.b16 %v617
  %v689 = vunpack.c.l.b16 %v618
  %v690 = vpack.c.b16 %v659, %v658
  %v691 = vpack.c.b16 %v661, %v660
  %v692 = vpack.c.b16 %v663, %v662
  %v693 = vpack.c.b16 %v665, %v664
  %v694 = vpack.c.b16 %v667, %v666
  %v695 = vpack.c.b16 %v669, %v668
  %v696 = vpack.c.b16 %v671, %v670
  %v697 = vpack.c.b16 %v673, %v672
  %v698 = vpack.c.b16 %v675, %v674
  %v699 = vpack.c.b16 %v677, %v676
  %v700 = vpack.c.b16 %v679, %v678
  %v701 = vpack.c.b16 %v681, %v680
  %v702 = vpack.c.b16 %v683, %v682
  %v703 = vpack.c.b16 %v685, %v684
  %v704 = vpack.c.b16 %v687, %v686
  %v705 = vpack.c.b16 %v689, %v688
  %722 = vmatprep.subr.bf16.mxu0 0
  %723 = vmatpush1.bf16.msra.mxu0 %v690
  %724 = vmatprep.subr.bf16.mxu0 0
  %725 = vmatpush1.bf16.msra.mxu0 %v691
  %726 = vmatprep.subr.bf16.mxu0 0
  %727 = vmatpush1.bf16.msra.mxu0 %v692
  %728 = vmatprep.subr.bf16.mxu0 0
  %729 = vmatpush1.bf16.msra.mxu0 %v693
  %730 = vmatprep.subr.bf16.mxu0 0
  %731 = vmatpush1.bf16.msra.mxu0 %v694
  %732 = vmatprep.subr.bf16.mxu0 0
  %733 = vmatpush1.bf16.msra.mxu0 %v695
  %734 = vmatprep.subr.bf16.mxu0 0
  %735 = vmatpush1.bf16.msra.mxu0 %v696
  %736 = vmatprep.subr.bf16.mxu0 0
  %737 = vmatpush1.bf16.msra.mxu0 %v697
  %738 = vmatprep.subr.bf16.mxu0 0
  %739 = vmatpush1.bf16.msra.mxu0 %v698
  %740 = vmatprep.subr.bf16.mxu0 0
  %741 = vmatpush1.bf16.msra.mxu0 %v699
  %742 = vmatprep.subr.bf16.mxu0 0
  %743 = vmatpush1.bf16.msra.mxu0 %v700
  %744 = vmatprep.subr.bf16.mxu0 0
  %745 = vmatpush1.bf16.msra.mxu0 %v701
  %746 = vmatprep.subr.bf16.mxu0 0
  %747 = vmatpush1.bf16.msra.mxu0 %v702
  %748 = vmatprep.subr.bf16.mxu0 0
  %749 = vmatpush1.bf16.msra.mxu0 %v703
  %750 = vmatprep.subr.bf16.mxu0 0
  %751 = vmatpush1.bf16.msra.mxu0 %v704
  %752 = vmatprep.subr.bf16.mxu0 0
  %753 = vmatpush1.bf16.msra.mxu0 %v705
  %754 = vmatprep.mubr.bf16.mxu0 %v447
  %755 = vmatmul.mubr.bf16.gmra.mrb[0].mxu0 %v446
  %v756 = vpop.f32.mrb[0].mxu0
  %v757 = vadd.f32 %v624, %v756
  %v758 = vpop.f32.mrb[0].mxu0
  %v759 = vpop.f32.mrb[0].mxu0
  %v760 = vpop.f32.mrb[0].mxu0
  %761 = vdwg.mxu0
  %762 = vst [vmem:[%s11] sm:$0xf] %v757
  %v763 = vld [vmem:[%s1] sm:$0xf]
  %v764 = vld [vmem:[%s1 + $0x4] sm:$0xf]
  %v765 = vld [vmem:[%s1 + $0x8] sm:$0xf]
  %v766 = vld [vmem:[%s1 + $0xc] sm:$0xf]
  %v767 = vld [vmem:[%s8] sm:$0xff]
  %v768 = vld [vmem:[%s8 + $0x8] sm:$0xff]
  %v769 = vld [vmem:[%s8 + $0x10] sm:$0xff]
  %v770 = vld [vmem:[%s8 + $0x18] sm:$0xff]
  %v771 = vld [vmem:[%s8 + $0x20] sm:$0xff]
  %v772 = vld [vmem:[%s8 + $0x28] sm:$0xff]
  %v773 = vld [vmem:[%s8 + $0x30] sm:$0xff]
  %v774 = vld [vmem:[%s8 + $0x38] sm:$0xff]
  %v775 = vld [vmem:[%s8 + $0x40] sm:$0xff]
  %v776 = vld [vmem:[%s8 + $0x48] sm:$0xff]
  %v777 = vld [vmem:[%s8 + $0x50] sm:$0xff]
  %v778 = vld [vmem:[%s8 + $0x58] sm:$0xff]
  %v779 = vld [vmem:[%s8 + $0x60] sm:$0xff]
  %v780 = vld [vmem:[%s8 + $0x68] sm:$0xff]
  %v781 = vld [vmem:[%s8 + $0x70] sm:$0xff]
  %v782 = vld [vmem:[%s8 + $0x78] sm:$0xff]
  %v783 = vld [vmem:[%s8 + $0x80] sm:$0xff]
  %v784 = vld [vmem:[%s8 + $0x88] sm:$0xff]
  %v785 = vld [vmem:[%s8 + $0x90] sm:$0xff]
  %v786 = vld [vmem:[%s8 + $0x98] sm:$0xff]
  %v787 = vld [vmem:[%s8 + $0xa0] sm:$0xff]
  %v788 = vld [vmem:[%s8 + $0xa8] sm:$0xff]
  %v789 = vld [vmem:[%s8 + $0xb0] sm:$0xff]
  %v790 = vld [vmem:[%s8 + $0xb8] sm:$0xff]
  %v791 = vld [vmem:[%s8 + $0xc0] sm:$0xff]
  %v792 = vld [vmem:[%s8 + $0xc8] sm:$0xff]
  %v793 = vld [vmem:[%s8 + $0xd0] sm:$0xff]
  %v794 = vld [vmem:[%s8 + $0xd8] sm:$0xff]
  %v795 = vld [vmem:[%s8 + $0xe0] sm:$0xff]
  %v796 = vld [vmem:[%s8 + $0xe8] sm:$0xff]
  %v797 = vld [vmem:[%s8 + $0xf0] sm:$0xff]
  %v798 = vld [vmem:[%s8 + $0xf8] sm:$0xff]
  %v803 = vunpack.c.l.b16 %v763
  %v804 = vunpack.c.l.b16 %v764
  %v805 = vunpack.c.l.b16 %v765
  %v806 = vunpack.c.l.b16 %v766
  %v807 = vpack.c.b16 %v804, %v803
  %v808 = vpack.c.b16 %v806, %v805
  %v843 = vunpack.c.l.b16 %v767
  %v844 = vunpack.c.h.b16 %v767
  %v845 = vunpack.c.l.b16 %v768
  %v846 = vunpack.c.h.b16 %v768
  %v847 = vunpack.c.l.b16 %v769
  %v848 = vunpack.c.h.b16 %v769
  %v849 = vunpack.c.l.b16 %v770
  %v850 = vunpack.c.h.b16 %v770
  %v851 = vunpack.c.l.b16 %v771
  %v852 = vunpack.c.h.b16 %v771
  %v853 = vunpack.c.l.b16 %v772
  %v854 = vunpack.c.h.b16 %v772
  %v855 = vunpack.c.l.b16 %v773
  %v856 = vunpack.c.h.b16 %v773
  %v857 = vunpack.c.l.b16 %v774
  %v858 = vunpack.c.h.b16 %v774
  %v859 = vunpack.c.l.b16 %v775
  %v860 = vunpack.c.h.b16 %v775
  %v861 = vunpack.c.l.b16 %v776
  %v862 = vunpack.c.h.b16 %v776
  %v863 = vunpack.c.l.b16 %v777
  %v864 = vunpack.c.h.b16 %v777
  %v865 = vunpack.c.l.b16 %v778
  %v866 = vunpack.c.h.b16 %v778
  %v867 = vunpack.c.l.b16 %v779
  %v868 = vunpack.c.h.b16 %v779
  %v869 = vunpack.c.l.b16 %v780
  %v870 = vunpack.c.h.b16 %v780
  %v871 = vunpack.c.l.b16 %v781
  %v872 = vunpack.c.h.b16 %v781
  %v873 = vunpack.c.l.b16 %v782
  %v874 = vunpack.c.h.b16 %v782
  %v875 = vunpack.c.l.b16 %v783
  %v876 = vunpack.c.h.b16 %v783
  %v877 = vunpack.c.l.b16 %v784
  %v878 = vunpack.c.h.b16 %v784
  %v879 = vunpack.c.l.b16 %v785
  %v880 = vunpack.c.h.b16 %v785
  %v881 = vunpack.c.l.b16 %v786
  %v882 = vunpack.c.h.b16 %v786
  %v883 = vunpack.c.l.b16 %v787
  %v884 = vunpack.c.h.b16 %v787
  %v885 = vunpack.c.l.b16 %v788
  %v886 = vunpack.c.h.b16 %v788
  %v887 = vunpack.c.l.b16 %v789
  %v888 = vunpack.c.h.b16 %v789
  %v889 = vunpack.c.l.b16 %v790
  %v890 = vunpack.c.h.b16 %v790
  %v891 = vunpack.c.l.b16 %v791
  %v892 = vunpack.c.h.b16 %v791
  %v893 = vunpack.c.l.b16 %v792
  %v894 = vunpack.c.h.b16 %v792
  %v895 = vunpack.c.l.b16 %v793
  %v896 = vunpack.c.h.b16 %v793
  %v897 = vunpack.c.l.b16 %v794
  %v898 = vunpack.c.h.b16 %v794
  %v899 = vunpack.c.l.b16 %v795
  %v900 = vunpack.c.h.b16 %v795
  %v901 = vunpack.c.l.b16 %v796
  %v902 = vunpack.c.h.b16 %v796
  %v903 = vunpack.c.l.b16 %v797
  %v904 = vunpack.c.h.b16 %v797
  %v905 = vunpack.c.l.b16 %v798
  %v906 = vunpack.c.h.b16 %v798
  %v907 = vpack.c.b16 %v847, %v843
  %v908 = vpack.c.b16 %v848, %v844
  %v909 = vpack.c.b16 %v849, %v845
  %v910 = vpack.c.b16 %v850, %v846
  %v911 = vpack.c.b16 %v855, %v851
  %v912 = vpack.c.b16 %v856, %v852
  %v913 = vpack.c.b16 %v857, %v853
  %v914 = vpack.c.b16 %v858, %v854
  %v915 = vpack.c.b16 %v863, %v859
  %v916 = vpack.c.b16 %v864, %v860
  %v917 = vpack.c.b16 %v865, %v861
  %v918 = vpack.c.b16 %v866, %v862
  %v919 = vpack.c.b16 %v871, %v867
  %v920 = vpack.c.b16 %v872, %v868
  %v921 = vpack.c.b16 %v873, %v869
  %v922 = vpack.c.b16 %v874, %v870
  %v923 = vpack.c.b16 %v879, %v875
  %v924 = vpack.c.b16 %v880, %v876
  %v925 = vpack.c.b16 %v881, %v877
  %v926 = vpack.c.b16 %v882, %v878
  %v927 = vpack.c.b16 %v887, %v883
  %v928 = vpack.c.b16 %v888, %v884
  %v929 = vpack.c.b16 %v889, %v885
  %v930 = vpack.c.b16 %v890, %v886
  %v931 = vpack.c.b16 %v895, %v891
  %v932 = vpack.c.b16 %v896, %v892
  %v933 = vpack.c.b16 %v897, %v893
  %v934 = vpack.c.b16 %v898, %v894
  %v935 = vpack.c.b16 %v903, %v899
  %v936 = vpack.c.b16 %v904, %v900
  %v937 = vpack.c.b16 %v905, %v901
  %v938 = vpack.c.b16 %v906, %v902
  %971 = vmatprep.subr.bf16.mxu0 %v908
  %972 = vmatpush1.bf16.msra.mxu0 %v907
  %973 = vmatprep.subr.bf16.mxu0 %v912
  %974 = vmatpush1.bf16.msra.mxu0 %v911
  %975 = vmatprep.subr.bf16.mxu0 %v916
  %976 = vmatpush1.bf16.msra.mxu0 %v915
  %977 = vmatprep.subr.bf16.mxu0 %v920
  %978 = vmatpush1.bf16.msra.mxu0 %v919
  %979 = vmatprep.subr.bf16.mxu0 %v924
  %980 = vmatpush1.bf16.msra.mxu0 %v923
  %981 = vmatprep.subr.bf16.mxu0 %v928
  %982 = vmatpush1.bf16.msra.mxu0 %v927
  %983 = vmatprep.subr.bf16.mxu0 %v932
  %984 = vmatpush1.bf16.msra.mxu0 %v931
  %985 = vmatprep.subr.bf16.mxu0 %v936
  %986 = vmatpush1.bf16.msra.mxu0 %v935
  %987 = vmatprep.subr.bf16.mxu0 0
  %988 = vmatpush1.bf16.msra.mxu0 0
  %989 = vmatprep.subr.bf16.mxu0 0
  %990 = vmatpush1.bf16.msra.mxu0 0
  %991 = vmatprep.subr.bf16.mxu0 0
  %992 = vmatpush1.bf16.msra.mxu0 0
  %993 = vmatprep.subr.bf16.mxu0 0
  %994 = vmatpush1.bf16.msra.mxu0 0
  %995 = vmatprep.subr.bf16.mxu0 0
  %996 = vmatpush1.bf16.msra.mxu0 0
  %997 = vmatprep.subr.bf16.mxu0 0
  %998 = vmatpush1.bf16.msra.mxu0 0
  %999 = vmatprep.subr.bf16.mxu0 0
  %1000 = vmatpush1.bf16.msra.mxu0 0
  %1001 = vmatprep.subr.bf16.mxu0 0
  %1002 = vmatpush1.bf16.msra.mxu0 0
  %1003 = vmatprep.mubr.bf16.mxu0 0
  %1004 = vmatmul.mubr.bf16.gmra.mrb[0].mxu0 %v807
  %v1005 = vpop.f32.mrb[0].mxu0
  %v1006 = vadd.f32 0.0, %v1005
  %v1007 = vpop.f32.mrb[0].mxu0
  %v1008 = vadd.f32 0.0, %v1007
  %v1009 = vpop.f32.mrb[0].mxu0
  %v1010 = vadd.f32 0.0, %v1009
  %v1011 = vpop.f32.mrb[0].mxu0
  %v1012 = vadd.f32 0.0, %v1011
  %1013 = vmatprep.mubr.bf16.mxu0 0
  %1014 = vmatmul.mubr.bf16.gmra.mrb[0].mxu0 %v808
  %v1015 = vpop.f32.mrb[0].mxu0
  %v1016 = vadd.f32 0.0, %v1015
  %v1017 = vpop.f32.mrb[0].mxu0
  %v1018 = vadd.f32 0.0, %v1017
  %v1019 = vpop.f32.mrb[0].mxu0
  %v1020 = vadd.f32 0.0, %v1019
  %v1021 = vpop.f32.mrb[0].mxu0
  %v1022 = vadd.f32 0.0, %v1021
  %1023 = vdwg.mxu0
  %1024 = vmatprep.subr.bf16.mxu0 %v910
  %1025 = vmatpush1.bf16.msra.mxu0 %v909
  %1026 = vmatprep.subr.bf16.mxu0 %v914
  %1027 = vmatpush1.bf16.msra.mxu0 %v913
  %1028 = vmatprep.subr.bf16.mxu0 %v918
  %1029 = vmatpush1.bf16.msra.mxu0 %v917
  %1030 = vmatprep.subr.bf16.mxu0 %v922
  %1031 = vmatpush1.bf16.msra.mxu0 %v921
  %1032 = vmatprep.subr.bf16.mxu0 %v926
  %1033 = vmatpush1.bf16.msra.mxu0 %v925
  %1034 = vmatprep.subr.bf16.mxu0 %v930
  %1035 = vmatpush1.bf16.msra.mxu0 %v929
  %1036 = vmatprep.subr.bf16.mxu0 %v934
  %1037 = vmatpush1.bf16.msra.mxu0 %v933
  %1038 = vmatprep.subr.bf16.mxu0 %v938
  %1039 = vmatpush1.bf16.msra.mxu0 %v937
  %1040 = vmatprep.subr.bf16.mxu0 0
  %1041 = vmatpush1.bf16.msra.mxu0 0
  %1042 = vmatprep.subr.bf16.mxu0 0
  %1043 = vmatpush1.bf16.msra.mxu0 0
  %1044 = vmatprep.subr.bf16.mxu0 0
  %1045 = vmatpush1.bf16.msra.mxu0 0
  %1046 = vmatprep.subr.bf16.mxu0 0
  %1047 = vmatpush1.bf16.msra.mxu0 0
  %1048 = vmatprep.subr.bf16.mxu0 0
  %1049 = vmatpush1.bf16.msra.mxu0 0
  %1050 = vmatprep.subr.bf16.mxu0 0
  %1051 = vmatpush1.bf16.msra.mxu0 0
  %1052 = vmatprep.subr.bf16.mxu0 0
  %1053 = vmatpush1.bf16.msra.mxu0 0
  %1054 = vmatprep.subr.bf16.mxu0 0
  %1055 = vmatpush1.bf16.msra.mxu0 0
  %1056 = vmatprep.mubr.bf16.mxu0 0
  %1057 = vmatmul.mubr.bf16.gmra.mrb[0].mxu0 %v807
  %v1058 = vpop.f32.mrb[0].mxu0
  %v1059 = vadd.f32 0.0, %v1058
  %v1060 = vpop.f32.mrb[0].mxu0
  %v1061 = vadd.f32 0.0, %v1060
  %v1062 = vpop.f32.mrb[0].mxu0
  %v1063 = vadd.f32 0.0, %v1062
  %v1064 = vpop.f32.mrb[0].mxu0
  %v1065 = vadd.f32 0.0, %v1064
  %1066 = vmatprep.mubr.bf16.mxu0 0
  %1067 = vmatmul.mubr.bf16.gmra.mrb[0].mxu0 %v808
  %v1068 = vpop.f32.mrb[0].mxu0
  %v1069 = vadd.f32 0.0, %v1068
  %v1070 = vpop.f32.mrb[0].mxu0
  %v1071 = vadd.f32 0.0, %v1070
  %v1072 = vpop.f32.mrb[0].mxu0
  %v1073 = vadd.f32 0.0, %v1072
  %v1074 = vpop.f32.mrb[0].mxu0
  %v1075 = vadd.f32 0.0, %v1074
  %1076 = vdwg.mxu0
  %1077 = vst [vmem:[%s12] sm:$0xff] %v1006
  %1078 = vst [vmem:[%s12 + $0x8] sm:$0xff] %v1008
  %1079 = vst [vmem:[%s12 + $0x10] sm:$0xff] %v1059
  %1080 = vst [vmem:[%s12 + $0x18] sm:$0xff] %v1061
  %1081 = vst [vmem:[%s12 + $0x20] sm:$0xff] %v1010
  %1082 = vst [vmem:[%s12 + $0x28] sm:$0xff] %v1012
  %1083 = vst [vmem:[%s12 + $0x30] sm:$0xff] %v1063
  %1084 = vst [vmem:[%s12 + $0x38] sm:$0xff] %v1065
  %1085 = vst [vmem:[%s12 + $0x40] sm:$0xff] %v1016
  %1086 = vst [vmem:[%s12 + $0x48] sm:$0xff] %v1018
  %1087 = vst [vmem:[%s12 + $0x50] sm:$0xff] %v1069
  %1088 = vst [vmem:[%s12 + $0x58] sm:$0xff] %v1071
  %1089 = vst [vmem:[%s12 + $0x60] sm:$0xff] %v1020
  %1090 = vst [vmem:[%s12 + $0x68] sm:$0xff] %v1022
  %1091 = vst [vmem:[%s12 + $0x70] sm:$0xff] %v1073
  %1092 = vst [vmem:[%s12 + $0x78] sm:$0xff] %v1075
  // Predicated region
  $region38: #{decoder_forward.2} parent=0 // pred_check
    _
  $region39: #{decoder_forward.2} parent=0 // pred_check_branch
    %1094 = sbr.rel (0) target = $region41
  $region40: #{decoder_forward.2} parent=0 // pred_region
    _
  $region41: #{decoder_forward.2} parent=0 // pred_fallthru
    _
  // Predicated region
  $region42: #{decoder_forward.2} parent=0 // pred_check
    _
  $region43: #{decoder_forward.2} parent=0 // pred_check_branch
    %1096 = sbr.rel (0) target = $region45
  $region44: #{decoder_forward.2} parent=0 // pred_region
    _
  $region45: #{decoder_forward.2} parent=0 // pred_fallthru
    _
  // Predicated region
  $region46: #{decoder_forward.2} parent=0 // pred_check
    _
  $region47: #{decoder_forward.2} parent=0 // pred_check_branch
    %1098 = sbr.rel (0) target = $region49
  $region48: #{decoder_forward.2} parent=0 // pred_region
    _
  $region49: #{decoder_forward.2} parent=0 // pred_fallthru
    _
  // Predicated region
  $region50: #{decoder_forward.2} parent=0 // pred_check
    _
  $region51: #{decoder_forward.2} parent=0 // pred_check_branch
    %1100 = sbr.rel (0) target = $region53
  $region52: #{decoder_forward.2} parent=0 // pred_region
    _
  $region53: #{decoder_forward.2} parent=0 // pred_fallthru
    _
  // Predicated region
  $region54: #{decoder_forward.2} parent=0 // pred_check
    _
  $region55: #{decoder_forward.2} parent=0 // pred_check_branch
    %1102 = sbr.rel (0) target = $region57
  $region56: #{decoder_forward.2} parent=0 // pred_region
    _
  $region57: #{decoder_forward.2} parent=0 // pred_fallthru
    _
  // Predicated region
  $region58: #{decoder_forward.2} parent=0 // pred_check
    _
  $region59: #{decoder_forward.2} parent=0 // pred_check_branch
    %1104 = sbr.rel (0) target = $region61
  $region60: #{decoder_forward.2} parent=0 // pred_region
    _
  $region61: #{decoder_forward.2} parent=0 // pred_fallthru
    _
  // Predicated region
  $region62: #{decoder_forward.2} parent=0 // pred_check
    _
  $region63: #{decoder_forward.2} parent=0 // pred_check_branch
    %1106 = sbr.rel (0) target = $region65
  $region64: #{decoder_forward.2} parent=0 // pred_region
    _
  $region65: #{decoder_forward.2} parent=0 // pred_fallthru
    _
  // Predicated region
  $region66: #{decoder_forward.2} parent=0 // pred_check
    _
  $region67: #{decoder_forward.2} parent=0 // pred_check_branch
    %1108 = sbr.rel (0) target = $region69
  $region68: #{decoder_forward.2} parent=0 // pred_region
    _
  $region69: #{decoder_forward.2} parent=0 // pred_fallthru
    _

// kernel: decoder_forward.3
$region0: #{decoder_forward.3}
  #allocation0 [shape = 'u32[]', space=smem, size = 0x4, offset = 0x4, fixed_abs, tag = 'smem constant byte address 0x4 - core index']
  #allocation1 [shape = 'u32[144,128]{1,0:T(1,128)}', space=vmem, size = 0x12000, scoped, tag = 'internal scratch']
  #allocation2 [shape = 'f32[4,128]{1,0:T(4,128)}', space=vmem, size = 0x800, scoped, tag = 'scratch operand']
  #allocation3 [shape = 'f32[4,128]{1,0:T(4,128)}', space=vmem, size = 0x800, scoped, tag = 'scratch operand']
  %s0 = inlined_call_operand.vmem [shape: f32[8,4,512], index: 0, kind: input, shape index: {}]
  %s1 = inlined_call_operand.vmem [shape: bf16[4,16,256], index: 1, kind: input, shape index: {}]
  %s2 = inlined_call_operand.vmem [shape: f32[4,16,128], index: 2, kind: input, shape index: {}]
  %s3 = inlined_call_operand.vmem [shape: f32[8,4,1], index: 3, kind: input, shape index: {}]
  %s4 = inlined_call_operand.vmem [shape: f32[4,128], index: 4, kind: input, shape index: {}]
  %s5 = inlined_call_operand.vmem [shape: f32[4,128], index: 5, kind: input, shape index: {}]
  %s6 = inlined_call_operand.vmem [shape: bf16[128,896], index: 6, kind: input, shape index: {}]
  %s7 = inlined_call_operand.vmem [shape: f32[1,896], index: 7, kind: input, shape index: {}]
  %s8 = inlined_call_operand.vmem [shape: f32[1,128], index: 8, kind: input, shape index: {}]
  %s9 = inlined_call_operand.vmem [shape: bf16[256,512], index: 9, kind: input, shape index: {}]
  %s10 = inlined_call_operand.vmem [shape: bf16[128,512], index: 10, kind: input, shape index: {}]
  %s11 = inlined_call_operand.vmem [shape: f32[1,512], index: 11, kind: input, shape index: {}]
  %s12 = inlined_call_operand.vmem [shape: f32[8,4,512], index: 12, kind: output, shape index: {0}]
  %s13 = inlined_call_operand.vmem [shape: f32[8,4,16], index: 13, kind: output, shape index: {1}]
  %14 = xla_tuple %s12, %s13
  %s15 = sld [smem:[#allocation0]]
  $region93: #{decoder_forward.3} parent=0
    _
  %s17 = ssub.s32 1, %s15
  %s18 = scalar_select 0, %s17, %s15
  loop: start=0, step=1, limit=10
  $region2: #{decoder_forward.3} parent=0 // loop_pre_header
    _
  $region3: #{decoder_forward.3} parent=0 // loop_header
    %s20 = sphi 0, %s24
    %p21 = scmp.ge.s32.totalorder %s20, 10
    %s30 = sphi 0, %s32
    %s33 = sphi 0, %s30
    %s34 = sphi 0, %s33
    %s50 = sphi 0, %s34
    %s54 = sphi 0, %s54
    %s56 = sphi 0, %s54
    %s57 = sphi 0, %s56
    %s71 = sphi 0, %s57
    %s75 = sphi 0, %s75
    %s77 = sphi 0, %s75
    %s78 = sphi 0, %s77
    %s92 = sphi 0, %s78
    %s98 = sphi 0, %s100
    %s101 = sphi 0, %s98
    %s102 = sphi 0, %s101
    %s118 = sphi 0, %s102
    %s122 = sphi 0, %s122
    %s124 = sphi 0, %s122
    %s125 = sphi 0, %s124
    %s139 = sphi 0, %s125
    %s143 = sphi 0, %s143
    %s145 = sphi 0, %s143
    %s146 = sphi 0, %s145
    %s160 = sphi 0, %s146
    %s164 = sphi 0, %s164
    %s166 = sphi 0, %s164
    %s167 = sphi 0, %s166
    %s181 = sphi 0, %s167
    %s185 = sphi 0, %s185
    %s187 = sphi 0, %s185
    %s188 = sphi 0, %s187
    %s202 = sphi 0, %s188
    %s206 = sphi 0, %s206
    %s208 = sphi 0, %s206
    %s209 = sphi 0, %s208
    %s223 = sphi 0, %s209
    %s227 = sphi 0, %s227
    %s229 = sphi 0, %s227
    %s230 = sphi 0, %s229
    %s244 = sphi 0, %s230
    %s248 = sphi 0, %s248
    %s250 = sphi 0, %s248
    %s251 = sphi 0, %s250
    %s265 = sphi 0, %s251
    %s269 = sphi 0, %s269
    %s271 = sphi 0, %s269
    %s272 = sphi 0, %s271
    %s286 = sphi 0, %s272
    %s292 = sphi 0, %s294
    %s295 = sphi 0, %s292
    %s296 = sphi 0, %s295
    %s312 = sphi 0, %s296
    %s318 = sphi 0, %s320
    %s321 = sphi 0, %s318
    %s322 = sphi 0, %s321
    %s338 = sphi 0, %s322
  $region4: #{decoder_forward.3} parent=0 // loop_header_branch
    %23 = sbr.rel (%p21) target = $region8
  $region5: #{decoder_forward.3} parent=0 // loop_body
    %s25 = ssub.s32 %s20, 1
    %s26 = ssub.s32 %s20, 2
    %s27 = sadd.s32 %s20, 1
    %s28 = ssub.s32 %s20, %s27
    %p29 = scmp.eq.s32.totalorder %s28, 0
    %s31 = sadd.s32 %s30, 1
    %s32 = scalar_select %p29, %s30, %s31
    %p35 = pneg %p29
    %p36 = scmp.eq.s32.totalorder %s20, 7
    %p37 = por %p35, %p36
    %p38 = scmp.ne.s32.totalorder %s30, %s33
    %p39 = scmp.eq.s32.totalorder %s20, 0
    %p40 = por %p38, %p39
    %p41 = scmp.ne.s32.totalorder %s30, %s33
    %p42 = scmp.eq.s32.totalorder %s25, 7
    %p43 = por %p41, %p42
    %p44 = scmp.ne.s32.totalorder %s33, %s34
    %p45 = scmp.eq.s32.totalorder %s25, 0
    %p46 = por %p44, %p45
    %p47 = scmp.ne.s32.totalorder %s33, %s34
    %p48 = scmp.eq.s32.totalorder %s26, 7
    %p49 = por %p47, %p48
    %p51 = scmp.ne.s32.totalorder %s34, %s50
    %p52 = scmp.eq.s32.totalorder %s26, 0
    %p53 = por %p51, %p52
    %s55 = sadd.s32 %s54, 1
    %p58 = scmp.eq.s32.totalorder %s20, 7
    %p59 = scmp.ne.s32.totalorder %s54, %s56
    %p60 = scmp.eq.s32.totalorder %s20, 0
    %p61 = por %p59, %p60
    %p62 = scmp.ne.s32.totalorder %s54, %s56
    %p63 = scmp.eq.s32.totalorder %s25, 7
    %p64 = por %p62, %p63
    %p65 = scmp.ne.s32.totalorder %s56, %s57
    %p66 = scmp.eq.s32.totalorder %s25, 0
    %p67 = por %p65, %p66
    %p68 = scmp.ne.s32.totalorder %s56, %s57
    %p69 = scmp.eq.s32.totalorder %s26, 7
    %p70 = por %p68, %p69
    %p72 = scmp.ne.s32.totalorder %s57, %s71
    %p73 = scmp.eq.s32.totalorder %s26, 0
    %p74 = por %p72, %p73
    %s76 = sadd.s32 %s75, 1
    %p79 = scmp.eq.s32.totalorder %s20, 7
    %p80 = scmp.ne.s32.totalorder %s75, %s77
    %p81 = scmp.eq.s32.totalorder %s20, 0
    %p82 = por %p80, %p81
    %p83 = scmp.ne.s32.totalorder %s75, %s77
    %p84 = scmp.eq.s32.totalorder %s25, 7
    %p85 = por %p83, %p84
    %p86 = scmp.ne.s32.totalorder %s77, %s78
    %p87 = scmp.eq.s32.totalorder %s25, 0
    %p88 = por %p86, %p87
    %p89 = scmp.ne.s32.totalorder %s77, %s78
    %p90 = scmp.eq.s32.totalorder %s26, 7
    %p91 = por %p89, %p90
    %p93 = scmp.ne.s32.totalorder %s78, %s92
    %p94 = scmp.eq.s32.totalorder %s26, 0
    %p95 = por %p93, %p94
    %s96 = ssub.s32 %s20, %s27
    %p97 = scmp.eq.s32.totalorder %s96, 0
    %s99 = sadd.s32 %s98, 1
    %s100 = scalar_select %p97, %s98, %s99
    %p103 = pneg %p97
    %p104 = scmp.eq.s32.totalorder %s20, 7
    %p105 = por %p103, %p104
    %p106 = scmp.ne.s32.totalorder %s98, %s101
    %p107 = scmp.eq.s32.totalorder %s20, 0
    %p108 = por %p106, %p107
    %p109 = scmp.ne.s32.totalorder %s98, %s101
    %p110 = scmp.eq.s32.totalorder %s25, 7
    %p111 = por %p109, %p110
    %p112 = scmp.ne.s32.totalorder %s101, %s102
    %p113 = scmp.eq.s32.totalorder %s25, 0
    %p114 = por %p112, %p113
    %p115 = scmp.ne.s32.totalorder %s101, %s102
    %p116 = scmp.eq.s32.totalorder %s26, 7
    %p117 = por %p115, %p116
    %p119 = scmp.ne.s32.totalorder %s102, %s118
    %p120 = scmp.eq.s32.totalorder %s26, 0
    %p121 = por %p119, %p120
    %s123 = sadd.s32 %s122, 1
    %p126 = scmp.eq.s32.totalorder %s20, 7
    %p127 = scmp.ne.s32.totalorder %s122, %s124
    %p128 = scmp.eq.s32.totalorder %s20, 0
    %p129 = por %p127, %p128
    %p130 = scmp.ne.s32.totalorder %s122, %s124
    %p131 = scmp.eq.s32.totalorder %s25, 7
    %p132 = por %p130, %p131
    %p133 = scmp.ne.s32.totalorder %s124, %s125
    %p134 = scmp.eq.s32.totalorder %s25, 0
    %p135 = por %p133, %p134
    %p136 = scmp.ne.s32.totalorder %s124, %s125
    %p137 = scmp.eq.s32.totalorder %s26, 7
    %p138 = por %p136, %p137
    %p140 = scmp.ne.s32.totalorder %s125, %s139
    %p141 = scmp.eq.s32.totalorder %s26, 0
    %p142 = por %p140, %p141
    %s144 = sadd.s32 %s143, 1
    %p147 = scmp.eq.s32.totalorder %s20, 7
    %p148 = scmp.ne.s32.totalorder %s143, %s145
    %p149 = scmp.eq.s32.totalorder %s20, 0
    %p150 = por %p148, %p149
    %p151 = scmp.ne.s32.totalorder %s143, %s145
    %p152 = scmp.eq.s32.totalorder %s25, 7
    %p153 = por %p151, %p152
    %p154 = scmp.ne.s32.totalorder %s145, %s146
    %p155 = scmp.eq.s32.totalorder %s25, 0
    %p156 = por %p154, %p155
    %p157 = scmp.ne.s32.totalorder %s145, %s146
    %p158 = scmp.eq.s32.totalorder %s26, 7
    %p159 = por %p157, %p158
    %p161 = scmp.ne.s32.totalorder %s146, %s160
    %p162 = scmp.eq.s32.totalorder %s26, 0
    %p163 = por %p161, %p162
    %s165 = sadd.s32 %s164, 1
    %p168 = scmp.eq.s32.totalorder %s20, 7
    %p169 = scmp.ne.s32.totalorder %s164, %s166
    %p170 = scmp.eq.s32.totalorder %s20, 0
    %p171 = por %p169, %p170
    %p172 = scmp.ne.s32.totalorder %s164, %s166
    %p173 = scmp.eq.s32.totalorder %s25, 7
    %p174 = por %p172, %p173
    %p175 = scmp.ne.s32.totalorder %s166, %s167
    %p176 = scmp.eq.s32.totalorder %s25, 0
    %p177 = por %p175, %p176
    %p178 = scmp.ne.s32.totalorder %s166, %s167
    %p179 = scmp.eq.s32.totalorder %s26, 7
    %p180 = por %p178, %p179
    %p182 = scmp.ne.s32.totalorder %s167, %s181
    %p183 = scmp.eq.s32.totalorder %s26, 0
    %p184 = por %p182, %p183
    %s186 = sadd.s32 %s185, 1
    %p189 = scmp.eq.s32.totalorder %s20, 7
    %p190 = scmp.ne.s32.totalorder %s185, %s187
    %p191 = scmp.eq.s32.totalorder %s20, 0
    %p192 = por %p190, %p191
    %p193 = scmp.ne.s32.totalorder %s185, %s187
    %p194 = scmp.eq.s32.totalorder %s25, 7
    %p195 = por %p193, %p194
    %p196 = scmp.ne.s32.totalorder %s187, %s188
    %p197 = scmp.eq.s32.totalorder %s25, 0
    %p198 = por %p196, %p197
    %p199 = scmp.ne.s32.totalorder %s187, %s188
    %p200 = scmp.eq.s32.totalorder %s26, 7
    %p201 = por %p199, %p200
    %p203 = scmp.ne.s32.totalorder %s188, %s202
    %p204 = scmp.eq.s32.totalorder %s26, 0
    %p205 = por %p203, %p204
    %s207 = sadd.s32 %s206, 1
    %p210 = scmp.eq.s32.totalorder %s20, 7
    %p211 = scmp.ne.s32.totalorder %s206, %s208
    %p212 = scmp.eq.s32.totalorder %s20, 0
    %p213 = por %p211, %p212
    %p214 = scmp.ne.s32.totalorder %s206, %s208
    %p215 = scmp.eq.s32.totalorder %s25, 7
    %p216 = por %p214, %p215
    %p217 = scmp.ne.s32.totalorder %s208, %s209
    %p218 = scmp.eq.s32.totalorder %s25, 0
    %p219 = por %p217, %p218
    %p220 = scmp.ne.s32.totalorder %s208, %s209
    %p221 = scmp.eq.s32.totalorder %s26, 7
    %p222 = por %p220, %p221
    %p224 = scmp.ne.s32.totalorder %s209, %s223
    %p225 = scmp.eq.s32.totalorder %s26, 0
    %p226 = por %p224, %p225
    %s228 = sadd.s32 %s227, 1
    %p231 = scmp.eq.s32.totalorder %s20, 7
    %p232 = scmp.ne.s32.totalorder %s227, %s229
    %p233 = scmp.eq.s32.totalorder %s20, 0
    %p234 = por %p232, %p233
    %p235 = scmp.ne.s32.totalorder %s227, %s229
    %p236 = scmp.eq.s32.totalorder %s25, 7
    %p237 = por %p235, %p236
    %p238 = scmp.ne.s32.totalorder %s229, %s230
    %p239 = scmp.eq.s32.totalorder %s25, 0
    %p240 = por %p238, %p239
    %p241 = scmp.ne.s32.totalorder %s229, %s230
    %p242 = scmp.eq.s32.totalorder %s26, 7
    %p243 = por %p241, %p242
    %p245 = scmp.ne.s32.totalorder %s230, %s244
    %p246 = scmp.eq.s32.totalorder %s26, 0
    %p247 = por %p245, %p246
    %s249 = sadd.s32 %s248, 1
    %p252 = scmp.eq.s32.totalorder %s20, 7
    %p253 = scmp.ne.s32.totalorder %s248, %s250
    %p254 = scmp.eq.s32.totalorder %s20, 0
    %p255 = por %p253, %p254
    %p256 = scmp.ne.s32.totalorder %s248, %s250
    %p257 = scmp.eq.s32.totalorder %s25, 7
    %p258 = por %p256, %p257
    %p259 = scmp.ne.s32.totalorder %s250, %s251
    %p260 = scmp.eq.s32.totalorder %s25, 0
    %p261 = por %p259, %p260
    %p262 = scmp.ne.s32.totalorder %s250, %s251
    %p263 = scmp.eq.s32.totalorder %s26, 7
    %p264 = por %p262, %p263
    %p266 = scmp.ne.s32.totalorder %s251, %s265
    %p267 = scmp.eq.s32.totalorder %s26, 0
    %p268 = por %p266, %p267
    %s270 = sadd.s32 %s269, 1
    %p273 = scmp.eq.s32.totalorder %s20, 7
    %p274 = scmp.ne.s32.totalorder %s269, %s271
    %p275 = scmp.eq.s32.totalorder %s20, 0
    %p276 = por %p274, %p275
    %p277 = scmp.ne.s32.totalorder %s269, %s271
    %p278 = scmp.eq.s32.totalorder %s25, 7
    %p279 = por %p277, %p278
    %p280 = scmp.ne.s32.totalorder %s271, %s272
    %p281 = scmp.eq.s32.totalorder %s25, 0
    %p282 = por %p280, %p281
    %p283 = scmp.ne.s32.totalorder %s271, %s272
    %p284 = scmp.eq.s32.totalorder %s26, 7
    %p285 = por %p283, %p284
    %p287 = scmp.ne.s32.totalorder %s272, %s286
    %p288 = scmp.eq.s32.totalorder %s26, 0
    %p289 = por %p287, %p288
    %s290 = ssub.s32 %s20, %s27
    %p291 = scmp.eq.s32.totalorder %s290, 0
    %s293 = sadd.s32 %s292, 1
    %s294 = scalar_select %p291, %s292, %s293
    %p297 = pneg %p291
    %p298 = scmp.eq.s32.totalorder %s20, 7
    %p299 = por %p297, %p298
    %p300 = scmp.ne.s32.totalorder %s292, %s295
    %p301 = scmp.eq.s32.totalorder %s20, 0
    %p302 = por %p300, %p301
    %p303 = scmp.ne.s32.totalorder %s292, %s295
    %p304 = scmp.eq.s32.totalorder %s25, 7
    %p305 = por %p303, %p304
    %p306 = scmp.ne.s32.totalorder %s295, %s296
    %p307 = scmp.eq.s32.totalorder %s25, 0
    %p308 = por %p306, %p307
    %p309 = scmp.ne.s32.totalorder %s295, %s296
    %p310 = scmp.eq.s32.totalorder %s26, 7
    %p311 = por %p309, %p310
    %p313 = scmp.ne.s32.totalorder %s296, %s312
    %p314 = scmp.eq.s32.totalorder %s26, 0
    %p315 = por %p313, %p314
    %s316 = ssub.s32 %s20, %s27
    %p317 = scmp.eq.s32.totalorder %s316, 0
    %s319 = sadd.s32 %s318, 1
    %s320 = scalar_select %p317, %s318, %s319
    %p323 = pneg %p317
    %p324 = scmp.eq.s32.totalorder %s20, 7
    %p325 = por %p323, %p324
    %p326 = scmp.ne.s32.totalorder %s318, %s321
    %p327 = scmp.eq.s32.totalorder %s20, 0
    %p328 = por %p326, %p327
    %p329 = scmp.ne.s32.totalorder %s318, %s321
    %p330 = scmp.eq.s32.totalorder %s25, 7
    %p331 = por %p329, %p330
    %p332 = scmp.ne.s32.totalorder %s321, %s322
    %p333 = scmp.eq.s32.totalorder %s25, 0
    %p334 = por %p332, %p333
    %p335 = scmp.ne.s32.totalorder %s321, %s322
    %p336 = scmp.eq.s32.totalorder %s26, 7
    %p337 = por %p335, %p336
    %p339 = scmp.ne.s32.totalorder %s322, %s338
    %p340 = scmp.eq.s32.totalorder %s26, 0
    %p341 = por %p339, %p340
    %p342 = scmp.le.s32.totalorder 1, %s20
    %p343 = scmp.lt.s32.totalorder %s20, 9
    %p344 = pnand %p342, %p343
    %p345 = pneg %p344
    // Predicated region
    $region9: #{decoder_forward.3} parent=5 // pred_check
      _
    $region10: #{decoder_forward.3} parent=5 // pred_check_branch
      %347 = sbr.rel (%p344) target = $region12
    $region11: #{decoder_forward.3} parent=5 // pred_region
      %s348 = ssub.s32 %s20, 1
      // Predicated region
      $region13: #{decoder_forward.3} parent=11 // pred_check
        %p349 = pneg %p67
      $region14: #{decoder_forward.3} parent=11 // pred_check_branch
        %351 = sbr.rel (%p349) target = $region16
      $region15: #{decoder_forward.3} parent=11 // pred_region
        _
      $region16: #{decoder_forward.3} parent=11 // pred_fallthru
        _
      // Predicated region
      $region17: #{decoder_forward.3} parent=11 // pred_check
        %p352 = pneg %p88
      $region18: #{decoder_forward.3} parent=11 // pred_check_branch
        %354 = sbr.rel (%p352) target = $region20
      $region19: #{decoder_forward.3} parent=11 // pred_region
        _
      $region20: #{decoder_forward.3} parent=11 // pred_fallthru
        _
      // Predicated region
      $region21: #{decoder_forward.3} parent=11 // pred_check
        %p355 = pneg %p135
      $region22: #{decoder_forward.3} parent=11 // pred_check_branch
        %357 = sbr.rel (%p355) target = $region24
      $region23: #{decoder_forward.3} parent=11 // pred_region
        _
      $region24: #{decoder_forward.3} parent=11 // pred_fallthru
        _
      // Predicated region
      $region25: #{decoder_forward.3} parent=11 // pred_check
        %p358 = pneg %p156
      $region26: #{decoder_forward.3} parent=11 // pred_check_branch
        %360 = sbr.rel (%p358) target = $region28
      $region27: #{decoder_forward.3} parent=11 // pred_region
        _
      $region28: #{decoder_forward.3} parent=11 // pred_fallthru
        _
      // Predicated region
      $region29: #{decoder_forward.3} parent=11 // pred_check
        %p361 = pneg %p177
      $region30: #{decoder_forward.3} parent=11 // pred_check_branch
        %363 = sbr.rel (%p361) target = $region32
      $region31: #{decoder_forward.3} parent=11 // pred_region
        _
      $region32: #{decoder_forward.3} parent=11 // pred_fallthru
        _
      // Predicated region
      $region33: #{decoder_forward.3} parent=11 // pred_check
        %p364 = pneg %p198
      $region34: #{decoder_forward.3} parent=11 // pred_check_branch
        %366 = sbr.rel (%p364) target = $region36
      $region35: #{decoder_forward.3} parent=11 // pred_region
        _
      $region36: #{decoder_forward.3} parent=11 // pred_fallthru
        _
      // Predicated region
      $region37: #{decoder_forward.3} parent=11 // pred_check
        %p367 = pneg %p219
      $region38: #{decoder_forward.3} parent=11 // pred_check_branch
        %369 = sbr.rel (%p367) target = $region40
      $region39: #{decoder_forward.3} parent=11 // pred_region
        _
      $region40: #{decoder_forward.3} parent=11 // pred_fallthru
        _
      // Predicated region
      $region41: #{decoder_forward.3} parent=11 // pred_check
        %p370 = pneg %p240
      $region42: #{decoder_forward.3} parent=11 // pred_check_branch
        %372 = sbr.rel (%p370) target = $region44
      $region43: #{decoder_forward.3} parent=11 // pred_region
        _
      $region44: #{decoder_forward.3} parent=11 // pred_fallthru
        _
      // Predicated region
      $region45: #{decoder_forward.3} parent=11 // pred_check
        %p373 = pneg %p261
      $region46: #{decoder_forward.3} parent=11 // pred_check_branch
        %375 = sbr.rel (%p373) target = $region48
      $region47: #{decoder_forward.3} parent=11 // pred_region
        _
      $region48: #{decoder_forward.3} parent=11 // pred_fallthru
        _
      // Predicated region
      $region49: #{decoder_forward.3} parent=11 // pred_check
        %p376 = pneg %p282
      $region50: #{decoder_forward.3} parent=11 // pred_check_branch
        %378 = sbr.rel (%p376) target = $region52
      $region51: #{decoder_forward.3} parent=11 // pred_region
        _
      $region52: #{decoder_forward.3} parent=11 // pred_fallthru
        _
    $region12: #{decoder_forward.3} parent=5 // pred_fallthru
      _
    %p379 = scmp.lt.s32.totalorder %s20, 8
    // Predicated region
    $region53: #{decoder_forward.3} parent=5 // pred_check
      %p380 = pneg %p379
    $region54: #{decoder_forward.3} parent=5 // pred_check_branch
      %382 = sbr.rel (%p380) target = $region56
    $region55: #{decoder_forward.3} parent=5 // pred_region
      // Predicated region
      $region57: #{decoder_forward.3} parent=55 // pred_check
        %p383 = pneg %p40
      $region58: #{decoder_forward.3} parent=55 // pred_check_branch
        %385 = sbr.rel (%p383) target = $region60
      $region59: #{decoder_forward.3} parent=55 // pred_region
        %p386 = scmp.lt.s32.totalorder %s20, 7
        %s387 = scalar_select %p386, %s20, 7
        %s388 = smul.addr %s387, 4
        %s389 = smul.addr %s388, 4
        %s390 = scalar_lea.vmem %s0, %s389
      $region60: #{decoder_forward.3} parent=55 // pred_fallthru
        _
      // Predicated region
      $region61: #{decoder_forward.3} parent=55 // pred_check
        %p391 = pneg %p108
      $region62: #{decoder_forward.3} parent=55 // pred_check_branch
        %393 = sbr.rel (%p391) target = $region64
      $region63: #{decoder_forward.3} parent=55 // pred_region
        %p394 = scmp.lt.s32.totalorder %s20, 7
        %s395 = scalar_select %p394, %s20, 7
        %s396 = smul.addr %s395, 4
        %s397 = scalar_lea.vmem %s3, %s396
      $region64: #{decoder_forward.3} parent=55 // pred_fallthru
        _
    $region56: #{decoder_forward.3} parent=5 // pred_fallthru
      _
    %p398 = scmp.le.s32.totalorder 1, %s20
    %p399 = scmp.lt.s32.totalorder %s20, 9
    %p400 = pnand %p398, %p399
    %p401 = pneg %p400
    // Predicated region
    $region65: #{decoder_forward.3} parent=5 // pred_check
      _
    $region66: #{decoder_forward.3} parent=5 // pred_check_branch
      %403 = sbr.rel (%p400) target = $region68
    $region67: #{decoder_forward.3} parent=5 // pred_region
      %s404 = ssub.s32 %s20, 1
      %p405 = scmp.lt.s32.totalorder %s25, 7
      %s406 = scalar_select %p405, %s25, 7
      %s407 = smul.addr %s406, 4
      %s408 = smul.addr %s407, 4
      %s409 = scalar_lea.vmem %s0, %s408
      %p410 = pneg %p46
      %p411 = pneg %p43
      %p412 = pneg %p67
      %p413 = pneg %p64
      %p414 = pneg %p88
      %p415 = pneg %p85
      %p416 = scmp.lt.s32.totalorder %s25, 7
      %s417 = scalar_select %p416, %s25, 7
      %s418 = smul.addr %s417, 4
      %s419 = scalar_lea.vmem %s3, %s418
      %p420 = pneg %p114
      %p421 = pneg %p111
      %p422 = pneg %p135
      %p423 = pneg %p132
      %p424 = pneg %p156
      %p425 = pneg %p153
      %p426 = pneg %p177
      %p427 = pneg %p174
      %p428 = pneg %p198
      %p429 = pneg %p195
      %p430 = pneg %p219
      %p431 = pneg %p216
      %p432 = pneg %p240
      %p433 = pneg %p237
      %p434 = pneg %p261
      %p435 = pneg %p258
      %p436 = pneg %p282
      %p437 = pneg %p279
      %p438 = pneg %p308
      %p439 = pneg %p305
      %p440 = scmp.lt.s32.totalorder %s25, 7
      %s441 = scalar_select %p440, %s25, 7
      %s442 = smul.addr %s441, 4
      %s443 = smul.addr %s442, 4
      %s444 = scalar_lea.vmem %s12, %s443
      %p445 = pneg %p334
      %p446 = pneg %p331
      %p447 = scmp.lt.s32.totalorder %s25, 7
      %s448 = scalar_select %p447, %s25, 7
      %s449 = smul.addr %s448, 4
      %s450 = scalar_lea.vmem %s13, %s449
      %p451 = scmp.lt.s32.totalorder %s25, 7
      %s452 = scalar_select %p451, %s25, 7
      %s453 = smul.addr %s452, 4
      %s454 = smul.addr %s453, 4
      %s455 = scalar_lea.vmem %s0, %s454
      %p456 = scmp.lt.s32.totalorder %s25, 7
      %s457 = scalar_select %p456, %s25, 7
      %s458 = smul.addr %s457, 4
      %s459 = scalar_lea.vmem %s3, %s458
      %p460 = scmp.lt.s32.totalorder %s25, 7
      %s461 = scalar_select %p460, %s25, 7
      %s462 = smul.addr %s461, 4
      %s463 = smul.addr %s462, 4
      %s464 = scalar_lea.vmem %s12, %s463
      %p465 = scmp.lt.s32.totalorder %s25, 7
      %s466 = scalar_select %p465, %s25, 7
      %s467 = smul.addr %s466, 4
      %s468 = scalar_lea.vmem %s13, %s467
      %p470 = scmp.eq.s32.totalorder %s25, 0
      // Predicated region
      $region69: #{decoder_forward.3} parent=67 // pred_check
        %p471 = pneg %p470
      $region70: #{decoder_forward.3} parent=67 // pred_check_branch
        %473 = sbr.rel (%p471) target = $region72
      $region71: #{decoder_forward.3} parent=67 // pred_region
        %v474 = vld [vmem:[%s4] sm:$0xf]
        %475 = vst [vmem:[#allocation2] sm:$0xf] %v474
        %v476 = vld [vmem:[%s5] sm:$0xf]
        %477 = vst [vmem:[#allocation3] sm:$0xf] %v476
      $region72: #{decoder_forward.3} parent=67 // pred_fallthru
        _
      %v478 = vld [vmem:[#allocation2] sm:$0xf]
      %v479 = vld [vmem:[#allocation3] sm:$0xf]
      %v480 = vpack.c.bf16 %v478, %v478
      %v481 = vld [vmem:[%s6] sm:$0xff]
      %v482 = vld [vmem:[%s6 + $0x8] sm:$0xff]
      %v483 = vld [vmem:[%s6 + $0x10] sm:$0xff]
      %v484 = vld [vmem:[%s6 + $0x18] sm:$0xf]
      %v485 = vld [vmem:[%s6 + $0x1c] sm:$0xff]
      %v486 = vld [vmem:[%s6 + $0x24] sm:$0xff]
      %v487 = vld [vmem:[%s6 + $0x2c] sm:$0xff]
      %v488 = vld [vmem:[%s6 + $0x34] sm:$0xf]
      %v489 = vld [vmem:[%s6 + $0x38] sm:$0xff]
      %v490 = vld [vmem:[%s6 + $0x40] sm:$0xff]
      %v491 = vld [vmem:[%s6 + $0x48] sm:$0xff]
      %v492 = vld [vmem:[%s6 + $0x50] sm:$0xf]
      %v493 = vld [vmem:[%s6 + $0x54] sm:$0xff]
      %v494 = vld [vmem:[%s6 + $0x5c] sm:$0xff]
      %v495 = vld [vmem:[%s6 + $0x64] sm:$0xff]
      %v496 = vld [vmem:[%s6 + $0x6c] sm:$0xf]
      %v497 = vld [vmem:[%s6 + $0x70] sm:$0xff]
      %v498 = vld [vmem:[%s6 + $0x78] sm:$0xff]
      %v499 = vld [vmem:[%s6 + $0x80] sm:$0xff]
      %v500 = vld [vmem:[%s6 + $0x88] sm:$0xf]
      %v501 = vld [vmem:[%s6 + $0x8c] sm:$0xff]
      %v502 = vld [vmem:[%s6 + $0x94] sm:$0xff]
      %v503 = vld [vmem:[%s6 + $0x9c] sm:$0xff]
      %v504 = vld [vmem:[%s6 + $0xa4] sm:$0xf]
      %v505 = vld [vmem:[%s6 + $0xa8] sm:$0xff]
      %v506 = vld [vmem:[%s6 + $0xb0] sm:$0xff]
      %v507 = vld [vmem:[%s6 + $0xb8] sm:$0xff]
      %v508 = vld [vmem:[%s6 + $0xc0] sm:$0xf]
      %v509 = vld [vmem:[%s6 + $0xc4] sm:$0xff]
      %v510 = vld [vmem:[%s6 + $0xcc] sm:$0xff]
      %v511 = vld [vmem:[%s6 + $0xd4] sm:$0xff]
      %v512 = vld [vmem:[%s6 + $0xdc] sm:$0xf]
      %v513 = vld [vmem:[%s6 + $0xe0] sm:$0xff]
      %v514 = vld [vmem:[%s6 + $0xe8] sm:$0xff]
      %v515 = vld [vmem:[%s6 + $0xf0] sm:$0xff]
      %v516 = vld [vmem:[%s6 + $0xf8] sm:$0xf]
      %v517 = vld [vmem:[%s6 + $0xfc] sm:$0xff]
      %v518 = vld [vmem:[%s6 + $0x104] sm:$0xff]
      %v519 = vld [vmem:[%s6 + $0x10c] sm:$0xff]
      %v520 = vld [vmem:[%s6 + $0x114] sm:$0xf]
      %v521 = vld [vmem:[%s6 + $0x118] sm:$0xff]
      %v522 = vld [vmem:[%s6 + $0x120] sm:$0xff]
      %v523 = vld [vmem:[%s6 + $0x128] sm:$0xff]
      %v524 = vld [vmem:[%s6 + $0x130] sm:$0xf]
      %v525 = vld [vmem:[%s6 + $0x134] sm:$0xff]
      %v526 = vld [vmem:[%s6 + $0x13c] sm:$0xff]
      %v527 = vld [vmem:[%s6 + $0x144] sm:$0xff]
      %v528 = vld [vmem:[%s6 + $0x14c] sm:$0xf]
      %v529 = vld [vmem:[%s6 + $0x150] sm:$0xff]
      %v530 = vld [vmem:[%s6 + $0x158] sm:$0xff]
      %v531 = vld [vmem:[%s6 + $0x160] sm:$0xff]
      %v532 = vld [vmem:[%s6 + $0x168] sm:$0xf]
      %v533 = vld [vmem:[%s6 + $0x16c] sm:$0xff]
      %v534 = vld [vmem:[%s6 + $0x174] sm:$0xff]
      %v535 = vld [vmem:[%s6 + $0x17c] sm:$0xff]
      %v536 = vld [vmem:[%s6 + $0x184] sm:$0xf]
      %v537 = vld [vmem:[%s6 + $0x188] sm:$0xff]
      %v538 = vld [vmem:[%s6 + $0x190] sm:$0xff]
      %v539 = vld [vmem:[%s6 + $0x198] sm:$0xff]
      %v540 = vld [vmem:[%s6 + $0x1a0] sm:$0xf]
      %v541 = vld [vmem:[%s6 + $0x1a4] sm:$0xff]
      %v542 = vld [vmem:[%s6 + $0x1ac] sm:$0xff]
      %v543 = vld [vmem:[%s6 + $0x1b4] sm:$0xff]
      %v544 = vld [vmem:[%s6 + $0x1bc] sm:$0xf]
      %v545 = vld [vmem:[%s7] sm:$0xff]
      %v547 = vlaneseq
      %v548 = vshrl.u32 %v547, 7
      %v549 = vsub.s32 0, %v548
      %v550 = vrot.slane %v545, %v549
      %v551 = vlaneseq
      %v552 = vshrl.u32 %v551, 7
      %v553 = vsub.s32 1, %v552
      %v554 = vrot.slane %v545, %v553
      %v555 = vlaneseq
      %v556 = vshrl.u32 %v555, 7
      %v557 = vsub.s32 2, %v556
      %v558 = vrot.slane %v545, %v557
      %v559 = vlaneseq
      %v560 = vshrl.u32 %v559, 7
      %v561 = vsub.s32 3, %v560
      %v562 = vrot.slane %v545, %v561
      %v563 = vlaneseq
      %v564 = vshrl.u32 %v563, 7
      %v565 = vsub.s32 4, %v564
      %v566 = vrot.slane %v545, %v565
      %v567 = vlaneseq
      %v568 = vshrl.u32 %v567, 7
      %v569 = vsub.s32 5, %v568
      %v570 = vrot.slane %v545, %v569
      %v571 = vlaneseq
      %v572 = vshrl.u32 %v571, 7
      %v573 = vsub.s32 6, %v572
      %v574 = vrot.slane %v545, %v573
      %v646 = vunpack.c.l.b16 %v481
      %v647 = vunpack.c.h.b16 %v481
      %v648 = vunpack.c.l.b16 %v482
      %v649 = vunpack.c.h.b16 %v482
      %v650 = vunpack.c.l.b16 %v483
      %v651 = vunpack.c.h.b16 %v483
      %v652 = vunpack.c.l.b16 %v484
      %v653 = vunpack.c.l.b16 %v485
      %v654 = vunpack.c.h.b16 %v485
      %v655 = vunpack.c.l.b16 %v486
      %v656 = vunpack.c.h.b16 %v486
      %v657 = vunpack.c.l.b16 %v487
      %v658 = vunpack.c.h.b16 %v487
      %v659 = vunpack.c.l.b16 %v488
      %v660 = vunpack.c.l.b16 %v489
      %v661 = vunpack.c.h.b16 %v489
      %v662 = vunpack.c.l.b16 %v490
      %v663 = vunpack.c.h.b16 %v490
      %v664 = vunpack.c.l.b16 %v491
      %v665 = vunpack.c.h.b16 %v491
      %v666 = vunpack.c.l.b16 %v492
      %v667 = vunpack.c.l.b16 %v493
      %v668 = vunpack.c.h.b16 %v493
      %v669 = vunpack.c.l.b16 %v494
      %v670 = vunpack.c.h.b16 %v494
      %v671 = vunpack.c.l.b16 %v495
      %v672 = vunpack.c.h.b16 %v495
      %v673 = vunpack.c.l.b16 %v496
      %v674 = vunpack.c.l.b16 %v497
      %v675 = vunpack.c.h.b16 %v497
      %v676 = vunpack.c.l.b16 %v498
      %v677 = vunpack.c.h.b16 %v498
      %v678 = vunpack.c.l.b16 %v499
      %v679 = vunpack.c.h.b16 %v499
      %v680 = vunpack.c.l.b16 %v500
      %v681 = vunpack.c.l.b16 %v501
      %v682 = vunpack.c.h.b16 %v501
      %v683 = vunpack.c.l.b16 %v502
      %v684 = vunpack.c.h.b16 %v502
      %v685 = vunpack.c.l.b16 %v503
      %v686 = vunpack.c.h.b16 %v503
      %v687 = vunpack.c.l.b16 %v504
      %v688 = vunpack.c.l.b16 %v505
      %v689 = vunpack.c.h.b16 %v505
      %v690 = vunpack.c.l.b16 %v506
      %v691 = vunpack.c.h.b16 %v506
      %v692 = vunpack.c.l.b16 %v507
      %v693 = vunpack.c.h.b16 %v507
      %v694 = vunpack.c.l.b16 %v508
      %v695 = vunpack.c.l.b16 %v509
      %v696 = vunpack.c.h.b16 %v509
      %v697 = vunpack.c.l.b16 %v510
      %v698 = vunpack.c.h.b16 %v510
      %v699 = vunpack.c.l.b16 %v511
      %v700 = vunpack.c.h.b16 %v511
      %v701 = vunpack.c.l.b16 %v512
      %v702 = vunpack.c.l.b16 %v513
      %v703 = vunpack.c.h.b16 %v513
      %v704 = vunpack.c.l.b16 %v514
      %v705 = vunpack.c.h.b16 %v514
      %v706 = vunpack.c.l.b16 %v515
      %v707 = vunpack.c.h.b16 %v515
      %v708 = vunpack.c.l.b16 %v516
      %v709 = vunpack.c.l.b16 %v517
      %v710 = vunpack.c.h.b16 %v517
      %v711 = vunpack.c.l.b16 %v518
      %v712 = vunpack.c.h.b16 %v518
      %v713 = vunpack.c.l.b16 %v519
      %v714 = vunpack.c.h.b16 %v519
      %v715 = vunpack.c.l.b16 %v520
      %v716 = vunpack.c.l.b16 %v521
      %v717 = vunpack.c.h.b16 %v521
      %v718 = vunpack.c.l.b16 %v522
      %v719 = vunpack.c.h.b16 %v522
      %v720 = vunpack.c.l.b16 %v523
      %v721 = vunpack.c.h.b16 %v523
      %v722 = vunpack.c.l.b16 %v524
      %v723 = vunpack.c.l.b16 %v525
      %v724 = vunpack.c.h.b16 %v525
      %v725 = vunpack.c.l.b16 %v526
      %v726 = vunpack.c.h.b16 %v526
      %v727 = vunpack.c.l.b16 %v527
      %v728 = vunpack.c.h.b16 %v527
      %v729 = vunpack.c.l.b16 %v528
      %v730 = vunpack.c.l.b16 %v529
      %v731 = vunpack.c.h.b16 %v529
      %v732 = vunpack.c.l.b16 %v530
      %v733 = vunpack.c.h.b16 %v530
      %v734 = vunpack.c.l.b16 %v531
      %v735 = vunpack.c.h.b16 %v531
      %v736 = vunpack.c.l.b16 %v532
      %v737 = vunpack.c.l.b16 %v533
      %v738 = vunpack.c.h.b16 %v533
      %v739 = vunpack.c.l.b16 %v534
      %v740 = vunpack.c.h.b16 %v534
      %v741 = vunpack.c.l.b16 %v535
      %v742 = vunpack.c.h.b16 %v535
      %v743 = vunpack.c.l.b16 %v536
      %v744 = vunpack.c.l.b16 %v537
      %v745 = vunpack.c.h.b16 %v537
      %v746 = vunpack.c.l.b16 %v538
      %v747 = vunpack.c.h.b16 %v538
      %v748 = vunpack.c.l.b16 %v539
      %v749 = vunpack.c.h.b16 %v539
      %v750 = vunpack.c.l.b16 %v540
      %v751 = vunpack.c.l.b16 %v541
      %v752 = vunpack.c.h.b16 %v541
      %v753 = vunpack.c.l.b16 %v542
      %v754 = vunpack.c.h.b16 %v542
      %v755 = vunpack.c.l.b16 %v543
      %v756 = vunpack.c.h.b16 %v543
      %v757 = vunpack.c.l.b16 %v544
      %v758 = vpack.c.b16 %v653, %v646
      %v759 = vpack.c.b16 %v654, %v647
      %v760 = vpack.c.b16 %v655, %v648
      %v761 = vpack.c.b16 %v656, %v649
      %v762 = vpack.c.b16 %v657, %v650
      %v763 = vpack.c.b16 %v658, %v651
      %v764 = vpack.c.b16 %v659, %v652
      %v765 = vpack.c.b16 %v667, %v660
      %v766 = vpack.c.b16 %v668, %v661
      %v767 = vpack.c.b16 %v669, %v662
      %v768 = vpack.c.b16 %v670, %v663
      %v769 = vpack.c.b16 %v671, %v664
      %v770 = vpack.c.b16 %v672, %v665
      %v771 = vpack.c.b16 %v673, %v666
      %v772 = vpack.c.b16 %v681, %v674
      %v773 = vpack.c.b16 %v682, %v675
      %v774 = vpack.c.b16 %v683, %v676
      %v775 = vpack.c.b16 %v684, %v677
      %v776 = vpack.c.b16 %v685, %v678
      %v777 = vpack.c.b16 %v686, %v679
      %v778 = vpack.c.b16 %v687, %v680
      %v779 = vpack.c.b16 %v695, %v688
      %v780 = vpack.c.b16 %v696, %v689
      %v781 = vpack.c.b16 %v697, %v690
      %v782 = vpack.c.b16 %v698, %v691
      %v783 = vpack.c.b16 %v699, %v692
      %v784 = vpack.c.b16 %v700, %v693
      %v785 = vpack.c.b16 %v701, %v694
      %v786 = vpack.c.b16 %v709, %v702
      %v787 = vpack.c.b16 %v710, %v703
      %v788 = vpack.c.b16 %v711, %v704
      %v789 = vpack.c.b16 %v712, %v705
      %v790 = vpack.c.b16 %v713, %v706
      %v791 = vpack.c.b16 %v714, %v707
      %v792 = vpack.c.b16 %v715, %v708
      %v793 = vpack.c.b16 %v723, %v716
      %v794 = vpack.c.b16 %v724, %v717
      %v795 = vpack.c.b16 %v725, %v718
      %v796 = vpack.c.b16 %v726, %v719
      %v797 = vpack.c.b16 %v727, %v720
      %v798 = vpack.c.b16 %v728, %v721
      %v799 = vpack.c.b16 %v729, %v722
      %v800 = vpack.c.b16 %v737, %v730
      %v801 = vpack.c.b16 %v738, %v731
      %v802 = vpack.c.b16 %v739, %v732
      %v803 = vpack.c.b16 %v740, %v733
      %v804 = vpack.c.b16 %v741, %v734
      %v805 = vpack.c.b16 %v742, %v735
      %v806 = vpack.c.b16 %v743, %v736
      %v807 = vpack.c.b16 %v751, %v744
      %v808 = vpack.c.b16 %v752, %v745
      %v809 = vpack.c.b16 %v753, %v746
      %v810 = vpack.c.b16 %v754, %v747
      %v811 = vpack.c.b16 %v755, %v748
      %v812 = vpack.c.b16 %v756, %v749
      %v813 = vpack.c.b16 %v757, %v750
      %870 = vmatprep.subr.bf16.mxu0 %v759
      %871 = vmatpush1.bf16.msra.mxu0 %v758
      %872 = vmatprep.subr.bf16.mxu0 %v766
      %873 = vmatpush1.bf16.msra.mxu0 %v765
      %874 = vmatprep.subr.bf16.mxu0 %v773
      %875 = vmatpush1.bf16.msra.mxu0 %v772
      %876 = vmatprep.subr.bf16.mxu0 %v780
      %877 = vmatpush1.bf16.msra.mxu0 %v779
      %878 = vmatprep.subr.bf16.mxu0 %v787
      %879 = vmatpush1.bf16.msra.mxu0 %v786
      %880 = vmatprep.subr.bf16.mxu0 %v794
      %881 = vmatpush1.bf16.msra.mxu0 %v793
      %882 = vmatprep.subr.bf16.mxu0 %v801
      %883 = vmatpush1.bf16.msra.mxu0 %v800
      %884 = vmatprep.subr.bf16.mxu0 %v808
      %885 = vmatpush1.bf16.msra.mxu0 %v807
      %886 = vmatprep.subr.bf16.mxu0 0
      %887 = vmatpush1.bf16.msra.mxu0 0
      %888 = vmatprep.subr.bf16.mxu0 0
      %889 = vmatpush1.bf16.msra.mxu0 0
      %890 = vmatprep.subr.bf16.mxu0 0
      %891 = vmatpush1.bf16.msra.mxu0 0
      %892 = vmatprep.subr.bf16.mxu0 0
      %893 = vmatpush1.bf16.msra.mxu0 0
      %894 = vmatprep.subr.bf16.mxu0 0
      %895 = vmatpush1.bf16.msra.mxu0 0
      %896 = vmatprep.subr.bf16.mxu0 0
      %897 = vmatpush1.bf16.msra.mxu0 0
      %898 = vmatprep.subr.bf16.mxu0 0
      %899 = vmatpush1.bf16.msra.mxu0 0
      %900 = vmatprep.subr.bf16.mxu0 0
      %901 = vmatpush1.bf16.msra.mxu0 0
      %902 = vmatprep.mubr.bf16.mxu0 0
      %903 = vmatmul.mubr.bf16.gmra.mrb[0].mxu0 %v480
      %v904 = vpop.f32.mrb[0].mxu0
      %v905 = vadd.f32 %v550, %v904
      %v906 = vpop.f32.mrb[0].mxu0
      %v907 = vadd.f32 %v554, %v906
      %v908 = vpop.f32.mrb[0].mxu0
      %v909 = vpop.f32.mrb[0].mxu0
      %910 = vdwg.mxu0
      %911 = vmatprep.subr.bf16.mxu0 %v761
      %912 = vmatpush1.bf16.msra.mxu0 %v760
      %913 = vmatprep.subr.bf16.mxu0 %v768
      %914 = vmatpush1.bf16.msra.mxu0 %v767
      %915 = vmatprep.subr.bf16.mxu0 %v775
      %916 = vmatpush1.bf16.msra.mxu0 %v774
      %917 = vmatprep.subr.bf16.mxu0 %v782
      %918 = vmatpush1.bf16.msra.mxu0 %v781
      %919 = vmatprep.subr.bf16.mxu0 %v789
      %920 = vmatpush1.bf16.msra.mxu0 %v788
      %921 = vmatprep.subr.bf16.mxu0 %v796
      %922 = vmatpush1.bf16.msra.mxu0 %v795
      %923 = vmatprep.subr.bf16.mxu0 %v803
      %924 = vmatpush1.bf16.msra.mxu0 %v802
      %925 = vmatprep.subr.bf16.mxu0 %v810
      %926 = vmatpush1.bf16.msra.mxu0 %v809
      %927 = vmatprep.subr.bf16.mxu0 0
      %928 = vmatpush1.bf16.msra.mxu0 0
      %929 = vmatprep.subr.bf16.mxu0 0
      %930 = vmatpush1.bf16.msra.mxu0 0
      %931 = vmatprep.subr.bf16.mxu0 0
      %932 = vmatpush1.bf16.msra.mxu0 0
      %933 = vmatprep.subr.bf16.mxu0 0
      %934 = vmatpush1.bf16.msra.mxu0 0
      %935 = vmatprep.subr.bf16.mxu0 0
      %936 = vmatpush1.bf16.msra.mxu0 0
      %937 = vmatprep.subr.bf16.mxu0 0
      %938 = vmatpush1.bf16.msra.mxu0 0
      %939 = vmatprep.subr.bf16.mxu0 0
      %940 = vmatpush1.bf16.msra.mxu0 0
      %941 = vmatprep.subr.bf16.mxu0 0
      %942 = vmatpush1.bf16.msra.mxu0 0
      %943 = vmatprep.mubr.bf16.mxu0 0
      %944 = vmatmul.mubr.bf16.gmra.mrb[0].mxu0 %v480
      %v945 = vpop.f32.mrb[0].mxu0
      %v946 = vadd.f32 %v558, %v945
      %v947 = vpop.f32.mrb[0].mxu0
      %v948 = vadd.f32 %v562, %v947
      %v949 = vpop.f32.mrb[0].mxu0
      %v950 = vpop.f32.mrb[0].mxu0
      %951 = vdwg.mxu0
      %952 = vmatprep.subr.bf16.mxu0 %v763
      %953 = vmatpush1.bf16.msra.mxu0 %v762
      %954 = vmatprep.subr.bf16.mxu0 %v770
      %955 = vmatpush1.bf16.msra.mxu0 %v769
      %956 = vmatprep.subr.bf16.mxu0 %v777
      %957 = vmatpush1.bf16.msra.mxu0 %v776
      %958 = vmatprep.subr.bf16.mxu0 %v784
      %959 = vmatpush1.bf16.msra.mxu0 %v783
      %960 = vmatprep.subr.bf16.mxu0 %v791
      %961 = vmatpush1.bf16.msra.mxu0 %v790
      %962 = vmatprep.subr.bf16.mxu0 %v798
      %963 = vmatpush1.bf16.msra.mxu0 %v797
      %964 = vmatprep.subr.bf16.mxu0 %v805
      %965 = vmatpush1.bf16.msra.mxu0 %v804
      %966 = vmatprep.subr.bf16.mxu0 %v812
      %967 = vmatpush1.bf16.msra.mxu0 %v811
      %968 = vmatprep.subr.bf16.mxu0 0
      %969 = vmatpush1.bf16.msra.mxu0 0
      %970 = vmatprep.subr.bf16.mxu0 0
      %971 = vmatpush1.bf16.msra.mxu0 0
      %972 = vmatprep.subr.bf16.mxu0 0
      %973 = vmatpush1.bf16.msra.mxu0 0
      %974 = vmatprep.subr.bf16.mxu0 0
      %975 = vmatpush1.bf16.msra.mxu0 0
      %976 = vmatprep.subr.bf16.mxu0 0
      %977 = vmatpush1.bf16.msra.mxu0 0
      %978 = vmatprep.subr.bf16.mxu0 0
      %979 = vmatpush1.bf16.msra.mxu0 0
      %980 = vmatprep.subr.bf16.mxu0 0
      %981 = vmatpush1.bf16.msra.mxu0 0
      %982 = vmatprep.subr.bf16.mxu0 0
      %983 = vmatpush1.bf16.msra.mxu0 0
      %984 = vmatprep.mubr.bf16.mxu0 0
      %985 = vmatmul.mubr.bf16.gmra.mrb[0].mxu0 %v480
      %v986 = vpop.f32.mrb[0].mxu0
      %v987 = vadd.f32 %v566, %v986
      %v988 = vpop.f32.mrb[0].mxu0
      %v989 = vadd.f32 %v570, %v988
      %v990 = vpop.f32.mrb[0].mxu0
      %v991 = vpop.f32.mrb[0].mxu0
      %992 = vdwg.mxu0
      %993 = vmatprep.subr.bf16.mxu0 0
      %994 = vmatpush1.bf16.msra.mxu0 %v764
      %995 = vmatprep.subr.bf16.mxu0 0
      %996 = vmatpush1.bf16.msra.mxu0 %v771
      %997 = vmatprep.subr.bf16.mxu0 0
      %998 = vmatpush1.bf16.msra.mxu0 %v778
      %999 = vmatprep.subr.bf16.mxu0 0
      %1000 = vmatpush1.bf16.msra.mxu0 %v785
      %1001 = vmatprep.subr.bf16.mxu0 0
      %1002 = vmatpush1.bf16.msra.mxu0 %v792
      %1003 = vmatprep.subr.bf16.mxu0 0
      %1004 = vmatpush1.bf16.msra.mxu0 %v799
      %1005 = vmatprep.subr.bf16.mxu0 0
      %1006 = vmatpush1.bf16.msra.mxu0 %v806
      %1007 = vmatprep.subr.bf16.mxu0 0
      %1008 = vmatpush1.bf16.msra.mxu0 %v813
      %1009 = vmatprep.subr.bf16.mxu0 0
      %1010 = vmatpush1.bf16.msra.mxu0 0
      %1011 = vmatprep.subr.bf16.mxu0 0
      %1012 = vmatpush1.bf16.msra.mxu0 0
      %1013 = vmatprep.subr.bf16.mxu0 0
      %1014 = vmatpush1.bf16.msra.mxu0 0
      %1015 = vmatprep.subr.bf16.mxu0 0
      %1016 = vmatpush1.bf16.msra.mxu0 0
      %1017 = vmatprep.subr.bf16.mxu0 0
      %1018 = vmatpush1.bf16.msra.mxu0 0
      %1019 = vmatprep.subr.bf16.mxu0 0
      %1020 = vmatpush1.bf16.msra.mxu0 0
      %1021 = vmatprep.subr.bf16.mxu0 0
      %1022 = vmatpush1.bf16.msra.mxu0 0
      %1023 = vmatprep.subr.bf16.mxu0 0
      %1024 = vmatpush1.bf16.msra.mxu0 0
      %1025 = vmatprep.mubr.bf16.mxu0 0
      %1026 = vmatmul.mubr.bf16.gmra.mrb[0].mxu0 %v480
      %v1027 = vpop.f32.mrb[0].mxu0
      %v1028 = vadd.f32 %v574, %v1027
      %v1029 = vpop.f32.mrb[0].mxu0
      %v1030 = vpop.f32.mrb[0].mxu0
      %v1031 = vpop.f32.mrb[0].mxu0
      %1032 = vdwg.mxu0
      %v1033 = vxor.u32 %v907, 2147483648
      %v1034 = vxor.u32 %v946, 2147483648
      %v1035 = vmul.f32 %v1033, 1.442695
      %v1036 = vpow.pop %v1035
      %v1037 = vmul.f32 %v1034, 1.442695
      %v1038 = vpow.pop %v1037
      %v1039 = vadd.f32 %v1036, 1.0
      %v1040 = vadd.f32 %v1038, 1.0
      %v1041 = vrcp.pop %v1039
      %v1042 = vmul.f32 1.0, %v1041
      %v1043 = vrcp.pop %v1040
      %v1044 = vmul.f32 1.0, %v1043
      %v1045 = vld [vmem:[%s2] sm:$0xff]
      %v1046 = vld [vmem:[%s2 + $0x8] sm:$0xff]
      %v1047 = vld [vmem:[%s2 + $0x10] sm:$0xff]
      %v1048 = vld [vmem:[%s2 + $0x18] sm:$0xff]
      %v1049 = vld [vmem:[%s2 + $0x20] sm:$0xff]
      %v1050 = vld [vmem:[%s2 + $0x28] sm:$0xff]
      %v1051 = vld [vmem:[%s2 + $0x30] sm:$0xff]
      %v1052 = vld [vmem:[%s2 + $0x38] sm:$0xff]
      %v1055 = vunpack.c.l.s4 1966171168
      %v1056 = vunpack.c.0.s8 %v1055
      %v1057 = vlaneseq
      %v1058 = vshrl.u32 %v1057, 7
      %v1059 = vsub.s32 %v1056, %v1058
      %v1060 = vrot.slane %v905, %v1059
      %v1061 = vcombine.high %v1060, %v1060
      %v1063 = vunpack.c.l.s4 1966171168
      %v1064 = vunpack.c.0.s8 %v1063
      %v1065 = vlaneseq
      %v1066 = vshrl.u32 %v1065, 7
      %v1067 = vsub.s32 %v1064, %v1066
      %v1068 = vrot.slane %v1060, %v1067
      %v1070 = vunpack.c.l.s4 1966171168
      %v1071 = vunpack.c.0.s8 %v1070
      %v1072 = vlaneseq
      %v1073 = vshrl.u32 %v1072, 7
      %v1074 = vsub.s32 %v1071, %v1073
      %v1075 = vrot.slane %v1061, %v1074
      %v1076 = vcombine.high %v1068, %v1068
      %v1077 = vcombine.high %v1075, %v1075
      %v1078 = vlaneseq
      %v1079 = vshrl.u32 %v1078, 7
      %v1080 = vsub.s32 0, %v1079
      %v1081 = vrot.slane %v1068, %v1080
      %v1082 = vlaneseq
      %v1083 = vshrl.u32 %v1082, 7
      %v1084 = vsub.s32 0, %v1083
      %v1085 = vrot.slane %v1075, %v1084
      %v1086 = vlaneseq
      %v1087 = vshrl.u32 %v1086, 7
      %v1088 = vsub.s32 0, %v1087
      %v1089 = vrot.slane %v1076, %v1088
      %v1090 = vlaneseq
      %v1091 = vshrl.u32 %v1090, 7
      %v1092 = vsub.s32 0, %v1091
      %v1093 = vrot.slane %v1077, %v1092
      %v1098 = vadd.f32 %v1045, %v1081
      %v1099 = vadd.f32 %v1046, %v1081
      %v1100 = vadd.f32 %v1047, %v1085
      %v1101 = vadd.f32 %v1048, %v1085
      %v1102 = vadd.f32 %v1049, %v1089
      %v1103 = vadd.f32 %v1050, %v1089
      %v1104 = vadd.f32 %v1051, %v1093
      %v1105 = vadd.f32 %v1052, %v1093
      %v1106 = vmax.f32 %v1098, 0.0
      %v1107 = vmax.f32 %v1099, 0.0
      %v1108 = vmax.f32 %v1100, 0.0
      %v1109 = vmax.f32 %v1101, 0.0
      %v1110 = vmax.f32 %v1102, 0.0
      %v1111 = vmax.f32 %v1103, 0.0
      %v1112 = vmax.f32 %v1104, 0.0
      %v1113 = vmax.f32 %v1105, 0.0
      %v1114 = vld [vmem:[%s8] sm:$0x1]
      %v1116 = vlaneseq
      %v1117 = vshrl.u32 %v1116, 7
      %v1118 = vsub.s32 0, %v1117
      %v1119 = vrot.slane %v1114, %v1118
      %v1121 = vmul.f32 %v1106, %v1119
      %v1122 = vmul.f32 %v1107, %v1119
      %v1123 = vmul.f32 %v1108, %v1119
      %v1124 = vmul.f32 %v1109, %v1119
      %v1125 = vmul.f32 %v1110, %v1119
      %v1126 = vmul.f32 %v1111, %v1119
      %v1127 = vmul.f32 %v1112, %v1119
      %v1128 = vmul.f32 %v1113, %v1119
      %1129 = vadd.xlane.f32.xlu0 %v1121
      %v1130 = vpop.xlane.xlu0 %1129
      %1131 = vadd.xlane.f32.xlu0 %v1122
      %v1132 = vpop.xlane.xlu0 %1131
      %1133 = vadd.xlane.f32.xlu0 %v1123
      %v1134 = vpop.xlane.xlu0 %1133
      %1135 = vadd.xlane.f32.xlu0 %v1124
      %v1136 = vpop.xlane.xlu0 %1135
      %1137 = vadd.xlane.f32.xlu0 %v1125
      %v1138 = vpop.xlane.xlu0 %1137
      %1139 = vadd.xlane.f32.xlu0 %v1126
      %v1140 = vpop.xlane.xlu0 %1139
      %1141 = vadd.xlane.f32.xlu0 %v1127
      %v1142 = vpop.xlane.xlu0 %1141
      %1143 = vadd.xlane.f32.xlu0 %v1128
      %v1144 = vpop.xlane.xlu0 %1143
      %v1153 = vlaneseq
      %v1154 = vand.u32 %v1153, 127
      %v1155 = vlaneseq
      %v1156 = vshrl.u32 %v1155, 7
      %v1157 = vsub.s32 %v1154, %v1156
      %v1158 = vrot.slane %v1130, %v1157
      %v1159 = vadd.s32 %v1154, 4294967288
      %v1160 = vlaneseq
      %v1161 = vshrl.u32 %v1160, 7
      %v1162 = vsub.s32 %v1159, %v1161
      %v1163 = vrot.slane %v1132, %v1162
      %vm1164 = vcmask 130112
      %v1165 = vsel %vm1164, %v1163, %v1158
      %v1166 = vlaneseq
      %v1167 = vshrl.u32 %v1166, 7
      %v1168 = vsub.s32 %v1154, %v1167
      %v1169 = vrot.slane %v1134, %v1168
      %v1170 = vlaneseq
      %v1171 = vshrl.u32 %v1170, 7
      %v1172 = vsub.s32 %v1159, %v1171
      %v1173 = vrot.slane %v1136, %v1172
      %v1174 = vsel %vm1164, %v1173, %v1169
      %v1175 = vlaneseq
      %v1176 = vshrl.u32 %v1175, 7
      %v1177 = vsub.s32 %v1154, %v1176
      %v1178 = vrot.slane %v1138, %v1177
      %v1179 = vlaneseq
      %v1180 = vshrl.u32 %v1179, 7
      %v1181 = vsub.s32 %v1159, %v1180
      %v1182 = vrot.slane %v1140, %v1181
      %v1183 = vsel %vm1164, %v1182, %v1178
      %v1184 = vlaneseq
      %v1185 = vshrl.u32 %v1184, 7
      %v1186 = vsub.s32 %v1154, %v1185
      %v1187 = vrot.slane %v1142, %v1186
      %v1188 = vlaneseq
      %v1189 = vshrl.u32 %v1188, 7
      %v1190 = vsub.s32 %v1159, %v1189
      %v1191 = vrot.slane %v1144, %v1190
      %v1192 = vsel %vm1164, %v1191, %v1187
      %vm1193 = vcmask 1041409
      %v1194 = vsel %vm1193, %v1174, %v1165
      %vm1195 = vcmask 1042434
      %v1196 = vsel %vm1195, %v1183, %v1194
      %vm1197 = vcmask 1043459
      %v1198 = vsel %vm1197, %v1192, %v1196
      %vm1200 = vcmask 125952
      %v1201 = vsel %vm1200, %v1198, -inf
      %1202 = vmax.xlane.f32.xlu0 %v1201
      %v1203 = vpop.xlane.xlu0 %1202
      %v1205 = vlaneseq
      %v1206 = vshrl.u32 %v1205, 7
      %v1207 = vsub.s32 0, %v1206
      %v1208 = vrot.slane %v1203, %v1207
      %v1209 = vlaneseq
      %v1210 = vshrl.u32 %v1209, 7
      %v1211 = vsub.s32 1, %v1210
      %v1212 = vrot.slane %v1203, %v1211
      %v1213 = vlaneseq
      %v1214 = vshrl.u32 %v1213, 7
      %v1215 = vsub.s32 2, %v1214
      %v1216 = vrot.slane %v1203, %v1215
      %v1217 = vlaneseq
      %v1218 = vshrl.u32 %v1217, 7
      %v1219 = vsub.s32 3, %v1218
      %v1220 = vrot.slane %v1203, %v1219
      %v1225 = vsub.f32 %v1130, %v1208
      %v1226 = vsub.f32 %v1132, %v1208
      %v1227 = vsub.f32 %v1134, %v1212
      %v1228 = vsub.f32 %v1136, %v1212
      %v1229 = vsub.f32 %v1138, %v1216
      %v1230 = vsub.f32 %v1140, %v1216
      %v1231 = vsub.f32 %v1142, %v1220
      %v1232 = vsub.f32 %v1144, %v1220
      %v1233 = vmul.f32 %v1225, 1.442695
      %v1234 = vpow.pop %v1233
      %v1235 = vmul.f32 %v1226, 1.442695
      %v1236 = vpow.pop %v1235
      %v1237 = vmul.f32 %v1227, 1.442695
      %v1238 = vpow.pop %v1237
      %v1239 = vmul.f32 %v1228, 1.442695
      %v1240 = vpow.pop %v1239
      %v1241 = vmul.f32 %v1229, 1.442695
      %v1242 = vpow.pop %v1241
      %v1243 = vmul.f32 %v1230, 1.442695
      %v1244 = vpow.pop %v1243
      %v1245 = vmul.f32 %v1231, 1.442695
      %v1246 = vpow.pop %v1245
      %v1247 = vmul.f32 %v1232, 1.442695
      %v1248 = vpow.pop %v1247
      %1257 = vset.pattern.permute.xlu0 0
      %1258 = vperm.xlu0 %1257, %v1234
      %v1259 = vpop.permute.xlu0 %1258
      %1260 = vset.pattern.permute.xlu0 0
      %1261 = vperm.xlu0 %1260, %v1236
      %v1262 = vpop.permute.xlu0 %1261
      %1263 = vset.pattern.permute.xlu0 0
      %1264 = vperm.xlu0 %1263, %v1238
      %v1265 = vpop.permute.xlu0 %1264
      %1266 = vset.pattern.permute.xlu0 0
      %1267 = vperm.xlu0 %1266, %v1240
      %v1268 = vpop.permute.xlu0 %1267
      %1269 = vset.pattern.permute.xlu0 0
      %1270 = vperm.xlu0 %1269, %v1242
      %v1271 = vpop.permute.xlu0 %1270
      %1272 = vset.pattern.permute.xlu0 0
      %1273 = vperm.xlu0 %1272, %v1244
      %v1274 = vpop.permute.xlu0 %1273
      %1275 = vset.pattern.permute.xlu0 0
      %1276 = vperm.xlu0 %1275, %v1246
      %v1277 = vpop.permute.xlu0 %1276
      %1278 = vset.pattern.permute.xlu0 0
      %1279 = vperm.xlu0 %1278, %v1248
      %v1280 = vpop.permute.xlu0 %1279
      %v1281 = vlaneseq
      %v1282 = vshrl.u32 %v1281, 7
      %v1283 = vsub.s32 %v1154, %v1282
      %v1284 = vrot.slane %v1259, %v1283
      %v1285 = vlaneseq
      %v1286 = vshrl.u32 %v1285, 7
      %v1287 = vsub.s32 %v1159, %v1286
      %v1288 = vrot.slane %v1262, %v1287
      %v1289 = vsel %vm1164, %v1288, %v1284
      %v1290 = vlaneseq
      %v1291 = vshrl.u32 %v1290, 7
      %v1292 = vsub.s32 %v1154, %v1291
      %v1293 = vrot.slane %v1265, %v1292
      %v1294 = vlaneseq
      %v1295 = vshrl.u32 %v1294, 7
      %v1296 = vsub.s32 %v1159, %v1295
      %v1297 = vrot.slane %v1268, %v1296
      %v1298 = vsel %vm1164, %v1297, %v1293
      %v1299 = vlaneseq
      %v1300 = vshrl.u32 %v1299, 7
      %v1301 = vsub.s32 %v1154, %v1300
      %v1302 = vrot.slane %v1271, %v1301
      %v1303 = vlaneseq
      %v1304 = vshrl.u32 %v1303, 7
      %v1305 = vsub.s32 %v1159, %v1304
      %v1306 = vrot.slane %v1274, %v1305
      %v1307 = vsel %vm1164, %v1306, %v1302
      %v1308 = vlaneseq
      %v1309 = vshrl.u32 %v1308, 7
      %v1310 = vsub.s32 %v1154, %v1309
      %v1311 = vrot.slane %v1277, %v1310
      %v1312 = vlaneseq
      %v1313 = vshrl.u32 %v1312, 7
      %v1314 = vsub.s32 %v1159, %v1313
      %v1315 = vrot.slane %v1280, %v1314
      %v1316 = vsel %vm1164, %v1315, %v1311
      %v1317 = vsel %vm1193, %v1298, %v1289
      %v1318 = vsel %vm1195, %v1307, %v1317
      %v1319 = vsel %vm1197, %v1316, %v1318
      %v1321 = vsel %vm1200, %v1319, 0.0
      %1322 = vadd.xlane.f32.xlu0 %v1321
      %v1323 = vpop.xlane.xlu0 %1322
      %v1325 = vlaneseq
      %v1326 = vshrl.u32 %v1325, 7
      %v1327 = vsub.s32 0, %v1326
      %v1328 = vrot.slane %v1323, %v1327
      %v1329 = vlaneseq
      %v1330 = vshrl.u32 %v1329, 7
      %v1331 = vsub.s32 1, %v1330
      %v1332 = vrot.slane %v1323, %v1331
      %v1333 = vlaneseq
      %v1334 = vshrl.u32 %v1333, 7
      %v1335 = vsub.s32 2, %v1334
      %v1336 = vrot.slane %v1323, %v1335
      %v1337 = vlaneseq
      %v1338 = vshrl.u32 %v1337, 7
      %v1339 = vsub.s32 3, %v1338
      %v1340 = vrot.slane %v1323, %v1339
      %v1345 = vrcp.pop %v1328
      %v1346 = vmul.f32 %v1234, %v1345
      %v1347 = vmul.f32 %v1236, %v1345
      %v1348 = vrcp.pop %v1332
      %v1349 = vmul.f32 %v1238, %v1348
      %v1350 = vmul.f32 %v1240, %v1348
      %v1351 = vrcp.pop %v1336
      %v1352 = vmul.f32 %v1242, %v1351
      %v1353 = vmul.f32 %v1244, %v1351
      %v1354 = vrcp.pop %v1340
      %v1355 = vmul.f32 %v1246, %v1354
      %v1356 = vmul.f32 %v1248, %v1354
      %v1357 = vld [vmem:[%s1] sm:$0xff]
      %v1358 = vld [vmem:[%s1 + $0x8] sm:$0xff]
      %v1359 = vld [vmem:[%s1 + $0x10] sm:$0xff]
      %v1360 = vld [vmem:[%s1 + $0x18] sm:$0xff]
      %v1361 = vld [vmem:[%s1 + $0x20] sm:$0xff]
      %v1362 = vld [vmem:[%s1 + $0x28] sm:$0xff]
      %v1363 = vld [vmem:[%s1 + $0x30] sm:$0xff]
      %v1364 = vld [vmem:[%s1 + $0x38] sm:$0xff]
      %v1365 = vunpack.c.l.bf16 %v1357
      %v1366 = vunpack.c.h.bf16 %v1357
      %v1367 = vunpack.c.l.bf16 %v1358
      %v1368 = vunpack.c.h.bf16 %v1358
      %v1369 = vunpack.c.l.bf16 %v1359
      %v1370 = vunpack.c.h.bf16 %v1359
      %v1371 = vunpack.c.l.bf16 %v1360
      %v1372 = vunpack.c.h.bf16 %v1360
      %v1373 = vunpack.c.l.bf16 %v1361
      %v1374 = vunpack.c.h.bf16 %v1361
      %v1375 = vunpack.c.l.bf16 %v1362
      %v1376 = vunpack.c.h.bf16 %v1362
      %v1377 = vunpack.c.l.bf16 %v1363
      %v1378 = vunpack.c.h.bf16 %v1363
      %v1379 = vunpack.c.l.bf16 %v1364
      %v1380 = vunpack.c.h.bf16 %v1364
      %1382 = vset.pattern.permute.xlu0 0
      %1383 = vperm.xlu0 %1382, %v1346
      %v1384 = vpop.permute.xlu0 %1383
      %1387 = vset.pattern.permute.xlu0 0
      %1388 = vperm.xlu0 %1387, %v1347
      %v1389 = vpop.permute.xlu0 %1388
      %1392 = vset.pattern.permute.xlu0 0
      %1393 = vperm.xlu0 %1392, %v1349
      %v1394 = vpop.permute.xlu0 %1393
      %1397 = vset.pattern.permute.xlu0 0
      %1398 = vperm.xlu0 %1397, %v1350
      %v1399 = vpop.permute.xlu0 %1398
      %1402 = vset.pattern.permute.xlu0 0
      %1403 = vperm.xlu0 %1402, %v1352
      %v1404 = vpop.permute.xlu0 %1403
      %1407 = vset.pattern.permute.xlu0 0
      %1408 = vperm.xlu0 %1407, %v1353
      %v1409 = vpop.permute.xlu0 %1408
      %1412 = vset.pattern.permute.xlu0 0
      %1413 = vperm.xlu0 %1412, %v1355
      %v1414 = vpop.permute.xlu0 %1413
      %1417 = vset.pattern.permute.xlu0 0
      %1418 = vperm.xlu0 %1417, %v1356
      %v1419 = vpop.permute.xlu0 %1418
      %v1421 = vmul.f32 %v1365, %v1384
      %v1422 = vmul.f32 %v1366, %v1384
      %v1423 = vmul.f32 %v1367, %v1389
      %v1424 = vmul.f32 %v1368, %v1389
      %v1425 = vmul.f32 %v1369, %v1394
      %v1426 = vmul.f32 %v1370, %v1394
      %v1427 = vmul.f32 %v1371, %v1399
      %v1428 = vmul.f32 %v1372, %v1399
      %v1429 = vmul.f32 %v1373, %v1404
      %v1430 = vmul.f32 %v1374, %v1404
      %v1431 = vmul.f32 %v1375, %v1409
      %v1432 = vmul.f32 %v1376, %v1409
      %v1433 = vmul.f32 %v1377, %v1414
      %v1434 = vmul.f32 %v1378, %v1414
      %v1435 = vmul.f32 %v1379, %v1419
      %v1436 = vmul.f32 %v1380, %v1419
      %v1437 = vadd.f32 %v1421, %v1423
      %v1438 = vrot.slane %v1437, 4
      %v1439 = vadd.f32 %v1437, %v1438
      %v1440 = vrot.slane %v1439, 2
      %v1441 = vadd.f32 %v1439, %v1440
      %v1442 = vrot.slane %v1441, 1
      %v1443 = vadd.f32 %v1441, %v1442
      %v1444 = vadd.f32 %v1422, %v1424
      %v1445 = vrot.slane %v1444, 4
      %v1446 = vadd.f32 %v1444, %v1445
      %v1447 = vrot.slane %v1446, 2
      %v1448 = vadd.f32 %v1446, %v1447
      %v1449 = vrot.slane %v1448, 1
      %v1450 = vadd.f32 %v1448, %v1449
      %v1451 = vadd.f32 %v1425, %v1427
      %v1452 = vrot.slane %v1451, 4
      %v1453 = vadd.f32 %v1451, %v1452
      %v1454 = vrot.slane %v1453, 2
      %v1455 = vadd.f32 %v1453, %v1454
      %v1456 = vrot.slane %v1455, 1
      %v1457 = vadd.f32 %v1455, %v1456
      %v1458 = vadd.f32 %v1426, %v1428
      %v1459 = vrot.slane %v1458, 4
      %v1460 = vadd.f32 %v1458, %v1459
      %v1461 = vrot.slane %v1460, 2
      %v1462 = vadd.f32 %v1460, %v1461
      %v1463 = vrot.slane %v1462, 1
      %v1464 = vadd.f32 %v1462, %v1463
      %v1465 = vadd.f32 %v1429, %v1431
      %v1466 = vrot.slane %v1465, 4
      %v1467 = vadd.f32 %v1465, %v1466
      %v1468 = vrot.slane %v1467, 2
      %v1469 = vadd.f32 %v1467, %v1468
      %v1470 = vrot.slane %v1469, 1
      %v1471 = vadd.f32 %v1469, %v1470
      %v1472 = vadd.f32 %v1430, %v1432
      %v1473 = vrot.slane %v1472, 4
      %v1474 = vadd.f32 %v1472, %v1473
      %v1475 = vrot.slane %v1474, 2
      %v1476 = vadd.f32 %v1474, %v1475
      %v1477 = vrot.slane %v1476, 1
      %v1478 = vadd.f32 %v1476, %v1477
      %v1479 = vadd.f32 %v1433, %v1435
      %v1480 = vrot.slane %v1479, 4
      %v1481 = vadd.f32 %v1479, %v1480
      %v1482 = vrot.slane %v1481, 2
      %v1483 = vadd.f32 %v1481, %v1482
      %v1484 = vrot.slane %v1483, 1
      %v1485 = vadd.f32 %v1483, %v1484
      %v1486 = vadd.f32 %v1434, %v1436
      %v1487 = vrot.slane %v1486, 4
      %v1488 = vadd.f32 %v1486, %v1487
      %v1489 = vrot.slane %v1488, 2
      %v1490 = vadd.f32 %v1488, %v1489
      %v1491 = vrot.slane %v1490, 1
      %v1492 = vadd.f32 %v1490, %v1491
      %v1501 = vsel %vm1193, %v1457, %v1443
      %v1502 = vsel %vm1195, %v1471, %v1501
      %v1503 = vsel %vm1197, %v1485, %v1502
      %v1504 = vsel %vm1193, %v1464, %v1450
      %v1505 = vsel %vm1195, %v1478, %v1504
      %v1506 = vsel %vm1197, %v1492, %v1505
      %v1509 = vmul.f32 %v1042, %v1503
      %v1510 = vmul.f32 %v1044, %v1506
      %v1511 = vld [vmem:[%s455] sm:$0xff]
      %v1512 = vld [vmem:[%s455 + $0x8] sm:$0xff]
      %v1517 = vcombine.low %v948, %v987
      %v1518 = vcombine.low %v989, %v1028
      %v1521 = vadd.f32 %v1511, %v1517
      %v1522 = vadd.f32 %v1512, %v1518
      %v1523 = vpack.c.bf16 %v1509, %v1509
      %v1524 = vpack.c.bf16 %v1510, %v1510
      %v1525 = vld [vmem:[%s9] sm:$0xff]
      %v1526 = vld [vmem:[%s9 + $0x8] sm:$0xff]
      %v1527 = vld [vmem:[%s9 + $0x10] sm:$0xff]
      %v1528 = vld [vmem:[%s9 + $0x18] sm:$0xff]
      %v1529 = vld [vmem:[%s9 + $0x20] sm:$0xff]
      %v1530 = vld [vmem:[%s9 + $0x28] sm:$0xff]
      %v1531 = vld [vmem:[%s9 + $0x30] sm:$0xff]
      %v1532 = vld [vmem:[%s9 + $0x38] sm:$0xff]
      %v1533 = vld [vmem:[%s9 + $0x40] sm:$0xff]
      %v1534 = vld [vmem:[%s9 + $0x48] sm:$0xff]
      %v1535 = vld [vmem:[%s9 + $0x50] sm:$0xff]
      %v1536 = vld [vmem:[%s9 + $0x58] sm:$0xff]
      %v1537 = vld [vmem:[%s9 + $0x60] sm:$0xff]
      %v1538 = vld [vmem:[%s9 + $0x68] sm:$0xff]
      %v1539 = vld [vmem:[%s9 + $0x70] sm:$0xff]
      %v1540 = vld [vmem:[%s9 + $0x78] sm:$0xff]
      %v1541 = vld [vmem:[%s9 + $0x80] sm:$0xff]
      %v1542 = vld [vmem:[%s9 + $0x88] sm:$0xff]
      %v1543 = vld [vmem:[%s9 + $0x90] sm:$0xff]
      %v1544 = vld [vmem:[%s9 + $0x98] sm:$0xff]
      %v1545 = vld [vmem:[%s9 + $0xa0] sm:$0xff]
      %v1546 = vld [vmem:[%s9 + $0xa8] sm:$0xff]
      %v1547 = vld [vmem:[%s9 + $0xb0] sm:$0xff]
      %v1548 = vld [vmem:[%s9 + $0xb8] sm:$0xff]
      %v1549 = vld [vmem:[%s9 + $0xc0] sm:$0xff]
      %v1550 = vld [vmem:[%s9 + $0xc8] sm:$0xff]
      %v1551 = vld [vmem:[%s9 + $0xd0] sm:$0xff]
      %v1552 = vld [vmem:[%s9 + $0xd8] sm:$0xff]
      %v1553 = vld [vmem:[%s9 + $0xe0] sm:$0xff]
      %v1554 = vld [vmem:[%s9 + $0xe8] sm:$0xff]
      %v1555 = vld [vmem:[%s9 + $0xf0] sm:$0xff]
      %v1556 = vld [vmem:[%s9 + $0xf8] sm:$0xff]
      %v1557 = vld [vmem:[%s9 + $0x100] sm:$0xff]
      %v1558 = vld [vmem:[%s9 + $0x108] sm:$0xff]
      %v1559 = vld [vmem:[%s9 + $0x110] sm:$0xff]
      %v1560 = vld [vmem:[%s9 + $0x118] sm:$0xff]
      %v1561 = vld [vmem:[%s9 + $0x120] sm:$0xff]
      %v1562 = vld [vmem:[%s9 + $0x128] sm:$0xff]
      %v1563 = vld [vmem:[%s9 + $0x130] sm:$0xff]
      %v1564 = vld [vmem:[%s9 + $0x138] sm:$0xff]
      %v1565 = vld [vmem:[%s9 + $0x140] sm:$0xff]
      %v1566 = vld [vmem:[%s9 + $0x148] sm:$0xff]
      %v1567 = vld [vmem:[%s9 + $0x150] sm:$0xff]
      %v1568 = vld [vmem:[%s9 + $0x158] sm:$0xff]
      %v1569 = vld [vmem:[%s9 + $0x160] sm:$0xff]
      %v1570 = vld [vmem:[%s9 + $0x168] sm:$0xff]
      %v1571 = vld [vmem:[%s9 + $0x170] sm:$0xff]
      %v1572 = vld [vmem:[%s9 + $0x178] sm:$0xff]
      %v1573 = vld [vmem:[%s9 + $0x180] sm:$0xff]
      %v1574 = vld [vmem:[%s9 + $0x188] sm:$0xff]
      %v1575 = vld [vmem:[%s9 + $0x190] sm:$0xff]
      %v1576 = vld [vmem:[%s9 + $0x198] sm:$0xff]
      %v1577 = vld [vmem:[%s9 + $0x1a0] sm:$0xff]
      %v1578 = vld [vmem:[%s9 + $0x1a8] sm:$0xff]
      %v1579 = vld [vmem:[%s9 + $0x1b0] sm:$0xff]
      %v1580 = vld [vmem:[%s9 + $0x1b8] sm:$0xff]
      %v1581 = vld [vmem:[%s9 + $0x1c0] sm:$0xff]
      %v1582 = vld [vmem:[%s9 + $0x1c8] sm:$0xff]
      %v1583 = vld [vmem:[%s9 + $0x1d0] sm:$0xff]
      %v1584 = vld [vmem:[%s9 + $0x1d8] sm:$0xff]
      %v1585 = vld [vmem:[%s9 + $0x1e0] sm:$0xff]
      %v1586 = vld [vmem:[%s9 + $0x1e8] sm:$0xff]
      %v1587 = vld [vmem:[%s9 + $0x1f0] sm:$0xff]
      %v1588 = vld [vmem:[%s9 + $0x1f8] sm:$0xff]
      %v1653 = vunpack.c.l.b16 %v1525
      %v1654 = vunpack.c.h.b16 %v1525
      %v1655 = vunpack.c.l.b16 %v1526
      %v1656 = vunpack.c.h.b16 %v1526
      %v1657 = vunpack.c.l.b16 %v1527
      %v1658 = vunpack.c.h.b16 %v1527
      %v1659 = vunpack.c.l.b16 %v1528
      %v1660 = vunpack.c.h.b16 %v1528
      %v1661 = vunpack.c.l.b16 %v1529
      %v1662 = vunpack.c.h.b16 %v1529
      %v1663 = vunpack.c.l.b16 %v1530
      %v1664 = vunpack.c.h.b16 %v1530
      %v1665 = vunpack.c.l.b16 %v1531
      %v1666 = vunpack.c.h.b16 %v1531
      %v1667 = vunpack.c.l.b16 %v1532
      %v1668 = vunpack.c.h.b16 %v1532
      %v1669 = vunpack.c.l.b16 %v1533
      %v1670 = vunpack.c.h.b16 %v1533
      %v1671 = vunpack.c.l.b16 %v1534
      %v1672 = vunpack.c.h.b16 %v1534
      %v1673 = vunpack.c.l.b16 %v1535
      %v1674 = vunpack.c.h.b16 %v1535
      %v1675 = vunpack.c.l.b16 %v1536
      %v1676 = vunpack.c.h.b16 %v1536
      %v1677 = vunpack.c.l.b16 %v1537
      %v1678 = vunpack.c.h.b16 %v1537
      %v1679 = vunpack.c.l.b16 %v1538
      %v1680 = vunpack.c.h.b16 %v1538
      %v1681 = vunpack.c.l.b16 %v1539
      %v1682 = vunpack.c.h.b16 %v1539
      %v1683 = vunpack.c.l.b16 %v1540
      %v1684 = vunpack.c.h.b16 %v1540
      %v1685 = vunpack.c.l.b16 %v1541
      %v1686 = vunpack.c.h.b16 %v1541
      %v1687 = vunpack.c.l.b16 %v1542
      %v1688 = vunpack.c.h.b16 %v1542
      %v1689 = vunpack.c.l.b16 %v1543
      %v1690 = vunpack.c.h.b16 %v1543
      %v1691 = vunpack.c.l.b16 %v1544
      %v1692 = vunpack.c.h.b16 %v1544
      %v1693 = vunpack.c.l.b16 %v1545
      %v1694 = vunpack.c.h.b16 %v1545
      %v1695 = vunpack.c.l.b16 %v1546
      %v1696 = vunpack.c.h.b16 %v1546
      %v1697 = vunpack.c.l.b16 %v1547
      %v1698 = vunpack.c.h.b16 %v1547
      %v1699 = vunpack.c.l.b16 %v1548
      %v1700 = vunpack.c.h.b16 %v1548
      %v1701 = vunpack.c.l.b16 %v1549
      %v1702 = vunpack.c.h.b16 %v1549
      %v1703 = vunpack.c.l.b16 %v1550
      %v1704 = vunpack.c.h.b16 %v1550
      %v1705 = vunpack.c.l.b16 %v1551
      %v1706 = vunpack.c.h.b16 %v1551
      %v1707 = vunpack.c.l.b16 %v1552
      %v1708 = vunpack.c.h.b16 %v1552
      %v1709 = vunpack.c.l.b16 %v1553
      %v1710 = vunpack.c.h.b16 %v1553
      %v1711 = vunpack.c.l.b16 %v1554
      %v1712 = vunpack.c.h.b16 %v1554
      %v1713 = vunpack.c.l.b16 %v1555
      %v1714 = vunpack.c.h.b16 %v1555
      %v1715 = vunpack.c.l.b16 %v1556
      %v1716 = vunpack.c.h.b16 %v1556
      %v1717 = vunpack.c.l.b16 %v1557
      %v1718 = vunpack.c.h.b16 %v1557
      %v1719 = vunpack.c.l.b16 %v1558
      %v1720 = vunpack.c.h.b16 %v1558
      %v1721 = vunpack.c.l.b16 %v1559
      %v1722 = vunpack.c.h.b16 %v1559
      %v1723 = vunpack.c.l.b16 %v1560
      %v1724 = vunpack.c.h.b16 %v1560
      %v1725 = vunpack.c.l.b16 %v1561
      %v1726 = vunpack.c.h.b16 %v1561
      %v1727 = vunpack.c.l.b16 %v1562
      %v1728 = vunpack.c.h.b16 %v1562
      %v1729 = vunpack.c.l.b16 %v1563
      %v1730 = vunpack.c.h.b16 %v1563
      %v1731 = vunpack.c.l.b16 %v1564
      %v1732 = vunpack.c.h.b16 %v1564
      %v1733 = vunpack.c.l.b16 %v1565
      %v1734 = vunpack.c.h.b16 %v1565
      %v1735 = vunpack.c.l.b16 %v1566
      %v1736 = vunpack.c.h.b16 %v1566
      %v1737 = vunpack.c.l.b16 %v1567
      %v1738 = vunpack.c.h.b16 %v1567
      %v1739 = vunpack.c.l.b16 %v1568
      %v1740 = vunpack.c.h.b16 %v1568
      %v1741 = vunpack.c.l.b16 %v1569
      %v1742 = vunpack.c.h.b16 %v1569
      %v1743 = vunpack.c.l.b16 %v1570
      %v1744 = vunpack.c.h.b16 %v1570
      %v1745 = vunpack.c.l.b16 %v1571
      %v1746 = vunpack.c.h.b16 %v1571
      %v1747 = vunpack.c.l.b16 %v1572
      %v1748 = vunpack.c.h.b16 %v1572
      %v1749 = vunpack.c.l.b16 %v1573
      %v1750 = vunpack.c.h.b16 %v1573
      %v1751 = vunpack.c.l.b16 %v1574
      %v1752 = vunpack.c.h.b16 %v1574
      %v1753 = vunpack.c.l.b16 %v1575
      %v1754 = vunpack.c.h.b16 %v1575
      %v1755 = vunpack.c.l.b16 %v1576
      %v1756 = vunpack.c.h.b16 %v1576
      %v1757 = vunpack.c.l.b16 %v1577
      %v1758 = vunpack.c.h.b16 %v1577
      %v1759 = vunpack.c.l.b16 %v1578
      %v1760 = vunpack.c.h.b16 %v1578
      %v1761 = vunpack.c.l.b16 %v1579
      %v1762 = vunpack.c.h.b16 %v1579
      %v1763 = vunpack.c.l.b16 %v1580
      %v1764 = vunpack.c.h.b16 %v1580
      %v1765 = vunpack.c.l.b16 %v1581
      %v1766 = vunpack.c.h.b16 %v1581
      %v1767 = vunpack.c.l.b16 %v1582
      %v1768 = vunpack.c.h.b16 %v1582
      %v1769 = vunpack.c.l.b16 %v1583
      %v1770 = vunpack.c.h.b16 %v1583
      %v1771 = vunpack.c.l.b16 %v1584
      %v1772 = vunpack.c.h.b16 %v1584
      %v1773 = vunpack.c.l.b16 %v1585
      %v1774 = vunpack.c.h.b16 %v1585
      %v1775 = vunpack.c.l.b16 %v1586
      %v1776 = vunpack.c.h.b16 %v1586
      %v1777 = vunpack.c.l.b16 %v1587
      %v1778 = vunpack.c.h.b16 %v1587
      %v1779 = vunpack.c.l.b16 %v1588
      %v1780 = vunpack.c.h.b16 %v1588
      %v1781 = vpack.c.b16 %v1657, %v1653
      %v1782 = vpack.c.b16 %v1658, %v1654
      %v1783 = vpack.c.b16 %v1659, %v1655
      %v1784 = vpack.c.b16 %v1660, %v1656
      %v1785 = vpack.c.b16 %v1665, %v1661
      %v1786 = vpack.c.b16 %v1666, %v1662
      %v1787 = vpack.c.b16 %v1667, %v1663
      %v1788 = vpack.c.b16 %v1668, %v1664
      %v1789 = vpack.c.b16 %v1673, %v1669
      %v1790 = vpack.c.b16 %v1674, %v1670
      %v1791 = vpack.c.b16 %v1675, %v1671
      %v1792 = vpack.c.b16 %v1676, %v1672
      %v1793 = vpack.c.b16 %v1681, %v1677
      %v1794 = vpack.c.b16 %v1682, %v1678
      %v1795 = vpack.c.b16 %v1683, %v1679
      %v1796 = vpack.c.b16 %v1684, %v1680
      %v1797 = vpack.c.b16 %v1689, %v1685
      %v1798 = vpack.c.b16 %v1690, %v1686
      %v1799 = vpack.c.b16 %v1691, %v1687
      %v1800 = vpack.c.b16 %v1692, %v1688
      %v1801 = vpack.c.b16 %v1697, %v1693
      %v1802 = vpack.c.b16 %v1698, %v1694
      %v1803 = vpack.c.b16 %v1699, %v1695
      %v1804 = vpack.c.b16 %v1700, %v1696
      %v1805 = vpack.c.b16 %v1705, %v1701
      %v1806 = vpack.c.b16 %v1706, %v1702
      %v1807 = vpack.c.b16 %v1707, %v1703
      %v1808 = vpack.c.b16 %v1708, %v1704
      %v1809 = vpack.c.b16 %v1713, %v1709
      %v1810 = vpack.c.b16 %v1714, %v1710
      %v1811 = vpack.c.b16 %v1715, %v1711
      %v1812 = vpack.c.b16 %v1716, %v1712
      %v1813 = vpack.c.b16 %v1721, %v1717
      %v1814 = vpack.c.b16 %v1722, %v1718
      %v1815 = vpack.c.b16 %v1723, %v1719
      %v1816 = vpack.c.b16 %v1724, %v1720
      %v1817 = vpack.c.b16 %v1729, %v1725
      %v1818 = vpack.c.b16 %v1730, %v1726
      %v1819 = vpack.c.b16 %v1731, %v1727
      %v1820 = vpack.c.b16 %v1732, %v1728
      %v1821 = vpack.c.b16 %v1737, %v1733
      %v1822 = vpack.c.b16 %v1738, %v1734
      %v1823 = vpack.c.b16 %v1739, %v1735
      %v1824 = vpack.c.b16 %v1740, %v1736
      %v1825 = vpack.c.b16 %v1745, %v1741
      %v1826 = vpack.c.b16 %v1746, %v1742
      %v1827 = vpack.c.b16 %v1747, %v1743
      %v1828 = vpack.c.b16 %v1748, %v1744
      %v1829 = vpack.c.b16 %v1753, %v1749
      %v1830 = vpack.c.b16 %v1754, %v1750
      %v1831 = vpack.c.b16 %v1755, %v1751
      %v1832 = vpack.c.b16 %v1756, %v1752
      %v1833 = vpack.c.b16 %v1761, %v1757
      %v1834 = vpack.c.b16 %v1762, %v1758
      %v1835 = vpack.c.b16 %v1763, %v1759
      %v1836 = vpack.c.b16 %v1764, %v1760
      %v1837 = vpack.c.b16 %v1769, %v1765
      %v1838 = vpack.c.b16 %v1770, %v1766
      %v1839 = vpack.c.b16 %v1771, %v1767
      %v1840 = vpack.c.b16 %v1772, %v1768
      %v1841 = vpack.c.b16 %v1777, %v1773
      %v1842 = vpack.c.b16 %v1778, %v1774
      %v1843 = vpack.c.b16 %v1779, %v1775
      %v1844 = vpack.c.b16 %v1780, %v1776
      %1909 = vmatprep.subr.bf16.mxu0 %v1782
      %1910 = vmatpush1.bf16.msra.mxu0 %v1781
      %1911 = vmatprep.subr.bf16.mxu0 %v1786
      %1912 = vmatpush1.bf16.msra.mxu0 %v1785
      %1913 = vmatprep.subr.bf16.mxu0 %v1790
      %1914 = vmatpush1.bf16.msra.mxu0 %v1789
      %1915 = vmatprep.subr.bf16.mxu0 %v1794
      %1916 = vmatpush1.bf16.msra.mxu0 %v1793
      %1917 = vmatprep.subr.bf16.mxu0 %v1798
      %1918 = vmatpush1.bf16.msra.mxu0 %v1797
      %1919 = vmatprep.subr.bf16.mxu0 %v1802
      %1920 = vmatpush1.bf16.msra.mxu0 %v1801
      %1921 = vmatprep.subr.bf16.mxu0 %v1806
      %1922 = vmatpush1.bf16.msra.mxu0 %v1805
      %1923 = vmatprep.subr.bf16.mxu0 %v1810
      %1924 = vmatpush1.bf16.msra.mxu0 %v1809
      %1925 = vmatprep.subr.bf16.mxu0 %v1814
      %1926 = vmatpush1.bf16.msra.mxu0 %v1813
      %1927 = vmatprep.subr.bf16.mxu0 %v1818
      %1928 = vmatpush1.bf16.msra.mxu0 %v1817
      %1929 = vmatprep.subr.bf16.mxu0 %v1822
      %1930 = vmatpush1.bf16.msra.mxu0 %v1821
      %1931 = vmatprep.subr.bf16.mxu0 %v1826
      %1932 = vmatpush1.bf16.msra.mxu0 %v1825
      %1933 = vmatprep.subr.bf16.mxu0 %v1830
      %1934 = vmatpush1.bf16.msra.mxu0 %v1829
      %1935 = vmatprep.subr.bf16.mxu0 %v1834
      %1936 = vmatpush1.bf16.msra.mxu0 %v1833
      %1937 = vmatprep.subr.bf16.mxu0 %v1838
      %1938 = vmatpush1.bf16.msra.mxu0 %v1837
      %1939 = vmatprep.subr.bf16.mxu0 %v1842
      %1940 = vmatpush1.bf16.msra.mxu0 %v1841
      %1941 = vmatprep.mubr.bf16.mxu0 %v1524
      %1942 = vmatmul.mubr.bf16.gmra.mrb[0].mxu0 %v1523
      %v1943 = vpop.f32.mrb[0].mxu0
      %v1944 = vadd.f32 0.0, %v1943
      %v1945 = vpop.f32.mrb[0].mxu0
      %v1946 = vadd.f32 0.0, %v1945
      %v1947 = vpop.f32.mrb[0].mxu0
      %v1948 = vpop.f32.mrb[0].mxu0
      %1949 = vdwg.mxu0
      %1950 = vmatprep.subr.bf16.mxu0 %v1784
      %1951 = vmatpush1.bf16.msra.mxu0 %v1783
      %1952 = vmatprep.subr.bf16.mxu0 %v1788
      %1953 = vmatpush1.bf16.msra.mxu0 %v1787
      %1954 = vmatprep.subr.bf16.mxu0 %v1792
      %1955 = vmatpush1.bf16.msra.mxu0 %v1791
      %1956 = vmatprep.subr.bf16.mxu0 %v1796
      %1957 = vmatpush1.bf16.msra.mxu0 %v1795
      %1958 = vmatprep.subr.bf16.mxu0 %v1800
      %1959 = vmatpush1.bf16.msra.mxu0 %v1799
      %1960 = vmatprep.subr.bf16.mxu0 %v1804
      %1961 = vmatpush1.bf16.msra.mxu0 %v1803
      %1962 = vmatprep.subr.bf16.mxu0 %v1808
      %1963 = vmatpush1.bf16.msra.mxu0 %v1807
      %1964 = vmatprep.subr.bf16.mxu0 %v1812
      %1965 = vmatpush1.bf16.msra.mxu0 %v1811
      %1966 = vmatprep.subr.bf16.mxu0 %v1816
      %1967 = vmatpush1.bf16.msra.mxu0 %v1815
      %1968 = vmatprep.subr.bf16.mxu0 %v1820
      %1969 = vmatpush1.bf16.msra.mxu0 %v1819
      %1970 = vmatprep.subr.bf16.mxu0 %v1824
      %1971 = vmatpush1.bf16.msra.mxu0 %v1823
      %1972 = vmatprep.subr.bf16.mxu0 %v1828
      %1973 = vmatpush1.bf16.msra.mxu0 %v1827
      %1974 = vmatprep.subr.bf16.mxu0 %v1832
      %1975 = vmatpush1.bf16.msra.mxu0 %v1831
      %1976 = vmatprep.subr.bf16.mxu0 %v1836
      %1977 = vmatpush1.bf16.msra.mxu0 %v1835
      %1978 = vmatprep.subr.bf16.mxu0 %v1840
      %1979 = vmatpush1.bf16.msra.mxu0 %v1839
      %1980 = vmatprep.subr.bf16.mxu0 %v1844
      %1981 = vmatpush1.bf16.msra.mxu0 %v1843
      %1982 = vmatprep.mubr.bf16.mxu0 %v1524
      %1983 = vmatmul.mubr.bf16.gmra.mrb[0].mxu0 %v1523
      %v1984 = vpop.f32.mrb[0].mxu0
      %v1985 = vadd.f32 0.0, %v1984
      %v1986 = vpop.f32.mrb[0].mxu0
      %v1987 = vadd.f32 0.0, %v1986
      %v1988 = vpop.f32.mrb[0].mxu0
      %v1989 = vpop.f32.mrb[0].mxu0
      %1990 = vdwg.mxu0
      %v1995 = vcombine.low %v1944, %v1946
      %v1996 = vcombine.low %v1985, %v1987
      %v1999 = vadd.f32 %v1521, %v1995
      %v2000 = vadd.f32 %v1522, %v1996
      %v2001 = vxor.u32 %v1999, 2147483648
      %v2002 = vmul.f32 %v2001, 1.442695
      %v2003 = vpow.pop %v2002
      %v2004 = vadd.f32 %v2003, 1.0
      %v2005 = vrcp.pop %v2004
      %v2006 = vmul.f32 1.0, %v2005
      %v2008 = vrot.slane %v1999, 4
      %v2010 = vxor.u32 %v2008, 2147483648
      %v2011 = vmul.f32 %v2010, 1.442695
      %v2012 = vpow.pop %v2011
      %v2013 = vadd.f32 %v2012, 1.0
      %v2014 = vrcp.pop %v2013
      %v2015 = vmul.f32 1.0, %v2014
      %v2016 = vtanh.pop %v2000
      %v2018 = vrot.slane %v2000, 4
      %v2020 = vxor.u32 %v2018, 2147483648
      %v2021 = vmul.f32 %v2020, 1.442695
      %v2022 = vpow.pop %v2021
      %v2023 = vadd.f32 %v2022, 1.0
      %v2024 = vrcp.pop %v2023
      %v2025 = vmul.f32 1.0, %v2024
      %v2026 = vmul.f32 %v2015, %v479
      %v2027 = vmul.f32 %v2006, %v2016
      %v2028 = vadd.f32 %v2026, %v2027
      %v2029 = vtanh.pop %v2028
      %v2030 = vmul.f32 %v2025, %v2029
      %v2031 = vpack.c.bf16 %v2030, %v2030
      %v2032 = vld [vmem:[%s10] sm:$0xff]
      %v2033 = vld [vmem:[%s10 + $0x8] sm:$0xff]
      %v2034 = vld [vmem:[%s10 + $0x10] sm:$0xff]
      %v2035 = vld [vmem:[%s10 + $0x18] sm:$0xff]
      %v2036 = vld [vmem:[%s10 + $0x20] sm:$0xff]
      %v2037 = vld [vmem:[%s10 + $0x28] sm:$0xff]
      %v2038 = vld [vmem:[%s10 + $0x30] sm:$0xff]
      %v2039 = vld [vmem:[%s10 + $0x38] sm:$0xff]
      %v2040 = vld [vmem:[%s10 + $0x40] sm:$0xff]
      %v2041 = vld [vmem:[%s10 + $0x48] sm:$0xff]
      %v2042 = vld [vmem:[%s10 + $0x50] sm:$0xff]
      %v2043 = vld [vmem:[%s10 + $0x58] sm:$0xff]
      %v2044 = vld [vmem:[%s10 + $0x60] sm:$0xff]
      %v2045 = vld [vmem:[%s10 + $0x68] sm:$0xff]
      %v2046 = vld [vmem:[%s10 + $0x70] sm:$0xff]
      %v2047 = vld [vmem:[%s10 + $0x78] sm:$0xff]
      %v2048 = vld [vmem:[%s10 + $0x80] sm:$0xff]
      %v2049 = vld [vmem:[%s10 + $0x88] sm:$0xff]
      %v2050 = vld [vmem:[%s10 + $0x90] sm:$0xff]
      %v2051 = vld [vmem:[%s10 + $0x98] sm:$0xff]
      %v2052 = vld [vmem:[%s10 + $0xa0] sm:$0xff]
      %v2053 = vld [vmem:[%s10 + $0xa8] sm:$0xff]
      %v2054 = vld [vmem:[%s10 + $0xb0] sm:$0xff]
      %v2055 = vld [vmem:[%s10 + $0xb8] sm:$0xff]
      %v2056 = vld [vmem:[%s10 + $0xc0] sm:$0xff]
      %v2057 = vld [vmem:[%s10 + $0xc8] sm:$0xff]
      %v2058 = vld [vmem:[%s10 + $0xd0] sm:$0xff]
      %v2059 = vld [vmem:[%s10 + $0xd8] sm:$0xff]
      %v2060 = vld [vmem:[%s10 + $0xe0] sm:$0xff]
      %v2061 = vld [vmem:[%s10 + $0xe8] sm:$0xff]
      %v2062 = vld [vmem:[%s10 + $0xf0] sm:$0xff]
      %v2063 = vld [vmem:[%s10 + $0xf8] sm:$0xff]
      %v2064 = vld [vmem:[%s11] sm:$0xf]
      %v2066 = vlaneseq
      %v2067 = vshrl.u32 %v2066, 7
      %v2068 = vsub.s32 0, %v2067
      %v2069 = vrot.slane %v2064, %v2068
      %v2070 = vlaneseq
      %v2071 = vshrl.u32 %v2070, 7
      %v2072 = vsub.s32 1, %v2071
      %v2073 = vrot.slane %v2064, %v2072
      %v2074 = vlaneseq
      %v2075 = vshrl.u32 %v2074, 7
      %v2076 = vsub.s32 2, %v2075
      %v2077 = vrot.slane %v2064, %v2076
      %v2078 = vlaneseq
      %v2079 = vshrl.u32 %v2078, 7
      %v2080 = vsub.s32 3, %v2079
      %v2081 = vrot.slane %v2064, %v2080
      %v2118 = vunpack.c.l.b16 %v2032
      %v2119 = vunpack.c.h.b16 %v2032
      %v2120 = vunpack.c.l.b16 %v2033
      %v2121 = vunpack.c.h.b16 %v2033
      %v2122 = vunpack.c.l.b16 %v2034
      %v2123 = vunpack.c.h.b16 %v2034
      %v2124 = vunpack.c.l.b16 %v2035
      %v2125 = vunpack.c.h.b16 %v2035
      %v2126 = vunpack.c.l.b16 %v2036
      %v2127 = vunpack.c.h.b16 %v2036
      %v2128 = vunpack.c.l.b16 %v2037
      %v2129 = vunpack.c.h.b16 %v2037
      %v2130 = vunpack.c.l.b16 %v2038
      %v2131 = vunpack.c.h.b16 %v2038
      %v2132 = vunpack.c.l.b16 %v2039
      %v2133 = vunpack.c.h.b16 %v2039
      %v2134 = vunpack.c.l.b16 %v2040
      %v2135 = vunpack.c.h.b16 %v2040
      %v2136 = vunpack.c.l.b16 %v2041
      %v2137 = vunpack.c.h.b16 %v2041
      %v2138 = vunpack.c.l.b16 %v2042
      %v2139 = vunpack.c.h.b16 %v2042
      %v2140 = vunpack.c.l.b16 %v2043
      %v2141 = vunpack.c.h.b16 %v2043
      %v2142 = vunpack.c.l.b16 %v2044
      %v2143 = vunpack.c.h.b16 %v2044
      %v2144 = vunpack.c.l.b16 %v2045
      %v2145 = vunpack.c.h.b16 %v2045
      %v2146 = vunpack.c.l.b16 %v2046
      %v2147 = vunpack.c.h.b16 %v2046
      %v2148 = vunpack.c.l.b16 %v2047
      %v2149 = vunpack.c.h.b16 %v2047
      %v2150 = vunpack.c.l.b16 %v2048
      %v2151 = vunpack.c.h.b16 %v2048
      %v2152 = vunpack.c.l.b16 %v2049
      %v2153 = vunpack.c.h.b16 %v2049
      %v2154 = vunpack.c.l.b16 %v2050
      %v2155 = vunpack.c.h.b16 %v2050
      %v2156 = vunpack.c.l.b16 %v2051
      %v2157 = vunpack.c.h.b16 %v2051
      %v2158 = vunpack.c.l.b16 %v2052
      %v2159 = vunpack.c.h.b16 %v2052
      %v2160 = vunpack.c.l.b16 %v2053
      %v2161 = vunpack.c.h.b16 %v2053
      %v2162 = vunpack.c.l.b16 %v2054
      %v2163 = vunpack.c.h.b16 %v2054
      %v2164 = vunpack.c.l.b16 %v2055
      %v2165 = vunpack.c.h.b16 %v2055
      %v2166 = vunpack.c.l.b16 %v2056
      %v2167 = vunpack.c.h.b16 %v2056
      %v2168 = vunpack.c.l.b16 %v2057
      %v2169 = vunpack.c.h.b16 %v2057
      %v2170 = vunpack.c.l.b16 %v2058
      %v2171 = vunpack.c.h.b16 %v2058
      %v2172 = vunpack.c.l.b16 %v2059
      %v2173 = vunpack.c.h.b16 %v2059
      %v2174 = vunpack.c.l.b16 %v2060
      %v2175 = vunpack.c.h.b16 %v2060
      %v2176 = vunpack.c.l.b16 %v2061
      %v2177 = vunpack.c.h.b16 %v2061
      %v2178 = vunpack.c.l.b16 %v2062
      %v2179 = vunpack.c.h.b16 %v2062
      %v2180 = vunpack.c.l.b16 %v2063
      %v2181 = vunpack.c.h.b16 %v2063
      %v2182 = vpack.c.b16 %v2122, %v2118
      %v2183 = vpack.c.b16 %v2123, %v2119
      %v2184 = vpack.c.b16 %v2124, %v2120
      %v2185 = vpack.c.b16 %v2125, %v2121
      %v2186 = vpack.c.b16 %v2130, %v2126
      %v2187 = vpack.c.b16 %v2131, %v2127
      %v2188 = vpack.c.b16 %v2132, %v2128
      %v2189 = vpack.c.b16 %v2133, %v2129
      %v2190 = vpack.c.b16 %v2138, %v2134
      %v2191 = vpack.c.b16 %v2139, %v2135
      %v2192 = vpack.c.b16 %v2140, %v2136
      %v2193 = vpack.c.b16 %v2141, %v2137
      %v2194 = vpack.c.b16 %v2146, %v2142
      %v2195 = vpack.c.b16 %v2147, %v2143
      %v2196 = vpack.c.b16 %v2148, %v2144
      %v2197 = vpack.c.b16 %v2149, %v2145
      %v2198 = vpack.c.b16 %v2154, %v2150
      %v2199 = vpack.c.b16 %v2155, %v2151
      %v2200 = vpack.c.b16 %v2156, %v2152
      %v2201 = vpack.c.b16 %v2157, %v2153
      %v2202 = vpack.c.b16 %v2162, %v2158
      %v2203 = vpack.c.b16 %v2163, %v2159
      %v2204 = vpack.c.b16 %v2164, %v2160
      %v2205 = vpack.c.b16 %v2165, %v2161
      %v2206 = vpack.c.b16 %v2170, %v2166
      %v2207 = vpack.c.b16 %v2171, %v2167
      %v2208 = vpack.c.b16 %v2172, %v2168
      %v2209 = vpack.c.b16 %v2173, %v2169
      %v2210 = vpack.c.b16 %v2178, %v2174
      %v2211 = vpack.c.b16 %v2179, %v2175
      %v2212 = vpack.c.b16 %v2180, %v2176
      %v2213 = vpack.c.b16 %v2181, %v2177
      %2246 = vmatprep.subr.bf16.mxu0 %v2183
      %2247 = vmatpush1.bf16.msra.mxu0 %v2182
      %2248 = vmatprep.subr.bf16.mxu0 %v2187
      %2249 = vmatpush1.bf16.msra.mxu0 %v2186
      %2250 = vmatprep.subr.bf16.mxu0 %v2191
      %2251 = vmatpush1.bf16.msra.mxu0 %v2190
      %2252 = vmatprep.subr.bf16.mxu0 %v2195
      %2253 = vmatpush1.bf16.msra.mxu0 %v2194
      %2254 = vmatprep.subr.bf16.mxu0 %v2199
      %2255 = vmatpush1.bf16.msra.mxu0 %v2198
      %2256 = vmatprep.subr.bf16.mxu0 %v2203
      %2257 = vmatpush1.bf16.msra.mxu0 %v2202
      %2258 = vmatprep.subr.bf16.mxu0 %v2207
      %2259 = vmatpush1.bf16.msra.mxu0 %v2206
      %2260 = vmatprep.subr.bf16.mxu0 %v2211
      %2261 = vmatpush1.bf16.msra.mxu0 %v2210
      %2262 = vmatprep.subr.bf16.mxu0 0
      %2263 = vmatpush1.bf16.msra.mxu0 0
      %2264 = vmatprep.subr.bf16.mxu0 0
      %2265 = vmatpush1.bf16.msra.mxu0 0
      %2266 = vmatprep.subr.bf16.mxu0 0
      %2267 = vmatpush1.bf16.msra.mxu0 0
      %2268 = vmatprep.subr.bf16.mxu0 0
      %2269 = vmatpush1.bf16.msra.mxu0 0
      %2270 = vmatprep.subr.bf16.mxu0 0
      %2271 = vmatpush1.bf16.msra.mxu0 0
      %2272 = vmatprep.subr.bf16.mxu0 0
      %2273 = vmatpush1.bf16.msra.mxu0 0
      %2274 = vmatprep.subr.bf16.mxu0 0
      %2275 = vmatpush1.bf16.msra.mxu0 0
      %2276 = vmatprep.subr.bf16.mxu0 0
      %2277 = vmatpush1.bf16.msra.mxu0 0
      %2278 = vmatprep.mubr.bf16.mxu0 0
      %2279 = vmatmul.mubr.bf16.gmra.mrb[0].mxu0 %v2031
      %v2280 = vpop.f32.mrb[0].mxu0
      %v2281 = vadd.f32 %v2069, %v2280
      %v2282 = vpop.f32.mrb[0].mxu0
      %v2283 = vadd.f32 %v2073, %v2282
      %v2284 = vpop.f32.mrb[0].mxu0
      %v2285 = vpop.f32.mrb[0].mxu0
      %2286 = vdwg.mxu0
      %2287 = vmatprep.subr.bf16.mxu0 %v2185
      %2288 = vmatpush1.bf16.msra.mxu0 %v2184
      %2289 = vmatprep.subr.bf16.mxu0 %v2189
      %2290 = vmatpush1.bf16.msra.mxu0 %v2188
      %2291 = vmatprep.subr.bf16.mxu0 %v2193
      %2292 = vmatpush1.bf16.msra.mxu0 %v2192
      %2293 = vmatprep.subr.bf16.mxu0 %v2197
      %2294 = vmatpush1.bf16.msra.mxu0 %v2196
      %2295 = vmatprep.subr.bf16.mxu0 %v2201
      %2296 = vmatpush1.bf16.msra.mxu0 %v2200
      %2297 = vmatprep.subr.bf16.mxu0 %v2205
      %2298 = vmatpush1.bf16.msra.mxu0 %v2204
      %2299 = vmatprep.subr.bf16.mxu0 %v2209
      %2300 = vmatpush1.bf16.msra.mxu0 %v2208
      %2301 = vmatprep.subr.bf16.mxu0 %v2213
      %2302 = vmatpush1.bf16.msra.mxu0 %v2212
      %2303 = vmatprep.subr.bf16.mxu0 0
      %2304 = vmatpush1.bf16.msra.mxu0 0
      %2305 = vmatprep.subr.bf16.mxu0 0
      %2306 = vmatpush1.bf16.msra.mxu0 0
      %2307 = vmatprep.subr.bf16.mxu0 0
      %2308 = vmatpush1.bf16.msra.mxu0 0
      %2309 = vmatprep.subr.bf16.mxu0 0
      %2310 = vmatpush1.bf16.msra.mxu0 0
      %2311 = vmatprep.subr.bf16.mxu0 0
      %2312 = vmatpush1.bf16.msra.mxu0 0
      %2313 = vmatprep.subr.bf16.mxu0 0
      %2314 = vmatpush1.bf16.msra.mxu0 0
      %2315 = vmatprep.subr.bf16.mxu0 0
      %2316 = vmatpush1.bf16.msra.mxu0 0
      %2317 = vmatprep.subr.bf16.mxu0 0
      %2318 = vmatpush1.bf16.msra.mxu0 0
      %2319 = vmatprep.mubr.bf16.mxu0 0
      %2320 = vmatmul.mubr.bf16.gmra.mrb[0].mxu0 %v2031
      %v2321 = vpop.f32.mrb[0].mxu0
      %v2322 = vadd.f32 %v2077, %v2321
      %v2323 = vpop.f32.mrb[0].mxu0
      %v2324 = vadd.f32 %v2081, %v2323
      %v2325 = vpop.f32.mrb[0].mxu0
      %v2326 = vpop.f32.mrb[0].mxu0
      %2327 = vdwg.mxu0
      %v2328 = vld [vmem:[%s459] sm:$0xf]
      %2330 = vset.pattern.permute.xlu0 0
      %2331 = vperm.xlu0 %2330, %v2328
      %v2332 = vpop.permute.xlu0 %2331
      %v2334 = vmul.f32 %v2281, %v2332
      %v2335 = vmul.f32 %v2283, %v2332
      %v2336 = vmul.f32 %v2322, %v2332
      %v2337 = vmul.f32 %v2324, %v2332
      %v2342 = vcombine.low %v2334, %v2335
      %v2343 = vcombine.low %v2336, %v2337
      %2346 = vst [vmem:[%s464] sm:$0xff] %v2342
      %2347 = vst [vmem:[%s464 + $0x8] sm:$0xff] %v2343
      %v2348 = vlaneseq
      %v2349 = vshrl.u32 %v2348, 7
      %v2350 = vsub.s32 0, %v2349
      %v2351 = vrot.slane %v2332, %v2350
      %v2352 = vlaneseq
      %v2353 = vshrl.u32 %v2352, 7
      %v2354 = vsub.s32 1, %v2353
      %v2355 = vrot.slane %v2332, %v2354
      %v2356 = vlaneseq
      %v2357 = vshrl.u32 %v2356, 7
      %v2358 = vsub.s32 2, %v2357
      %v2359 = vrot.slane %v2332, %v2358
      %v2360 = vlaneseq
      %v2361 = vshrl.u32 %v2360, 7
      %v2362 = vsub.s32 3, %v2361
      %v2363 = vrot.slane %v2332, %v2362
      %v2368 = vmul.f32 %v1346, %v2351
      %v2369 = vmul.f32 %v1347, %v2351
      %v2370 = vmul.f32 %v1349, %v2355
      %v2371 = vmul.f32 %v1350, %v2355
      %v2372 = vmul.f32 %v1352, %v2359
      %v2373 = vmul.f32 %v1353, %v2359
      %v2374 = vmul.f32 %v1355, %v2363
      %v2375 = vmul.f32 %v1356, %v2363
      %2384 = vset.pattern.permute.xlu0 0
      %2385 = vperm.xlu0 %2384, %v2368
      %v2386 = vpop.permute.xlu0 %2385
      %2387 = vset.pattern.permute.xlu0 0
      %2388 = vperm.xlu0 %2387, %v2369
      %v2389 = vpop.permute.xlu0 %2388
      %2390 = vset.pattern.permute.xlu0 0
      %2391 = vperm.xlu0 %2390, %v2370
      %v2392 = vpop.permute.xlu0 %2391
      %2393 = vset.pattern.permute.xlu0 0
      %2394 = vperm.xlu0 %2393, %v2371
      %v2395 = vpop.permute.xlu0 %2394
      %2396 = vset.pattern.permute.xlu0 0
      %2397 = vperm.xlu0 %2396, %v2372
      %v2398 = vpop.permute.xlu0 %2397
      %2399 = vset.pattern.permute.xlu0 0
      %2400 = vperm.xlu0 %2399, %v2373
      %v2401 = vpop.permute.xlu0 %2400
      %2402 = vset.pattern.permute.xlu0 0
      %2403 = vperm.xlu0 %2402, %v2374
      %v2404 = vpop.permute.xlu0 %2403
      %2405 = vset.pattern.permute.xlu0 0
      %2406 = vperm.xlu0 %2405, %v2375
      %v2407 = vpop.permute.xlu0 %2406
      %v2408 = vlaneseq
      %v2409 = vshrl.u32 %v2408, 7
      %v2410 = vsub.s32 %v1154, %v2409
      %v2411 = vrot.slane %v2386, %v2410
      %v2412 = vlaneseq
      %v2413 = vshrl.u32 %v2412, 7
      %v2414 = vsub.s32 %v1159, %v2413
      %v2415 = vrot.slane %v2389, %v2414
      %v2416 = vsel %vm1164, %v2415, %v2411
      %v2417 = vlaneseq
      %v2418 = vshrl.u32 %v2417, 7
      %v2419 = vsub.s32 %v1154, %v2418
      %v2420 = vrot.slane %v2392, %v2419
      %v2421 = vlaneseq
      %v2422 = vshrl.u32 %v2421, 7
      %v2423 = vsub.s32 %v1159, %v2422
      %v2424 = vrot.slane %v2395, %v2423
      %v2425 = vsel %vm1164, %v2424, %v2420
      %v2426 = vlaneseq
      %v2427 = vshrl.u32 %v2426, 7
      %v2428 = vsub.s32 %v1154, %v2427
      %v2429 = vrot.slane %v2398, %v2428
      %v2430 = vlaneseq
      %v2431 = vshrl.u32 %v2430, 7
      %v2432 = vsub.s32 %v1159, %v2431
      %v2433 = vrot.slane %v2401, %v2432
      %v2434 = vsel %vm1164, %v2433, %v2429
      %v2435 = vlaneseq
      %v2436 = vshrl.u32 %v2435, 7
      %v2437 = vsub.s32 %v1154, %v2436
      %v2438 = vrot.slane %v2404, %v2437
      %v2439 = vlaneseq
      %v2440 = vshrl.u32 %v2439, 7
      %v2441 = vsub.s32 %v1159, %v2440
      %v2442 = vrot.slane %v2407, %v2441
      %v2443 = vsel %vm1164, %v2442, %v2438
      %v2444 = vsel %vm1193, %v2425, %v2416
      %v2445 = vsel %vm1195, %v2434, %v2444
      %v2446 = vsel %vm1197, %v2443, %v2445
      %2448 = vst.msk [vmem:[%s468] sm:$0xf] %vm1200, %v2446
      %v2449 = vmul.f32 %v2332, %v2030
      %v2450 = vsub.f32 1.0, %v2328
      %2452 = vset.pattern.permute.xlu0 0
      %2453 = vperm.xlu0 %2452, %v2450
      %v2454 = vpop.permute.xlu0 %2453
      %v2456 = vmul.f32 %v2454, %v478
      %v2457 = vadd.f32 %v2449, %v2456
      %2458 = vst [vmem:[#allocation2] sm:$0xf] %v2457
      %v2459 = vmul.f32 %v2332, %v2028
      %v2460 = vmul.f32 %v2454, %v479
      %v2461 = vadd.f32 %v2459, %v2460
      %2462 = vst [vmem:[#allocation3] sm:$0xf] %v2461
      %p2463 = scmp.lt.s32.totalorder %s25, 7
      %s2464 = scalar_select %p2463, %s25, 7
      %s2465 = smul.addr %s2464, 4
      %s2466 = smul.addr %s2465, 4
      %s2467 = scalar_lea.vmem %s12, %s2466
      %p2468 = scmp.lt.s32.totalorder %s25, 7
      %s2469 = scalar_select %p2468, %s25, 7
      %s2470 = smul.addr %s2469, 4
      %s2471 = scalar_lea.vmem %s13, %s2470
      // Predicated region
      $region73: #{decoder_forward.3} parent=67 // pred_check
        %p2472 = pneg %p305
      $region74: #{decoder_forward.3} parent=67 // pred_check_branch
        %2474 = sbr.rel (%p2472) target = $region76
      $region75: #{decoder_forward.3} parent=67 // pred_region
        _
      $region76: #{decoder_forward.3} parent=67 // pred_fallthru
        _
      // Predicated region
      $region77: #{decoder_forward.3} parent=67 // pred_check
        %p2475 = pneg %p331
      $region78: #{decoder_forward.3} parent=67 // pred_check_branch
        %2477 = sbr.rel (%p2475) target = $region80
      $region79: #{decoder_forward.3} parent=67 // pred_region
        _
      $region80: #{decoder_forward.3} parent=67 // pred_fallthru
        _
    $region68: #{decoder_forward.3} parent=5 // pred_fallthru
      _
    %p2478 = scmp.le.s32.totalorder 2, %s20
    // Predicated region
    $region81: #{decoder_forward.3} parent=5 // pred_check
      %p2479 = pneg %p2478
    $region82: #{decoder_forward.3} parent=5 // pred_check_branch
      %2481 = sbr.rel (%p2479) target = $region84
    $region83: #{decoder_forward.3} parent=5 // pred_region
      %s2482 = ssub.s32 %s20, 2
      // Predicated region
      $region85: #{decoder_forward.3} parent=83 // pred_check
        %p2483 = pneg %p311
      $region86: #{decoder_forward.3} parent=83 // pred_check_branch
        %2485 = sbr.rel (%p2483) target = $region88
      $region87: #{decoder_forward.3} parent=83 // pred_region
        %p2486 = scmp.lt.s32.totalorder %s26, 7
        %s2487 = scalar_select %p2486, %s26, 7
        %s2488 = smul.addr %s2487, 4
        %s2489 = smul.addr %s2488, 4
        %s2490 = scalar_lea.vmem %s12, %s2489
      $region88: #{decoder_forward.3} parent=83 // pred_fallthru
        _
      // Predicated region
      $region89: #{decoder_forward.3} parent=83 // pred_check
        %p2491 = pneg %p337
      $region90: #{decoder_forward.3} parent=83 // pred_check_branch
        %2493 = sbr.rel (%p2491) target = $region92
      $region91: #{decoder_forward.3} parent=83 // pred_region
        %p2494 = scmp.lt.s32.totalorder %s26, 7
        %s2495 = scalar_select %p2494, %s26, 7
        %s2496 = smul.addr %s2495, 4
        %s2497 = scalar_lea.vmem %s13, %s2496
      $region92: #{decoder_forward.3} parent=83 // pred_fallthru
        _
    $region84: #{decoder_forward.3} parent=5 // pred_fallthru
      _
  $region6: #{decoder_forward.3} parent=0 // loop_footer
    %s24 = sadd.s32 1, %s20
  $region7: #{decoder_forward.3} parent=0 // loop_footer_branch
    %19 = sbr.rel target = $region3
  $region8: #{decoder_forward.3} parent=0 // loop_exit
    _

</llo_original>
